<compile_context>
chip_gen: v7x
topology: tpu7x:2x2x1
jax: 0.10.0
libtpu: 0.0.40
codegen_flags: <defaults>
</compile_context>

<pallas_src>
import jax
import jax.numpy as jnp
from jax.experimental import pallas as pl
from jax.experimental.pallas import tpu as pltpu

EPS = 1e-5      # PyTorch BatchNorm2d default eps
_H_LO = 1       # top zero-padding of the in-VMEM conv buffers (H is a major dim)
_W_LO = 8       # left zero-padding of the W (sublane) dim: keeps interior stores tile-aligned


# ---------------- fused Pallas kernel ----------------

def _make_residual_kernel(stride, block_n, hout, wout, cin, cout,
                          compute_dtype, precision):
    s = stride
    nb = block_n
    rows = nb * hout * wout
    moff = 1 if s == 1 else 0
    hpad1, wpad1 = hout + _H_LO + moff, wout + _W_LO + moff
    hpad2, wpad2 = hout + _H_LO + 1, wout + _W_LO + 1

    def kernel(x_ref, w1_ref, w2_ref, s1_ref, b1_ref, s2_ref, b2_ref,
               o_ref, h1p_ref, h2p_ref):
        cdt = compute_dtype

        # ---- bn1 + relu (f32 math), one cast to matmul dtype, write into padded buffer ----
        xp = x_ref[...]                                          # (nb, s*s, hout, wout, cin) f32
        h1 = jnp.maximum(xp * s1_ref[...] + b1_ref[...], 0.0).astype(cdt)
        h1p_ref[:, :, _H_LO:_H_LO + hout, _W_LO:_W_LO + wout, :] = h1

        # Zero ONLY the halo strips the conv1 taps read (interior is fully overwritten each
        # step; no full-buffer clear, and no program_id gating -> safe under megacore split).
        h1p_ref[:, :, 0:_H_LO, :, :] = jnp.zeros((nb, s * s, _H_LO, wpad1, cin), cdt)
        h1p_ref[:, :, :, _W_LO - 1:_W_LO, :] = jnp.zeros((nb, s * s, hpad1, 1, cin), cdt)
        if moff:
            h1p_ref[:, :, _H_LO + hout:hpad1, :, :] = jnp.zeros((nb, s * s, 1, wpad1, cin), cdt)
            h1p_ref[:, :, :, _W_LO + wout:wpad1, :] = jnp.zeros((nb, s * s, hpad1, 1, cin), cdt)

        # ---- conv1 (3x3, stride=s): 9 shifted-slice MXU matmuls, f32 accumulator ----
        acc = jnp.zeros((rows, cout), jnp.float32)
        for kh in range(3):
            a = (kh - 1) % s
            oh = (kh - 1 - a) // s + _H_LO
            for kw in range(3):
                b = (kw - 1) % s
                ow = (kw - 1 - b) // s + _W_LO
                p = a * s + b
                xs = h1p_ref[:, p, oh:oh + hout, ow:ow + wout, :]
                acc += jnp.dot(xs.reshape(rows, cin), w1_ref[kh * 3 + kw],
                               preferred_element_type=jnp.float32,
                               precision=precision)

        # ---- bn2 + relu (f32), into the conv2 zero-padded VMEM buffer ----
        h2 = jnp.maximum(acc * s2_ref[...] + b2_ref[...], 0.0).astype(cdt)
        h2p_ref[:, _H_LO:_H_LO + hout, _W_LO:_W_LO + wout, :] = h2.reshape(nb, hout, wout, cout)
        h2p_ref[:, 0:_H_LO, :, :] = jnp.zeros((nb, _H_LO, wpad2, cout), cdt)
        h2p_ref[:, _H_LO + hout:hpad2, :, :] = jnp.zeros((nb, 1, wpad2, cout), cdt)
        h2p_ref[:, :, _W_LO - 1:_W_LO, :] = jnp.zeros((nb, hpad2, 1, cout), cdt)
        h2p_ref[:, :, _W_LO + wout:wpad2, :] = jnp.zeros((nb, hpad2, 1, cout), cdt)

        # ---- shortcut (identity, or AvgPool(k=1,s=2) subsample + zero channels), folded
        #      into the conv2 accumulator init ----
        d = x_ref[:, 0].reshape(rows, cin)                       # phase (0,0) == x[::s, ::s]
        if cin == cout:                                          # identity path (stride == 1)
            acc2 = d
        else:                                                    # only low cin channels get d
            acc2 = jnp.concatenate(
                [d, jnp.zeros((rows, cout - cin), jnp.float32)], axis=-1)

        # ---- conv2 (3x3, stride=1): 9 shifted-slice MXU matmuls ----
        for kh in range(3):
            for kw in range(3):
                xs = h2p_ref[:, kh - 1 + _H_LO:kh - 1 + _H_LO + hout,
                             kw - 1 + _W_LO:kw - 1 + _W_LO + wout, :]
                acc2 += jnp.dot(xs.reshape(rows, cout), w2_ref[kh * 3 + kw],
                                preferred_element_type=jnp.float32,
                                precision=precision)

        o_ref[...] = acc2.reshape(nb, hout, wout, cout).astype(o_ref.dtype)

    return kernel


# ---------------- wrappers ----------------

def _fold_bn(gamma, beta, mean, var):
    scale = gamma / jnp.sqrt(var + EPS)
    bias = beta - mean * scale
    return scale, bias


def _pick_block_n(n, h, w, cin, cout, budget_bytes=4 * 1024 * 1024):
    """Largest divisor of n whose (conservative) per-step VMEM footprint fits the budget."""
    per_img = 4 * (5 * h * w * cin + 5 * h * w * cout)   # incl. double-buffering + accumulators
    cap = max(1, budget_bytes // max(per_img, 1))
    best = 1
    for d in range(1, n + 1):
        if n % d == 0 and d <= cap:
            best = d
    return best


def residual_module_forward_nhwc(x_nhwc, params, stride, *,
                                 compute_dtype=jnp.bfloat16, precision=None,
                                 block_n=None):
    """NHWC entry point (preferred when chaining blocks: keeps activations NHWC)."""
    n, h, w, cin = x_nhwc.shape
    cout = params["w1"].shape[0]
    s = int(stride)
    assert h % s == 0 and w % s == 0, "spatial dims must be divisible by stride"
    if s == 1:
        assert cin == cout, "identity shortcut requires cin == cout"
    else:
        assert cout == 2 * cin, "zero-pad shortcut requires cout == 2*cin"
    hout, wout = h // s, w // s

    if block_n is None:
        block_n = _pick_block_n(n, h, w, cin, cout)
    assert n % block_n == 0, "block_n must divide the batch size"

    x = x_nhwc.astype(jnp.float32)
    # Space-to-depth phase split so the strided conv only needs contiguous in-kernel slices.
    # For stride==1 this is just a (no-op) reshape.
    xp = x.reshape(n, h // s, s, w // s, s, cin)
    xp = jnp.transpose(xp, (0, 2, 4, 1, 3, 5)).reshape(n, s * s, h // s, w // s, cin)

    # Per-tap weight matrices (kh*3+kw, cin, cout), pre-cast to the matmul compute dtype.
    w1m = jnp.transpose(params["w1"], (2, 3, 1, 0)).reshape(9, cin, cout).astype(compute_dtype)
    w2m = jnp.transpose(params["w2"], (2, 3, 1, 0)).reshape(9, cout, cout).astype(compute_dtype)

    s1, b1 = _fold_bn(params["g1"], params["b1"], params["m1"], params["v1"])
    s2, b2 = _fold_bn(params["g2"], params["b2"], params["m2"], params["v2"])
    s1 = s1.reshape(1, cin).astype(jnp.float32)
    b1 = b1.reshape(1, cin).astype(jnp.float32)
    s2 = s2.reshape(1, cout).astype(jnp.float32)
    b2 = b2.reshape(1, cout).astype(jnp.float32)

    moff = 1 if s == 1 else 0   # extra bottom/right padding needed only for stride 1
    h1p_shape = (block_n, s * s, hout + _H_LO + moff, wout + _W_LO + moff, cin)
    h2p_shape = (block_n, hout + _H_LO + 1, wout + _W_LO + 1, cout)

    kernel = _make_residual_kernel(s, block_n, hout, wout, cin, cout,
                                   compute_dtype, precision)

    out = pl.pallas_call(
        kernel,
        out_shape=jax.ShapeDtypeStruct((n, hout, wout, cout), jnp.float32),
        grid=(n // block_n,),
        in_specs=[
            pl.BlockSpec((block_n, s * s, h // s, w // s, cin), lambda i: (i, 0, 0, 0, 0)),
            pl.BlockSpec((9, cin, cout), lambda i: (0, 0, 0)),   # weights resident across grid
            pl.BlockSpec((9, cout, cout), lambda i: (0, 0, 0)),
            pl.BlockSpec((1, cin), lambda i: (0, 0)),            # folded BN1 scale
            pl.BlockSpec((1, cin), lambda i: (0, 0)),            # folded BN1 bias
            pl.BlockSpec((1, cout), lambda i: (0, 0)),           # folded BN2 scale
            pl.BlockSpec((1, cout), lambda i: (0, 0)),           # folded BN2 bias
        ],
        out_specs=pl.BlockSpec((block_n, hout, wout, cout), lambda i: (i, 0, 0, 0)),
        scratch_shapes=[
            pltpu.VMEM(h1p_shape, compute_dtype),   # padded post-bn1 activations (per phase)
            pltpu.VMEM(h2p_shape, compute_dtype),   # padded post-bn2 activations
        ],
        compiler_params=pltpu.CompilerParams(
            dimension_semantics=("parallel",),
            vmem_limit_bytes=32 * 1024 * 1024,
        ),
    )(xp, w1m, w2m, s1, b1, s2, b2)
    return out


def residual_module_forward(x_nchw, params, stride, **kwargs):
    # PyTorch-layout wrapper (NCHW in / NCHW out). When stacking blocks, prefer the NHWC
    # entry point above and keep activations NHWC to avoid these per-block transposes.
    x = jnp.transpose(x_nchw, (0, 2, 3, 1))
    out = residual_module_forward_nhwc(x, params, stride, **kwargs)
    return jnp.transpose(out, (0, 3, 1, 2))


# ---------------- pure-JAX reference (for correctness check) ----------------

def reference_forward(x, p, stride):
    def bn(y, g, b, m, v):
        rs = lambda a: a.reshape(1, -1, 1, 1)
        return (y - rs(m)) / jnp.sqrt(rs(v) + EPS) * rs(g) + rs(b)

    h = jax.nn.relu(bn(x, p["g1"], p["b1"], p["m1"], p["v1"]))
    h = jax.lax.conv_general_dilated(h, p["w1"], (stride, stride), ((1, 1), (1, 1)),
                                     dimension_numbers=("NCHW", "OIHW", "NCHW"),
                                     precision=jax.lax.Precision.HIGHEST)
    h = jax.nn.relu(bn(h, p["g2"], p["b2"], p["m2"], p["v2"]))
    h = jax.lax.conv_general_dilated(h, p["w2"], (1, 1), ((1, 1), (1, 1)),
                                     dimension_numbers=("NCHW", "OIHW", "NCHW"),
                                     precision=jax.lax.Precision.HIGHEST)
    if h.shape == x.shape:
        return h + x
    d = x[:, :, ::2, ::2]
    return h + jnp.concatenate([d, jnp.zeros_like(d)], axis=1)


if __name__ == "__main__":
    def make_params(key, cin, cout):
        ks = jax.random.split(key, 10)
        return {
            "w1": jax.random.normal(ks[0], (cout, cin, 3, 3), jnp.float32) * 0.2,
            "w2": jax.random.normal(ks[1], (cout, cout, 3, 3), jnp.float32) * 0.2,
            "g1": jax.random.uniform(ks[2], (cin,), jnp.float32, 0.5, 1.5),
            "b1": jax.random.normal(ks[3], (cin,), jnp.float32) * 0.1,
            "m1": jax.random.normal(ks[4], (cin,), jnp.float32) * 0.1,
            "v1": jax.random.uniform(ks[5], (cin,), jnp.float32, 0.5, 1.5),
            "g2": jax.random.uniform(ks[6], (cout,), jnp.float32, 0.5, 1.5),
            "b2": jax.random.normal(ks[7], (cout,), jnp.float32) * 0.1,
            "m2": jax.random.normal(ks[8], (cout,), jnp.float32) * 0.1,
            "v2": jax.random.uniform(ks[9], (cout,), jnp.float32, 0.5, 1.5),
        }

    key = jax.random.PRNGKey(0)
    kx1, kp1, kx2, kp2 = jax.random.split(key, 4)

    # --- case 1: strided block (stride=2) -> AvgPool(1,2) subsample + zero-concat shortcut ---
    N, CIN, COUT, H, W, STRIDE = 2, 4, 8, 16, 16, 2
    x1 = jax.random.normal(kx1, (N, CIN, H, W), jnp.float32)
    p1 = make_params(kp1, CIN, COUT)

    out1 = jax.block_until_ready(residual_module_forward(x1, p1, STRIDE))         # bf16 fast path
    ref1 = jax.block_until_ready(reference_forward(x1, p1, STRIDE))
    assert out1.shape == (N, COUT, H // STRIDE, W // STRIDE), out1.shape
    assert jnp.allclose(out1, ref1, atol=1e-1, rtol=5e-2), \
        float(jnp.max(jnp.abs(out1 - ref1)))

    out1v = jax.block_until_ready(                                                 # f32 validation path
        residual_module_forward(x1, p1, STRIDE, compute_dtype=jnp.float32,
                                precision=jax.lax.Precision.HIGHEST))
    assert jnp.allclose(out1v, ref1, atol=1e-3, rtol=1e-3), \
        float(jnp.max(jnp.abs(out1v - ref1)))

    # --- case 2: identity shortcut (stride=1, cin == cout) ---
    N2, C2, H2, W2 = 2, 8, 16, 16
    x2 = jax.random.normal(kx2, (N2, C2, H2, W2), jnp.float32)
    p2 = make_params(kp2, C2, C2)

    out2 = jax.block_until_ready(residual_module_forward(x2, p2, 1))
    ref2 = jax.block_until_ready(reference_forward(x2, p2, 1))
    assert out2.shape == (N2, C2, H2, W2), out2.shape
    assert jnp.allclose(out2, ref2, atol=1e-1, rtol=5e-2), \
        float(jnp.max(jnp.abs(out2 - ref2)))

    out2v = jax.block_until_ready(
        residual_module_forward(x2, p2, 1, compute_dtype=jnp.float32,
                                precision=jax.lax.Precision.HIGHEST))
    assert jnp.allclose(out2v, ref2, atol=1e-3, rtol=1e-3), \
        float(jnp.max(jnp.abs(out2v - ref2)))

    # --- case 3: explicit block_n=1 (multi-step grid, exercises per-step halo re-zeroing) ---
    out3 = jax.block_until_ready(residual_module_forward(x1, p1, STRIDE, block_n=1))
    assert jnp.allclose(out3, ref1, atol=1e-1, rtol=5e-2), \
        float(jnp.max(jnp.abs(out3 - ref1)))

    print("KERNEL_OK")
</pallas_src>

<mosaic_0001>
module attributes {stable_mosaic.version = 11 : i64} {
  func.func @kernel(%arg0: i32, %arg1: memref<2x4x8x8x4xf32, #tpu.memory_space<vmem>>, %arg2: memref<9x4x8xbf16, #tpu.memory_space<vmem>>, %arg3: memref<9x8x8xbf16, #tpu.memory_space<vmem>>, %arg4: memref<1x4xf32, #tpu.memory_space<vmem>>, %arg5: memref<1x4xf32, #tpu.memory_space<vmem>>, %arg6: memref<1x8xf32, #tpu.memory_space<vmem>>, %arg7: memref<1x8xf32, #tpu.memory_space<vmem>>, %arg8: memref<2x8x8x8xf32, #tpu.memory_space<vmem>>, %arg9: memref<2x4x9x16x4xbf16, #tpu.memory_space<vmem>>, %arg10: memref<2x10x17x8xbf16, #tpu.memory_space<vmem>>) attributes {dimension_semantics = [#tpu.dimension_semantics<parallel>], iteration_bounds = array<i64: 1>, scalar_prefetch = 0 : i64, scratch_operands = 2 : i64, tpu.core_type = #tpu.core_type<tc>, window_params = [{transform_indices = @transform_0, window_bounds = array<i64: 2, 4, 8, 8, 4>}, {pipeline_mode = #tpu.pipeline_mode<synchronous>, transform_indices = @transform_1, window_bounds = array<i64: 9, 4, 8>}, {pipeline_mode = #tpu.pipeline_mode<synchronous>, transform_indices = @transform_2, window_bounds = array<i64: 9, 8, 8>}, {pipeline_mode = #tpu.pipeline_mode<synchronous>, transform_indices = @transform_3, window_bounds = array<i64: 1, 4>}, {pipeline_mode = #tpu.pipeline_mode<synchronous>, transform_indices = @transform_4, window_bounds = array<i64: 1, 4>}, {pipeline_mode = #tpu.pipeline_mode<synchronous>, transform_indices = @transform_5, window_bounds = array<i64: 1, 8>}, {pipeline_mode = #tpu.pipeline_mode<synchronous>, transform_indices = @transform_6, window_bounds = array<i64: 1, 8>}, {transform_indices = @transform_7, window_bounds = array<i64: 2, 8, 8, 8>}]} {
    %c0 = arith.constant 0 : index
    %c0_0 = arith.constant 0 : index
    %c0_1 = arith.constant 0 : index
    %c0_2 = arith.constant 0 : index
    %c0_3 = arith.constant 0 : index
    %0 = vector.load %arg1[%c0, %c0_0, %c0_1, %c0_2, %c0_3] : memref<2x4x8x8x4xf32, #tpu.memory_space<vmem>>, vector<2x4x8x8x4xf32>
    %c0_4 = arith.constant 0 : index
    %c0_5 = arith.constant 0 : index
    %1 = vector.load %arg4[%c0_4, %c0_5] : memref<1x4xf32, #tpu.memory_space<vmem>>, vector<1x4xf32>
    %2 = vector.shape_cast %1 : vector<1x4xf32> to vector<1x1x1x1x4xf32>
    %3 = vector.broadcast %2 : vector<1x1x1x1x4xf32> to vector<2x4x8x8x4xf32>
    %4 = arith.mulf %0, %3 : vector<2x4x8x8x4xf32>
    %c0_6 = arith.constant 0 : index
    %c0_7 = arith.constant 0 : index
    %5 = vector.load %arg5[%c0_6, %c0_7] : memref<1x4xf32, #tpu.memory_space<vmem>>, vector<1x4xf32>
    %6 = vector.shape_cast %5 : vector<1x4xf32> to vector<1x1x1x1x4xf32>
    %7 = vector.broadcast %6 : vector<1x1x1x1x4xf32> to vector<2x4x8x8x4xf32>
    %8 = arith.addf %4, %7 : vector<2x4x8x8x4xf32>
    %cst = arith.constant 0.000000e+00 : f32
    %9 = vector.broadcast %cst : f32 to vector<2x4x8x8x4xf32>
    %10 = arith.maximumf %8, %9 : vector<2x4x8x8x4xf32>
    %11 = arith.truncf %10 : vector<2x4x8x8x4xf32> to vector<2x4x8x8x4xbf16>
    %c0_8 = arith.constant 0 : index
    %c0_9 = arith.constant 0 : index
    %c1 = arith.constant 1 : index
    %c8 = arith.constant 8 : index
    %c0_10 = arith.constant 0 : index
    %12 = vector.load %arg9[%c0_8, %c0_9, %c1, %c8, %c0_10] : memref<2x4x9x16x4xbf16, #tpu.memory_space<vmem>>, vector<2x4x8x8x4xbf16>
    tpu.vector_store %arg9[%c0_8, %c0_9, %c1, %c8, %c0_10], %11 {strides = array<i32>} : memref<2x4x9x16x4xbf16, #tpu.memory_space<vmem>>, vector<2x4x8x8x4xbf16>,
    %cst_11 = arith.constant 0.000000e+00 : bf16
    %13 = vector.broadcast %cst_11 : bf16 to vector<2x4x1x16x4xbf16>
    %c0_12 = arith.constant 0 : index
    %c0_13 = arith.constant 0 : index
    %c0_14 = arith.constant 0 : index
    %c0_15 = arith.constant 0 : index
    %c0_16 = arith.constant 0 : index
    %14 = vector.load %arg9[%c0_12, %c0_13, %c0_14, %c0_15, %c0_16] : memref<2x4x9x16x4xbf16, #tpu.memory_space<vmem>>, vector<2x4x1x16x4xbf16>
    tpu.vector_store %arg9[%c0_12, %c0_13, %c0_14, %c0_15, %c0_16], %13 {strides = array<i32>} : memref<2x4x9x16x4xbf16, #tpu.memory_space<vmem>>, vector<2x4x1x16x4xbf16>,
    %cst_17 = arith.constant 0.000000e+00 : bf16
    %15 = vector.broadcast %cst_17 : bf16 to vector<2x4x9x1x4xbf16>
    %c0_18 = arith.constant 0 : index
    %c0_19 = arith.constant 0 : index
    %c0_20 = arith.constant 0 : index
    %c7 = arith.constant 7 : index
    %c0_21 = arith.constant 0 : index
    %16 = vector.load %arg9[%c0_18, %c0_19, %c0_20, %c7, %c0_21] : memref<2x4x9x16x4xbf16, #tpu.memory_space<vmem>>, vector<2x4x9x1x4xbf16>
    tpu.vector_store %arg9[%c0_18, %c0_19, %c0_20, %c7, %c0_21], %15 {strides = array<i32>} : memref<2x4x9x16x4xbf16, #tpu.memory_space<vmem>>, vector<2x4x9x1x4xbf16>,
    %cst_22 = arith.constant 0.000000e+00 : f32
    %17 = vector.broadcast %cst_22 : f32 to vector<128x8xf32>
    %c0_23 = arith.constant 0 : index
    %c3 = arith.constant 3 : index
    %c0_24 = arith.constant 0 : index
    %c7_25 = arith.constant 7 : index
    %c0_26 = arith.constant 0 : index
    %18 = vector.load %arg9[%c0_23, %c3, %c0_24, %c7_25, %c0_26] : memref<2x4x9x16x4xbf16, #tpu.memory_space<vmem>>, vector<2x1x8x8x4xbf16>
    %19 = vector.shape_cast %18 : vector<2x1x8x8x4xbf16> to vector<2x8x8x4xbf16>
    %20 = vector.shape_cast %19 : vector<2x8x8x4xbf16> to vector<128x4xbf16>
    %c0_27 = arith.constant 0 : index
    %c0_28 = arith.constant 0 : index
    %c0_29 = arith.constant 0 : index
    %21 = vector.load %arg2[%c0_27, %c0_28, %c0_29] : memref<9x4x8xbf16, #tpu.memory_space<vmem>>, vector<1x4x8xbf16>
    %22 = vector.shape_cast %21 : vector<1x4x8xbf16> to vector<4x8xbf16>
    %cst_30 = arith.constant dense<0.000000e+00> : vector<128x8xf32>
    %23 = tpu.matmul %20, %22, %cst_30 {dimension_numbers = #tpu.dot_dimension_numbers<[1], [0], [0], [1], [0, 0, 1, 1], [], []>} : vector<128x4xbf16>, vector<4x8xbf16>, vector<128x8xf32> -> vector<128x8xf32>
    %24 = arith.addf %17, %23 : vector<128x8xf32>
    %c0_31 = arith.constant 0 : index
    %c2 = arith.constant 2 : index
    %c0_32 = arith.constant 0 : index
    %c8_33 = arith.constant 8 : index
    %c0_34 = arith.constant 0 : index
    %25 = vector.load %arg9[%c0_31, %c2, %c0_32, %c8_33, %c0_34] : memref<2x4x9x16x4xbf16, #tpu.memory_space<vmem>>, vector<2x1x8x8x4xbf16>
    %26 = vector.shape_cast %25 : vector<2x1x8x8x4xbf16> to vector<2x8x8x4xbf16>
    %27 = vector.shape_cast %26 : vector<2x8x8x4xbf16> to vector<128x4xbf16>
    %c1_35 = arith.constant 1 : index
    %c0_36 = arith.constant 0 : index
    %c0_37 = arith.constant 0 : index
    %28 = vector.load %arg2[%c1_35, %c0_36, %c0_37] : memref<9x4x8xbf16, #tpu.memory_space<vmem>>, vector<1x4x8xbf16>
    %29 = vector.shape_cast %28 : vector<1x4x8xbf16> to vector<4x8xbf16>
    %cst_38 = arith.constant dense<0.000000e+00> : vector<128x8xf32>
    %30 = tpu.matmul %27, %29, %cst_38 {dimension_numbers = #tpu.dot_dimension_numbers<[1], [0], [0], [1], [0, 0, 1, 1], [], []>} : vector<128x4xbf16>, vector<4x8xbf16>, vector<128x8xf32> -> vector<128x8xf32>
    %31 = arith.addf %24, %30 : vector<128x8xf32>
    %c0_39 = arith.constant 0 : index
    %c3_40 = arith.constant 3 : index
    %c0_41 = arith.constant 0 : index
    %c8_42 = arith.constant 8 : index
    %c0_43 = arith.constant 0 : index
    %32 = vector.load %arg9[%c0_39, %c3_40, %c0_41, %c8_42, %c0_43] : memref<2x4x9x16x4xbf16, #tpu.memory_space<vmem>>, vector<2x1x8x8x4xbf16>
    %33 = vector.shape_cast %32 : vector<2x1x8x8x4xbf16> to vector<2x8x8x4xbf16>
    %34 = vector.shape_cast %33 : vector<2x8x8x4xbf16> to vector<128x4xbf16>
    %c2_44 = arith.constant 2 : index
    %c0_45 = arith.constant 0 : index
    %c0_46 = arith.constant 0 : index
    %35 = vector.load %arg2[%c2_44, %c0_45, %c0_46] : memref<9x4x8xbf16, #tpu.memory_space<vmem>>, vector<1x4x8xbf16>
    %36 = vector.shape_cast %35 : vector<1x4x8xbf16> to vector<4x8xbf16>
    %cst_47 = arith.constant dense<0.000000e+00> : vector<128x8xf32>
    %37 = tpu.matmul %34, %36, %cst_47 {dimension_numbers = #tpu.dot_dimension_numbers<[1], [0], [0], [1], [0, 0, 1, 1], [], []>} : vector<128x4xbf16>, vector<4x8xbf16>, vector<128x8xf32> -> vector<128x8xf32>
    %38 = arith.addf %31, %37 : vector<128x8xf32>
    %c0_48 = arith.constant 0 : index
    %c1_49 = arith.constant 1 : index
    %c1_50 = arith.constant 1 : index
    %c7_51 = arith.constant 7 : index
    %c0_52 = arith.constant 0 : index
    %39 = vector.load %arg9[%c0_48, %c1_49, %c1_50, %c7_51, %c0_52] : memref<2x4x9x16x4xbf16, #tpu.memory_space<vmem>>, vector<2x1x8x8x4xbf16>
    %40 = vector.shape_cast %39 : vector<2x1x8x8x4xbf16> to vector<2x8x8x4xbf16>
    %41 = vector.shape_cast %40 : vector<2x8x8x4xbf16> to vector<128x4xbf16>
    %c3_53 = arith.constant 3 : index
    %c0_54 = arith.constant 0 : index
    %c0_55 = arith.constant 0 : index
    %42 = vector.load %arg2[%c3_53, %c0_54, %c0_55] : memref<9x4x8xbf16, #tpu.memory_space<vmem>>, vector<1x4x8xbf16>
    %43 = vector.shape_cast %42 : vector<1x4x8xbf16> to vector<4x8xbf16>
    %cst_56 = arith.constant dense<0.000000e+00> : vector<128x8xf32>
    %44 = tpu.matmul %41, %43, %cst_56 {dimension_numbers = #tpu.dot_dimension_numbers<[1], [0], [0], [1], [0, 0, 1, 1], [], []>} : vector<128x4xbf16>, vector<4x8xbf16>, vector<128x8xf32> -> vector<128x8xf32>
    %45 = arith.addf %38, %44 : vector<128x8xf32>
    %c0_57 = arith.constant 0 : index
    %c0_58 = arith.constant 0 : index
    %c1_59 = arith.constant 1 : index
    %c8_60 = arith.constant 8 : index
    %c0_61 = arith.constant 0 : index
    %46 = vector.load %arg9[%c0_57, %c0_58, %c1_59, %c8_60, %c0_61] : memref<2x4x9x16x4xbf16, #tpu.memory_space<vmem>>, vector<2x1x8x8x4xbf16>
    %47 = vector.shape_cast %46 : vector<2x1x8x8x4xbf16> to vector<2x8x8x4xbf16>
    %48 = vector.shape_cast %47 : vector<2x8x8x4xbf16> to vector<128x4xbf16>
    %c4 = arith.constant 4 : index
    %c0_62 = arith.constant 0 : index
    %c0_63 = arith.constant 0 : index
    %49 = vector.load %arg2[%c4, %c0_62, %c0_63] : memref<9x4x8xbf16, #tpu.memory_space<vmem>>, vector<1x4x8xbf16>
    %50 = vector.shape_cast %49 : vector<1x4x8xbf16> to vector<4x8xbf16>
    %cst_64 = arith.constant dense<0.000000e+00> : vector<128x8xf32>
    %51 = tpu.matmul %48, %50, %cst_64 {dimension_numbers = #tpu.dot_dimension_numbers<[1], [0], [0], [1], [0, 0, 1, 1], [], []>} : vector<128x4xbf16>, vector<4x8xbf16>, vector<128x8xf32> -> vector<128x8xf32>
    %52 = arith.addf %45, %51 : vector<128x8xf32>
    %c0_65 = arith.constant 0 : index
    %c1_66 = arith.constant 1 : index
    %c1_67 = arith.constant 1 : index
    %c8_68 = arith.constant 8 : index
    %c0_69 = arith.constant 0 : index
    %53 = vector.load %arg9[%c0_65, %c1_66, %c1_67, %c8_68, %c0_69] : memref<2x4x9x16x4xbf16, #tpu.memory_space<vmem>>, vector<2x1x8x8x4xbf16>
    %54 = vector.shape_cast %53 : vector<2x1x8x8x4xbf16> to vector<2x8x8x4xbf16>
    %55 = vector.shape_cast %54 : vector<2x8x8x4xbf16> to vector<128x4xbf16>
    %c5 = arith.constant 5 : index
    %c0_70 = arith.constant 0 : index
    %c0_71 = arith.constant 0 : index
    %56 = vector.load %arg2[%c5, %c0_70, %c0_71] : memref<9x4x8xbf16, #tpu.memory_space<vmem>>, vector<1x4x8xbf16>
    %57 = vector.shape_cast %56 : vector<1x4x8xbf16> to vector<4x8xbf16>
    %cst_72 = arith.constant dense<0.000000e+00> : vector<128x8xf32>
    %58 = tpu.matmul %55, %57, %cst_72 {dimension_numbers = #tpu.dot_dimension_numbers<[1], [0], [0], [1], [0, 0, 1, 1], [], []>} : vector<128x4xbf16>, vector<4x8xbf16>, vector<128x8xf32> -> vector<128x8xf32>
    %59 = arith.addf %52, %58 : vector<128x8xf32>
    %c0_73 = arith.constant 0 : index
    %c3_74 = arith.constant 3 : index
    %c1_75 = arith.constant 1 : index
    %c7_76 = arith.constant 7 : index
    %c0_77 = arith.constant 0 : index
    %60 = vector.load %arg9[%c0_73, %c3_74, %c1_75, %c7_76, %c0_77] : memref<2x4x9x16x4xbf16, #tpu.memory_space<vmem>>, vector<2x1x8x8x4xbf16>
    %61 = vector.shape_cast %60 : vector<2x1x8x8x4xbf16> to vector<2x8x8x4xbf16>
    %62 = vector.shape_cast %61 : vector<2x8x8x4xbf16> to vector<128x4xbf16>
    %c6 = arith.constant 6 : index
    %c0_78 = arith.constant 0 : index
    %c0_79 = arith.constant 0 : index
    %63 = vector.load %arg2[%c6, %c0_78, %c0_79] : memref<9x4x8xbf16, #tpu.memory_space<vmem>>, vector<1x4x8xbf16>
    %64 = vector.shape_cast %63 : vector<1x4x8xbf16> to vector<4x8xbf16>
    %cst_80 = arith.constant dense<0.000000e+00> : vector<128x8xf32>
    %65 = tpu.matmul %62, %64, %cst_80 {dimension_numbers = #tpu.dot_dimension_numbers<[1], [0], [0], [1], [0, 0, 1, 1], [], []>} : vector<128x4xbf16>, vector<4x8xbf16>, vector<128x8xf32> -> vector<128x8xf32>
    %66 = arith.addf %59, %65 : vector<128x8xf32>
    %c0_81 = arith.constant 0 : index
    %c2_82 = arith.constant 2 : index
    %c1_83 = arith.constant 1 : index
    %c8_84 = arith.constant 8 : index
    %c0_85 = arith.constant 0 : index
    %67 = vector.load %arg9[%c0_81, %c2_82, %c1_83, %c8_84, %c0_85] : memref<2x4x9x16x4xbf16, #tpu.memory_space<vmem>>, vector<2x1x8x8x4xbf16>
    %68 = vector.shape_cast %67 : vector<2x1x8x8x4xbf16> to vector<2x8x8x4xbf16>
    %69 = vector.shape_cast %68 : vector<2x8x8x4xbf16> to vector<128x4xbf16>
    %c7_86 = arith.constant 7 : index
    %c0_87 = arith.constant 0 : index
    %c0_88 = arith.constant 0 : index
    %70 = vector.load %arg2[%c7_86, %c0_87, %c0_88] : memref<9x4x8xbf16, #tpu.memory_space<vmem>>, vector<1x4x8xbf16>
    %71 = vector.shape_cast %70 : vector<1x4x8xbf16> to vector<4x8xbf16>
    %cst_89 = arith.constant dense<0.000000e+00> : vector<128x8xf32>
    %72 = tpu.matmul %69, %71, %cst_89 {dimension_numbers = #tpu.dot_dimension_numbers<[1], [0], [0], [1], [0, 0, 1, 1], [], []>} : vector<128x4xbf16>, vector<4x8xbf16>, vector<128x8xf32> -> vector<128x8xf32>
    %73 = arith.addf %66, %72 : vector<128x8xf32>
    %c0_90 = arith.constant 0 : index
    %c3_91 = arith.constant 3 : index
    %c1_92 = arith.constant 1 : index
    %c8_93 = arith.constant 8 : index
    %c0_94 = arith.constant 0 : index
    %74 = vector.load %arg9[%c0_90, %c3_91, %c1_92, %c8_93, %c0_94] : memref<2x4x9x16x4xbf16, #tpu.memory_space<vmem>>, vector<2x1x8x8x4xbf16>
    %75 = vector.shape_cast %74 : vector<2x1x8x8x4xbf16> to vector<2x8x8x4xbf16>
    %76 = vector.shape_cast %75 : vector<2x8x8x4xbf16> to vector<128x4xbf16>
    %c8_95 = arith.constant 8 : index
    %c0_96 = arith.constant 0 : index
    %c0_97 = arith.constant 0 : index
    %77 = vector.load %arg2[%c8_95, %c0_96, %c0_97] : memref<9x4x8xbf16, #tpu.memory_space<vmem>>, vector<1x4x8xbf16>
    %78 = vector.shape_cast %77 : vector<1x4x8xbf16> to vector<4x8xbf16>
    %cst_98 = arith.constant dense<0.000000e+00> : vector<128x8xf32>
    %79 = tpu.matmul %76, %78, %cst_98 {dimension_numbers = #tpu.dot_dimension_numbers<[1], [0], [0], [1], [0, 0, 1, 1], [], []>} : vector<128x4xbf16>, vector<4x8xbf16>, vector<128x8xf32> -> vector<128x8xf32>
    %80 = arith.addf %73, %79 : vector<128x8xf32>
    %c0_99 = arith.constant 0 : index
    %c0_100 = arith.constant 0 : index
    %81 = vector.load %arg6[%c0_99, %c0_100] : memref<1x8xf32, #tpu.memory_space<vmem>>, vector<1x8xf32>
    %82 = vector.broadcast %81 : vector<1x8xf32> to vector<128x8xf32>
    %83 = arith.mulf %80, %82 : vector<128x8xf32>
    %c0_101 = arith.constant 0 : index
    %c0_102 = arith.constant 0 : index
    %84 = vector.load %arg7[%c0_101, %c0_102] : memref<1x8xf32, #tpu.memory_space<vmem>>, vector<1x8xf32>
    %85 = vector.broadcast %84 : vector<1x8xf32> to vector<128x8xf32>
    %86 = arith.addf %83, %85 : vector<128x8xf32>
    %cst_103 = arith.constant 0.000000e+00 : f32
    %87 = vector.broadcast %cst_103 : f32 to vector<128x8xf32>
    %88 = arith.maximumf %86, %87 : vector<128x8xf32>
    %89 = arith.truncf %88 : vector<128x8xf32> to vector<128x8xbf16>
    %90 = vector.shape_cast %89 : vector<128x8xbf16> to vector<2x8x8x8xbf16>
    %c0_104 = arith.constant 0 : index
    %c1_105 = arith.constant 1 : index
    %c8_106 = arith.constant 8 : index
    %c0_107 = arith.constant 0 : index
    %91 = vector.load %arg10[%c0_104, %c1_105, %c8_106, %c0_107] : memref<2x10x17x8xbf16, #tpu.memory_space<vmem>>, vector<2x8x8x8xbf16>
    tpu.vector_store %arg10[%c0_104, %c1_105, %c8_106, %c0_107], %90 {strides = array<i32>} : memref<2x10x17x8xbf16, #tpu.memory_space<vmem>>, vector<2x8x8x8xbf16>,
    %cst_108 = arith.constant 0.000000e+00 : bf16
    %92 = vector.broadcast %cst_108 : bf16 to vector<2x1x17x8xbf16>
    %c0_109 = arith.constant 0 : index
    %c0_110 = arith.constant 0 : index
    %c0_111 = arith.constant 0 : index
    %c0_112 = arith.constant 0 : index
    %93 = vector.load %arg10[%c0_109, %c0_110, %c0_111, %c0_112] : memref<2x10x17x8xbf16, #tpu.memory_space<vmem>>, vector<2x1x17x8xbf16>
    tpu.vector_store %arg10[%c0_109, %c0_110, %c0_111, %c0_112], %92 {strides = array<i32>} : memref<2x10x17x8xbf16, #tpu.memory_space<vmem>>, vector<2x1x17x8xbf16>,
    %cst_113 = arith.constant 0.000000e+00 : bf16
    %94 = vector.broadcast %cst_113 : bf16 to vector<2x1x17x8xbf16>
    %c0_114 = arith.constant 0 : index
    %c9 = arith.constant 9 : index
    %c0_115 = arith.constant 0 : index
    %c0_116 = arith.constant 0 : index
    %95 = vector.load %arg10[%c0_114, %c9, %c0_115, %c0_116] : memref<2x10x17x8xbf16, #tpu.memory_space<vmem>>, vector<2x1x17x8xbf16>
    tpu.vector_store %arg10[%c0_114, %c9, %c0_115, %c0_116], %94 {strides = array<i32>} : memref<2x10x17x8xbf16, #tpu.memory_space<vmem>>, vector<2x1x17x8xbf16>,
    %cst_117 = arith.constant 0.000000e+00 : bf16
    %96 = vector.broadcast %cst_117 : bf16 to vector<2x10x1x8xbf16>
    %c0_118 = arith.constant 0 : index
    %c0_119 = arith.constant 0 : index
    %c7_120 = arith.constant 7 : index
    %c0_121 = arith.constant 0 : index
    %97 = vector.load %arg10[%c0_118, %c0_119, %c7_120, %c0_121] : memref<2x10x17x8xbf16, #tpu.memory_space<vmem>>, vector<2x10x1x8xbf16>
    tpu.vector_store %arg10[%c0_118, %c0_119, %c7_120, %c0_121], %96 {strides = array<i32>} : memref<2x10x17x8xbf16, #tpu.memory_space<vmem>>, vector<2x10x1x8xbf16>,
    %cst_122 = arith.constant 0.000000e+00 : bf16
    %98 = vector.broadcast %cst_122 : bf16 to vector<2x10x1x8xbf16>
    %c0_123 = arith.constant 0 : index
    %c0_124 = arith.constant 0 : index
    %c16 = arith.constant 16 : index
    %c0_125 = arith.constant 0 : index
    %99 = vector.load %arg10[%c0_123, %c0_124, %c16, %c0_125] : memref<2x10x17x8xbf16, #tpu.memory_space<vmem>>, vector<2x10x1x8xbf16>
    tpu.vector_store %arg10[%c0_123, %c0_124, %c16, %c0_125], %98 {strides = array<i32>} : memref<2x10x17x8xbf16, #tpu.memory_space<vmem>>, vector<2x10x1x8xbf16>,
    %c0_126 = arith.constant 0 : index
    %c0_127 = arith.constant 0 : index
    %c0_128 = arith.constant 0 : index
    %c0_129 = arith.constant 0 : index
    %c0_130 = arith.constant 0 : index
    %100 = vector.load %arg1[%c0_126, %c0_127, %c0_128, %c0_129, %c0_130] : memref<2x4x8x8x4xf32, #tpu.memory_space<vmem>>, vector<2x1x8x8x4xf32>
    %101 = vector.shape_cast %100 : vector<2x1x8x8x4xf32> to vector<2x8x8x4xf32>
    %102 = vector.shape_cast %101 : vector<2x8x8x4xf32> to vector<128x4xf32>
    %cst_131 = arith.constant 0.000000e+00 : f32
    %103 = vector.broadcast %cst_131 : f32 to vector<128x4xf32>
    %104 = tpu.concatenate %102, %103 in 1 : vector<128x4xf32>, vector<128x4xf32> -> vector<128x8xf32>
    %c0_132 = arith.constant 0 : index
    %c0_133 = arith.constant 0 : index
    %c7_134 = arith.constant 7 : index
    %c0_135 = arith.constant 0 : index
    %105 = vector.load %arg10[%c0_132, %c0_133, %c7_134, %c0_135] : memref<2x10x17x8xbf16, #tpu.memory_space<vmem>>, vector<2x8x8x8xbf16>
    %106 = vector.shape_cast %105 : vector<2x8x8x8xbf16> to vector<128x8xbf16>
    %c0_136 = arith.constant 0 : index
    %c0_137 = arith.constant 0 : index
    %c0_138 = arith.constant 0 : index
    %107 = vector.load %arg3[%c0_136, %c0_137, %c0_138] : memref<9x8x8xbf16, #tpu.memory_space<vmem>>, vector<1x8x8xbf16>
    %108 = vector.shape_cast %107 : vector<1x8x8xbf16> to vector<8x8xbf16>
    %cst_139 = arith.constant dense<0.000000e+00> : vector<128x8xf32>
    %109 = tpu.matmul %106, %108, %cst_139 {dimension_numbers = #tpu.dot_dimension_numbers<[1], [0], [0], [1], [0, 0, 1, 1], [], []>} : vector<128x8xbf16>, vector<8x8xbf16>, vector<128x8xf32> -> vector<128x8xf32>
    %110 = arith.addf %104, %109 : vector<128x8xf32>
    %c0_140 = arith.constant 0 : index
    %c0_141 = arith.constant 0 : index
    %c8_142 = arith.constant 8 : index
    %c0_143 = arith.constant 0 : index
    %111 = vector.load %arg10[%c0_140, %c0_141, %c8_142, %c0_143] : memref<2x10x17x8xbf16, #tpu.memory_space<vmem>>, vector<2x8x8x8xbf16>
    %112 = vector.shape_cast %111 : vector<2x8x8x8xbf16> to vector<128x8xbf16>
    %c1_144 = arith.constant 1 : index
    %c0_145 = arith.constant 0 : index
    %c0_146 = arith.constant 0 : index
    %113 = vector.load %arg3[%c1_144, %c0_145, %c0_146] : memref<9x8x8xbf16, #tpu.memory_space<vmem>>, vector<1x8x8xbf16>
    %114 = vector.shape_cast %113 : vector<1x8x8xbf16> to vector<8x8xbf16>
    %cst_147 = arith.constant dense<0.000000e+00> : vector<128x8xf32>
    %115 = tpu.matmul %112, %114, %cst_147 {dimension_numbers = #tpu.dot_dimension_numbers<[1], [0], [0], [1], [0, 0, 1, 1], [], []>} : vector<128x8xbf16>, vector<8x8xbf16>, vector<128x8xf32> -> vector<128x8xf32>
    %116 = arith.addf %110, %115 : vector<128x8xf32>
    %c0_148 = arith.constant 0 : index
    %c0_149 = arith.constant 0 : index
    %c9_150 = arith.constant 9 : index
    %c0_151 = arith.constant 0 : index
    %117 = vector.load %arg10[%c0_148, %c0_149, %c9_150, %c0_151] : memref<2x10x17x8xbf16, #tpu.memory_space<vmem>>, vector<2x8x8x8xbf16>
    %118 = vector.shape_cast %117 : vector<2x8x8x8xbf16> to vector<128x8xbf16>
    %c2_152 = arith.constant 2 : index
    %c0_153 = arith.constant 0 : index
    %c0_154 = arith.constant 0 : index
    %119 = vector.load %arg3[%c2_152, %c0_153, %c0_154] : memref<9x8x8xbf16, #tpu.memory_space<vmem>>, vector<1x8x8xbf16>
    %120 = vector.shape_cast %119 : vector<1x8x8xbf16> to vector<8x8xbf16>
    %cst_155 = arith.constant dense<0.000000e+00> : vector<128x8xf32>
    %121 = tpu.matmul %118, %120, %cst_155 {dimension_numbers = #tpu.dot_dimension_numbers<[1], [0], [0], [1], [0, 0, 1, 1], [], []>} : vector<128x8xbf16>, vector<8x8xbf16>, vector<128x8xf32> -> vector<128x8xf32>
    %122 = arith.addf %116, %121 : vector<128x8xf32>
    %c0_156 = arith.constant 0 : index
    %c1_157 = arith.constant 1 : index
    %c7_158 = arith.constant 7 : index
    %c0_159 = arith.constant 0 : index
    %123 = vector.load %arg10[%c0_156, %c1_157, %c7_158, %c0_159] : memref<2x10x17x8xbf16, #tpu.memory_space<vmem>>, vector<2x8x8x8xbf16>
    %124 = vector.shape_cast %123 : vector<2x8x8x8xbf16> to vector<128x8xbf16>
    %c3_160 = arith.constant 3 : index
    %c0_161 = arith.constant 0 : index
    %c0_162 = arith.constant 0 : index
    %125 = vector.load %arg3[%c3_160, %c0_161, %c0_162] : memref<9x8x8xbf16, #tpu.memory_space<vmem>>, vector<1x8x8xbf16>
    %126 = vector.shape_cast %125 : vector<1x8x8xbf16> to vector<8x8xbf16>
    %cst_163 = arith.constant dense<0.000000e+00> : vector<128x8xf32>
    %127 = tpu.matmul %124, %126, %cst_163 {dimension_numbers = #tpu.dot_dimension_numbers<[1], [0], [0], [1], [0, 0, 1, 1], [], []>} : vector<128x8xbf16>, vector<8x8xbf16>, vector<128x8xf32> -> vector<128x8xf32>
    %128 = arith.addf %122, %127 : vector<128x8xf32>
    %c0_164 = arith.constant 0 : index
    %c1_165 = arith.constant 1 : index
    %c8_166 = arith.constant 8 : index
    %c0_167 = arith.constant 0 : index
    %129 = vector.load %arg10[%c0_164, %c1_165, %c8_166, %c0_167] : memref<2x10x17x8xbf16, #tpu.memory_space<vmem>>, vector<2x8x8x8xbf16>
    %130 = vector.shape_cast %129 : vector<2x8x8x8xbf16> to vector<128x8xbf16>
    %c4_168 = arith.constant 4 : index
    %c0_169 = arith.constant 0 : index
    %c0_170 = arith.constant 0 : index
    %131 = vector.load %arg3[%c4_168, %c0_169, %c0_170] : memref<9x8x8xbf16, #tpu.memory_space<vmem>>, vector<1x8x8xbf16>
    %132 = vector.shape_cast %131 : vector<1x8x8xbf16> to vector<8x8xbf16>
    %cst_171 = arith.constant dense<0.000000e+00> : vector<128x8xf32>
    %133 = tpu.matmul %130, %132, %cst_171 {dimension_numbers = #tpu.dot_dimension_numbers<[1], [0], [0], [1], [0, 0, 1, 1], [], []>} : vector<128x8xbf16>, vector<8x8xbf16>, vector<128x8xf32> -> vector<128x8xf32>
    %134 = arith.addf %128, %133 : vector<128x8xf32>
    %c0_172 = arith.constant 0 : index
    %c1_173 = arith.constant 1 : index
    %c9_174 = arith.constant 9 : index
    %c0_175 = arith.constant 0 : index
    %135 = vector.load %arg10[%c0_172, %c1_173, %c9_174, %c0_175] : memref<2x10x17x8xbf16, #tpu.memory_space<vmem>>, vector<2x8x8x8xbf16>
    %136 = vector.shape_cast %135 : vector<2x8x8x8xbf16> to vector<128x8xbf16>
    %c5_176 = arith.constant 5 : index
    %c0_177 = arith.constant 0 : index
    %c0_178 = arith.constant 0 : index
    %137 = vector.load %arg3[%c5_176, %c0_177, %c0_178] : memref<9x8x8xbf16, #tpu.memory_space<vmem>>, vector<1x8x8xbf16>
    %138 = vector.shape_cast %137 : vector<1x8x8xbf16> to vector<8x8xbf16>
    %cst_179 = arith.constant dense<0.000000e+00> : vector<128x8xf32>
    %139 = tpu.matmul %136, %138, %cst_179 {dimension_numbers = #tpu.dot_dimension_numbers<[1], [0], [0], [1], [0, 0, 1, 1], [], []>} : vector<128x8xbf16>, vector<8x8xbf16>, vector<128x8xf32> -> vector<128x8xf32>
    %140 = arith.addf %134, %139 : vector<128x8xf32>
    %c0_180 = arith.constant 0 : index
    %c2_181 = arith.constant 2 : index
    %c7_182 = arith.constant 7 : index
    %c0_183 = arith.constant 0 : index
    %141 = vector.load %arg10[%c0_180, %c2_181, %c7_182, %c0_183] : memref<2x10x17x8xbf16, #tpu.memory_space<vmem>>, vector<2x8x8x8xbf16>
    %142 = vector.shape_cast %141 : vector<2x8x8x8xbf16> to vector<128x8xbf16>
    %c6_184 = arith.constant 6 : index
    %c0_185 = arith.constant 0 : index
    %c0_186 = arith.constant 0 : index
    %143 = vector.load %arg3[%c6_184, %c0_185, %c0_186] : memref<9x8x8xbf16, #tpu.memory_space<vmem>>, vector<1x8x8xbf16>
    %144 = vector.shape_cast %143 : vector<1x8x8xbf16> to vector<8x8xbf16>
    %cst_187 = arith.constant dense<0.000000e+00> : vector<128x8xf32>
    %145 = tpu.matmul %142, %144, %cst_187 {dimension_numbers = #tpu.dot_dimension_numbers<[1], [0], [0], [1], [0, 0, 1, 1], [], []>} : vector<128x8xbf16>, vector<8x8xbf16>, vector<128x8xf32> -> vector<128x8xf32>
    %146 = arith.addf %140, %145 : vector<128x8xf32>
    %c0_188 = arith.constant 0 : index
    %c2_189 = arith.constant 2 : index
    %c8_190 = arith.constant 8 : index
    %c0_191 = arith.constant 0 : index
    %147 = vector.load %arg10[%c0_188, %c2_189, %c8_190, %c0_191] : memref<2x10x17x8xbf16, #tpu.memory_space<vmem>>, vector<2x8x8x8xbf16>
    %148 = vector.shape_cast %147 : vector<2x8x8x8xbf16> to vector<128x8xbf16>
    %c7_192 = arith.constant 7 : index
    %c0_193 = arith.constant 0 : index
    %c0_194 = arith.constant 0 : index
    %149 = vector.load %arg3[%c7_192, %c0_193, %c0_194] : memref<9x8x8xbf16, #tpu.memory_space<vmem>>, vector<1x8x8xbf16>
    %150 = vector.shape_cast %149 : vector<1x8x8xbf16> to vector<8x8xbf16>
    %cst_195 = arith.constant dense<0.000000e+00> : vector<128x8xf32>
    %151 = tpu.matmul %148, %150, %cst_195 {dimension_numbers = #tpu.dot_dimension_numbers<[1], [0], [0], [1], [0, 0, 1, 1], [], []>} : vector<128x8xbf16>, vector<8x8xbf16>, vector<128x8xf32> -> vector<128x8xf32>
    %152 = arith.addf %146, %151 : vector<128x8xf32>
    %c0_196 = arith.constant 0 : index
    %c2_197 = arith.constant 2 : index
    %c9_198 = arith.constant 9 : index
    %c0_199 = arith.constant 0 : index
    %153 = vector.load %arg10[%c0_196, %c2_197, %c9_198, %c0_199] : memref<2x10x17x8xbf16, #tpu.memory_space<vmem>>, vector<2x8x8x8xbf16>
    %154 = vector.shape_cast %153 : vector<2x8x8x8xbf16> to vector<128x8xbf16>
    %c8_200 = arith.constant 8 : index
    %c0_201 = arith.constant 0 : index
    %c0_202 = arith.constant 0 : index
    %155 = vector.load %arg3[%c8_200, %c0_201, %c0_202] : memref<9x8x8xbf16, #tpu.memory_space<vmem>>, vector<1x8x8xbf16>
    %156 = vector.shape_cast %155 : vector<1x8x8xbf16> to vector<8x8xbf16>
    %cst_203 = arith.constant dense<0.000000e+00> : vector<128x8xf32>
    %157 = tpu.matmul %154, %156, %cst_203 {dimension_numbers = #tpu.dot_dimension_numbers<[1], [0], [0], [1], [0, 0, 1, 1], [], []>} : vector<128x8xbf16>, vector<8x8xbf16>, vector<128x8xf32> -> vector<128x8xf32>
    %158 = arith.addf %152, %157 : vector<128x8xf32>
    %159 = vector.shape_cast %158 : vector<128x8xf32> to vector<2x8x8x8xf32>
    %c0_204 = arith.constant 0 : index
    %c0_205 = arith.constant 0 : index
    %c0_206 = arith.constant 0 : index
    %c0_207 = arith.constant 0 : index
    %160 = vector.load %arg8[%c0_204, %c0_205, %c0_206, %c0_207] : memref<2x8x8x8xf32, #tpu.memory_space<vmem>>, vector<2x8x8x8xf32>
    tpu.vector_store %arg8[%c0_204, %c0_205, %c0_206, %c0_207], %159 {strides = array<i32>} : memref<2x8x8x8xf32, #tpu.memory_space<vmem>>, vector<2x8x8x8xf32>,
    return
  }
  func.func @transform_0(%arg0: i32) -> (i32, i32, i32, i32, i32) {
    %c0_i32 = arith.constant 0 : i32
    %c0_i32_0 = arith.constant 0 : i32
    %c0_i32_1 = arith.constant 0 : i32
    %c0_i32_2 = arith.constant 0 : i32
    %c0_i32_3 = arith.constant 0 : i32
    return %arg0, %c0_i32, %c0_i32_0, %c0_i32_1, %c0_i32_2 : i32, i32, i32, i32, i32
  }
  func.func @transform_1(%arg0: i32) -> (i32, i32, i32) {
    %c0_i32 = arith.constant 0 : i32
    %c0_i32_0 = arith.constant 0 : i32
    %c0_i32_1 = arith.constant 0 : i32
    %c0_i32_2 = arith.constant 0 : i32
    return %c0_i32, %c0_i32_0, %c0_i32_1 : i32, i32, i32
  }
  func.func @transform_2(%arg0: i32) -> (i32, i32, i32) {
    %c0_i32 = arith.constant 0 : i32
    %c0_i32_0 = arith.constant 0 : i32
    %c0_i32_1 = arith.constant 0 : i32
    %c0_i32_2 = arith.constant 0 : i32
    return %c0_i32, %c0_i32_0, %c0_i32_1 : i32, i32, i32
  }
  func.func @transform_3(%arg0: i32) -> (i32, i32) {
    %c0_i32 = arith.constant 0 : i32
    %c0_i32_0 = arith.constant 0 : i32
    %c0_i32_1 = arith.constant 0 : i32
    return %c0_i32, %c0_i32_0 : i32, i32
  }
  func.func @transform_4(%arg0: i32) -> (i32, i32) {
    %c0_i32 = arith.constant 0 : i32
    %c0_i32_0 = arith.constant 0 : i32
    %c0_i32_1 = arith.constant 0 : i32
    return %c0_i32, %c0_i32_0 : i32, i32
  }
  func.func @transform_5(%arg0: i32) -> (i32, i32) {
    %c0_i32 = arith.constant 0 : i32
    %c0_i32_0 = arith.constant 0 : i32
    %c0_i32_1 = arith.constant 0 : i32
    return %c0_i32, %c0_i32_0 : i32, i32
  }
  func.func @transform_6(%arg0: i32) -> (i32, i32) {
    %c0_i32 = arith.constant 0 : i32
    %c0_i32_0 = arith.constant 0 : i32
    %c0_i32_1 = arith.constant 0 : i32
    return %c0_i32, %c0_i32_0 : i32, i32
  }
  func.func @transform_7(%arg0: i32) -> (i32, i32, i32, i32) {
    %c0_i32 = arith.constant 0 : i32
    %c0_i32_0 = arith.constant 0 : i32
    %c0_i32_1 = arith.constant 0 : i32
    %c0_i32_2 = arith.constant 0 : i32
    return %arg0, %c0_i32, %c0_i32_0, %c0_i32_1 : i32, i32, i32, i32
  }
}

</mosaic_0001>

<llo_original>
// kernel: tpu_custom_call.1
$region0: #{tpu_custom_call.1}
  #allocation0 [shape = 'u32[]', space=smem, size = 0x4, offset = 0x4, fixed_abs, tag = 'smem constant byte address 0x4 - core index']
  #allocation1 [shape = 'u32[144,128]{1,0:T(1,128)}', space=vmem, size = 0x12000, scoped, tag = 'internal scratch']
  #allocation2 [shape = 'bf16[2,4,9,16,4]{4,3,2,1,0:T(16,128)(2,1)}', space=vmem, size = 0x48000, scoped, tag = 'scratch operand']
  #allocation3 [shape = 'bf16[2,10,17,8]{3,2,1,0:T(8,128)(2,1)}', space=vmem, size = 0x1e000, scoped, tag = 'scratch operand']
  %s0 = inlined_call_operand.vmem [shape: f32[2,4,8,8,4], index: 0, kind: input, shape index: {}]
  %s1 = inlined_call_operand.vmem [shape: bf16[9,4,8], index: 1, kind: input, shape index: {}]
  %s2 = inlined_call_operand.vmem [shape: bf16[9,8,8], index: 2, kind: input, shape index: {}]
  %s3 = inlined_call_operand.vmem [shape: f32[1,4], index: 3, kind: input, shape index: {}]
  %s4 = inlined_call_operand.vmem [shape: f32[1,4], index: 4, kind: input, shape index: {}]
  %s5 = inlined_call_operand.vmem [shape: f32[1,8], index: 5, kind: input, shape index: {}]
  %s6 = inlined_call_operand.vmem [shape: f32[1,8], index: 6, kind: input, shape index: {}]
  %s7 = inlined_call_operand.hbm [shape: f32[2,8,8,8], index: 7, kind: output, shape index: {}]
  %s8 = sld [smem:[#allocation0]]
  $region38: #{tpu_custom_call.1} parent=0
    _
  %s10 = ssub.s32 1, %s8
  %s11 = scalar_select 0, %s10, %s8
  $region1: #{tpu_custom_call.1} parent=0
    #allocation4 [shape = 'u8[65536]{0}', space=vmem, size = 0x10000, scoped, tag = 'output window, operand 0, single buffered']
    #allocation5 [shape = 's32[1]{0}', space=sflag, size = 0x4, scoped, tag = 'scoped memory for tpu_custom_call.1']
    %12 = vsyncpa [#allocation5], 0
    // Predicated region
    $region2: #{tpu_custom_call.1} parent=1 // pred_check
      _
    $region3: #{tpu_custom_call.1} parent=1 // pred_check_branch
      %14 = sbr.rel (0) target = $region5
    $region4: #{tpu_custom_call.1} parent=1 // pred_region
      _
    $region5: #{tpu_custom_call.1} parent=1 // pred_fallthru
      _
    // Predicated region
    $region6: #{tpu_custom_call.1} parent=1 // pred_check
      _
    $region7: #{tpu_custom_call.1} parent=1 // pred_check_branch
      %16 = sbr.rel (0) target = $region9
    $region8: #{tpu_custom_call.1} parent=1 // pred_region
      _
    $region9: #{tpu_custom_call.1} parent=1 // pred_fallthru
      _
    // Predicated region
    $region10: #{tpu_custom_call.1} parent=1 // pred_check
      _
    $region11: #{tpu_custom_call.1} parent=1 // pred_check_branch
      %18 = sbr.rel (0) target = $region13
    $region12: #{tpu_custom_call.1} parent=1 // pred_region
      _
    $region13: #{tpu_custom_call.1} parent=1 // pred_fallthru
      _
    // Predicated region
    $region14: #{tpu_custom_call.1} parent=1 // pred_check
      _
    $region15: #{tpu_custom_call.1} parent=1 // pred_check_branch
      %20 = sbr.rel (0) target = $region17
    $region16: #{tpu_custom_call.1} parent=1 // pred_region
      _
    $region17: #{tpu_custom_call.1} parent=1 // pred_fallthru
      _
    // Predicated region
    $region18: #{tpu_custom_call.1} parent=1 // pred_check
      _
    $region19: #{tpu_custom_call.1} parent=1 // pred_check_branch
      %22 = sbr.rel (0) target = $region21
    $region20: #{tpu_custom_call.1} parent=1 // pred_region
      _
    $region21: #{tpu_custom_call.1} parent=1 // pred_fallthru
      _
    // Predicated region
    $region22: #{tpu_custom_call.1} parent=1 // pred_check
      _
    $region23: #{tpu_custom_call.1} parent=1 // pred_check_branch
      %24 = sbr.rel (0) target = $region25
    $region24: #{tpu_custom_call.1} parent=1 // pred_region
      _
    $region25: #{tpu_custom_call.1} parent=1 // pred_fallthru
      _
    // Predicated region
    $region26: #{tpu_custom_call.1} parent=1 // pred_check
      _
    $region27: #{tpu_custom_call.1} parent=1 // pred_check_branch
      %26 = sbr.rel (0) target = $region29
    $region28: #{tpu_custom_call.1} parent=1 // pred_region
      _
    $region29: #{tpu_custom_call.1} parent=1 // pred_fallthru
      _
    %v28 = vld [vmem:[%s0] sm:$0xff]
    %v29 = vld [vmem:[%s0 + $0x8] sm:$0xff]
    %v30 = vld [vmem:[%s0 + $0x10] sm:$0xff]
    %v31 = vld [vmem:[%s0 + $0x18] sm:$0xff]
    %v32 = vld [vmem:[%s0 + $0x20] sm:$0xff]
    %v33 = vld [vmem:[%s0 + $0x28] sm:$0xff]
    %v34 = vld [vmem:[%s0 + $0x30] sm:$0xff]
    %v35 = vld [vmem:[%s0 + $0x38] sm:$0xff]
    %v36 = vld [vmem:[%s0 + $0x40] sm:$0xff]
    %v37 = vld [vmem:[%s0 + $0x48] sm:$0xff]
    %v38 = vld [vmem:[%s0 + $0x50] sm:$0xff]
    %v39 = vld [vmem:[%s0 + $0x58] sm:$0xff]
    %v40 = vld [vmem:[%s0 + $0x60] sm:$0xff]
    %v41 = vld [vmem:[%s0 + $0x68] sm:$0xff]
    %v42 = vld [vmem:[%s0 + $0x70] sm:$0xff]
    %v43 = vld [vmem:[%s0 + $0x78] sm:$0xff]
    %v44 = vld [vmem:[%s0 + $0x80] sm:$0xff]
    %v45 = vld [vmem:[%s0 + $0x88] sm:$0xff]
    %v46 = vld [vmem:[%s0 + $0x90] sm:$0xff]
    %v47 = vld [vmem:[%s0 + $0x98] sm:$0xff]
    %v48 = vld [vmem:[%s0 + $0xa0] sm:$0xff]
    %v49 = vld [vmem:[%s0 + $0xa8] sm:$0xff]
    %v50 = vld [vmem:[%s0 + $0xb0] sm:$0xff]
    %v51 = vld [vmem:[%s0 + $0xb8] sm:$0xff]
    %v52 = vld [vmem:[%s0 + $0xc0] sm:$0xff]
    %v53 = vld [vmem:[%s0 + $0xc8] sm:$0xff]
    %v54 = vld [vmem:[%s0 + $0xd0] sm:$0xff]
    %v55 = vld [vmem:[%s0 + $0xd8] sm:$0xff]
    %v56 = vld [vmem:[%s0 + $0xe0] sm:$0xff]
    %v57 = vld [vmem:[%s0 + $0xe8] sm:$0xff]
    %v58 = vld [vmem:[%s0 + $0xf0] sm:$0xff]
    %v59 = vld [vmem:[%s0 + $0xf8] sm:$0xff]
    %v60 = vld [vmem:[%s0 + $0x100] sm:$0xff]
    %v61 = vld [vmem:[%s0 + $0x108] sm:$0xff]
    %v62 = vld [vmem:[%s0 + $0x110] sm:$0xff]
    %v63 = vld [vmem:[%s0 + $0x118] sm:$0xff]
    %v64 = vld [vmem:[%s0 + $0x120] sm:$0xff]
    %v65 = vld [vmem:[%s0 + $0x128] sm:$0xff]
    %v66 = vld [vmem:[%s0 + $0x130] sm:$0xff]
    %v67 = vld [vmem:[%s0 + $0x138] sm:$0xff]
    %v68 = vld [vmem:[%s0 + $0x140] sm:$0xff]
    %v69 = vld [vmem:[%s0 + $0x148] sm:$0xff]
    %v70 = vld [vmem:[%s0 + $0x150] sm:$0xff]
    %v71 = vld [vmem:[%s0 + $0x158] sm:$0xff]
    %v72 = vld [vmem:[%s0 + $0x160] sm:$0xff]
    %v73 = vld [vmem:[%s0 + $0x168] sm:$0xff]
    %v74 = vld [vmem:[%s0 + $0x170] sm:$0xff]
    %v75 = vld [vmem:[%s0 + $0x178] sm:$0xff]
    %v76 = vld [vmem:[%s0 + $0x180] sm:$0xff]
    %v77 = vld [vmem:[%s0 + $0x188] sm:$0xff]
    %v78 = vld [vmem:[%s0 + $0x190] sm:$0xff]
    %v79 = vld [vmem:[%s0 + $0x198] sm:$0xff]
    %v80 = vld [vmem:[%s0 + $0x1a0] sm:$0xff]
    %v81 = vld [vmem:[%s0 + $0x1a8] sm:$0xff]
    %v82 = vld [vmem:[%s0 + $0x1b0] sm:$0xff]
    %v83 = vld [vmem:[%s0 + $0x1b8] sm:$0xff]
    %v84 = vld [vmem:[%s0 + $0x1c0] sm:$0xff]
    %v85 = vld [vmem:[%s0 + $0x1c8] sm:$0xff]
    %v86 = vld [vmem:[%s0 + $0x1d0] sm:$0xff]
    %v87 = vld [vmem:[%s0 + $0x1d8] sm:$0xff]
    %v88 = vld [vmem:[%s0 + $0x1e0] sm:$0xff]
    %v89 = vld [vmem:[%s0 + $0x1e8] sm:$0xff]
    %v90 = vld [vmem:[%s0 + $0x1f0] sm:$0xff]
    %v91 = vld [vmem:[%s0 + $0x1f8] sm:$0xff]
    %v92 = vld [vmem:[%s3] sm:$0x1]
    %v94 = vlaneseq
    %v95 = vshrl.u32 %v94, 7
    %v96 = vsub.s32 0, %v95
    %v97 = vrot.slane %v92, %v96
    %v99 = vmul.f32 %v28, %v97
    %v100 = vmul.f32 %v29, %v97
    %v101 = vmul.f32 %v30, %v97
    %v102 = vmul.f32 %v31, %v97
    %v103 = vmul.f32 %v32, %v97
    %v104 = vmul.f32 %v33, %v97
    %v105 = vmul.f32 %v34, %v97
    %v106 = vmul.f32 %v35, %v97
    %v107 = vmul.f32 %v36, %v97
    %v108 = vmul.f32 %v37, %v97
    %v109 = vmul.f32 %v38, %v97
    %v110 = vmul.f32 %v39, %v97
    %v111 = vmul.f32 %v40, %v97
    %v112 = vmul.f32 %v41, %v97
    %v113 = vmul.f32 %v42, %v97
    %v114 = vmul.f32 %v43, %v97
    %v115 = vmul.f32 %v44, %v97
    %v116 = vmul.f32 %v45, %v97
    %v117 = vmul.f32 %v46, %v97
    %v118 = vmul.f32 %v47, %v97
    %v119 = vmul.f32 %v48, %v97
    %v120 = vmul.f32 %v49, %v97
    %v121 = vmul.f32 %v50, %v97
    %v122 = vmul.f32 %v51, %v97
    %v123 = vmul.f32 %v52, %v97
    %v124 = vmul.f32 %v53, %v97
    %v125 = vmul.f32 %v54, %v97
    %v126 = vmul.f32 %v55, %v97
    %v127 = vmul.f32 %v56, %v97
    %v128 = vmul.f32 %v57, %v97
    %v129 = vmul.f32 %v58, %v97
    %v130 = vmul.f32 %v59, %v97
    %v131 = vmul.f32 %v60, %v97
    %v132 = vmul.f32 %v61, %v97
    %v133 = vmul.f32 %v62, %v97
    %v134 = vmul.f32 %v63, %v97
    %v135 = vmul.f32 %v64, %v97
    %v136 = vmul.f32 %v65, %v97
    %v137 = vmul.f32 %v66, %v97
    %v138 = vmul.f32 %v67, %v97
    %v139 = vmul.f32 %v68, %v97
    %v140 = vmul.f32 %v69, %v97
    %v141 = vmul.f32 %v70, %v97
    %v142 = vmul.f32 %v71, %v97
    %v143 = vmul.f32 %v72, %v97
    %v144 = vmul.f32 %v73, %v97
    %v145 = vmul.f32 %v74, %v97
    %v146 = vmul.f32 %v75, %v97
    %v147 = vmul.f32 %v76, %v97
    %v148 = vmul.f32 %v77, %v97
    %v149 = vmul.f32 %v78, %v97
    %v150 = vmul.f32 %v79, %v97
    %v151 = vmul.f32 %v80, %v97
    %v152 = vmul.f32 %v81, %v97
    %v153 = vmul.f32 %v82, %v97
    %v154 = vmul.f32 %v83, %v97
    %v155 = vmul.f32 %v84, %v97
    %v156 = vmul.f32 %v85, %v97
    %v157 = vmul.f32 %v86, %v97
    %v158 = vmul.f32 %v87, %v97
    %v159 = vmul.f32 %v88, %v97
    %v160 = vmul.f32 %v89, %v97
    %v161 = vmul.f32 %v90, %v97
    %v162 = vmul.f32 %v91, %v97
    %v163 = vld [vmem:[%s4] sm:$0x1]
    %v165 = vlaneseq
    %v166 = vshrl.u32 %v165, 7
    %v167 = vsub.s32 0, %v166
    %v168 = vrot.slane %v163, %v167
    %v170 = vadd.f32 %v99, %v168
    %v171 = vadd.f32 %v100, %v168
    %v172 = vadd.f32 %v101, %v168
    %v173 = vadd.f32 %v102, %v168
    %v174 = vadd.f32 %v103, %v168
    %v175 = vadd.f32 %v104, %v168
    %v176 = vadd.f32 %v105, %v168
    %v177 = vadd.f32 %v106, %v168
    %v178 = vadd.f32 %v107, %v168
    %v179 = vadd.f32 %v108, %v168
    %v180 = vadd.f32 %v109, %v168
    %v181 = vadd.f32 %v110, %v168
    %v182 = vadd.f32 %v111, %v168
    %v183 = vadd.f32 %v112, %v168
    %v184 = vadd.f32 %v113, %v168
    %v185 = vadd.f32 %v114, %v168
    %v186 = vadd.f32 %v115, %v168
    %v187 = vadd.f32 %v116, %v168
    %v188 = vadd.f32 %v117, %v168
    %v189 = vadd.f32 %v118, %v168
    %v190 = vadd.f32 %v119, %v168
    %v191 = vadd.f32 %v120, %v168
    %v192 = vadd.f32 %v121, %v168
    %v193 = vadd.f32 %v122, %v168
    %v194 = vadd.f32 %v123, %v168
    %v195 = vadd.f32 %v124, %v168
    %v196 = vadd.f32 %v125, %v168
    %v197 = vadd.f32 %v126, %v168
    %v198 = vadd.f32 %v127, %v168
    %v199 = vadd.f32 %v128, %v168
    %v200 = vadd.f32 %v129, %v168
    %v201 = vadd.f32 %v130, %v168
    %v202 = vadd.f32 %v131, %v168
    %v203 = vadd.f32 %v132, %v168
    %v204 = vadd.f32 %v133, %v168
    %v205 = vadd.f32 %v134, %v168
    %v206 = vadd.f32 %v135, %v168
    %v207 = vadd.f32 %v136, %v168
    %v208 = vadd.f32 %v137, %v168
    %v209 = vadd.f32 %v138, %v168
    %v210 = vadd.f32 %v139, %v168
    %v211 = vadd.f32 %v140, %v168
    %v212 = vadd.f32 %v141, %v168
    %v213 = vadd.f32 %v142, %v168
    %v214 = vadd.f32 %v143, %v168
    %v215 = vadd.f32 %v144, %v168
    %v216 = vadd.f32 %v145, %v168
    %v217 = vadd.f32 %v146, %v168
    %v218 = vadd.f32 %v147, %v168
    %v219 = vadd.f32 %v148, %v168
    %v220 = vadd.f32 %v149, %v168
    %v221 = vadd.f32 %v150, %v168
    %v222 = vadd.f32 %v151, %v168
    %v223 = vadd.f32 %v152, %v168
    %v224 = vadd.f32 %v153, %v168
    %v225 = vadd.f32 %v154, %v168
    %v226 = vadd.f32 %v155, %v168
    %v227 = vadd.f32 %v156, %v168
    %v228 = vadd.f32 %v157, %v168
    %v229 = vadd.f32 %v158, %v168
    %v230 = vadd.f32 %v159, %v168
    %v231 = vadd.f32 %v160, %v168
    %v232 = vadd.f32 %v161, %v168
    %v233 = vadd.f32 %v162, %v168
    %v234 = vmax.f32 %v170, 0.0
    %v235 = vmax.f32 %v171, 0.0
    %v236 = vmax.f32 %v172, 0.0
    %v237 = vmax.f32 %v173, 0.0
    %v238 = vmax.f32 %v174, 0.0
    %v239 = vmax.f32 %v175, 0.0
    %v240 = vmax.f32 %v176, 0.0
    %v241 = vmax.f32 %v177, 0.0
    %v242 = vmax.f32 %v178, 0.0
    %v243 = vmax.f32 %v179, 0.0
    %v244 = vmax.f32 %v180, 0.0
    %v245 = vmax.f32 %v181, 0.0
    %v246 = vmax.f32 %v182, 0.0
    %v247 = vmax.f32 %v183, 0.0
    %v248 = vmax.f32 %v184, 0.0
    %v249 = vmax.f32 %v185, 0.0
    %v250 = vmax.f32 %v186, 0.0
    %v251 = vmax.f32 %v187, 0.0
    %v252 = vmax.f32 %v188, 0.0
    %v253 = vmax.f32 %v189, 0.0
    %v254 = vmax.f32 %v190, 0.0
    %v255 = vmax.f32 %v191, 0.0
    %v256 = vmax.f32 %v192, 0.0
    %v257 = vmax.f32 %v193, 0.0
    %v258 = vmax.f32 %v194, 0.0
    %v259 = vmax.f32 %v195, 0.0
    %v260 = vmax.f32 %v196, 0.0
    %v261 = vmax.f32 %v197, 0.0
    %v262 = vmax.f32 %v198, 0.0
    %v263 = vmax.f32 %v199, 0.0
    %v264 = vmax.f32 %v200, 0.0
    %v265 = vmax.f32 %v201, 0.0
    %v266 = vmax.f32 %v202, 0.0
    %v267 = vmax.f32 %v203, 0.0
    %v268 = vmax.f32 %v204, 0.0
    %v269 = vmax.f32 %v205, 0.0
    %v270 = vmax.f32 %v206, 0.0
    %v271 = vmax.f32 %v207, 0.0
    %v272 = vmax.f32 %v208, 0.0
    %v273 = vmax.f32 %v209, 0.0
    %v274 = vmax.f32 %v210, 0.0
    %v275 = vmax.f32 %v211, 0.0
    %v276 = vmax.f32 %v212, 0.0
    %v277 = vmax.f32 %v213, 0.0
    %v278 = vmax.f32 %v214, 0.0
    %v279 = vmax.f32 %v215, 0.0
    %v280 = vmax.f32 %v216, 0.0
    %v281 = vmax.f32 %v217, 0.0
    %v282 = vmax.f32 %v218, 0.0
    %v283 = vmax.f32 %v219, 0.0
    %v284 = vmax.f32 %v220, 0.0
    %v285 = vmax.f32 %v221, 0.0
    %v286 = vmax.f32 %v222, 0.0
    %v287 = vmax.f32 %v223, 0.0
    %v288 = vmax.f32 %v224, 0.0
    %v289 = vmax.f32 %v225, 0.0
    %v290 = vmax.f32 %v226, 0.0
    %v291 = vmax.f32 %v227, 0.0
    %v292 = vmax.f32 %v228, 0.0
    %v293 = vmax.f32 %v229, 0.0
    %v294 = vmax.f32 %v230, 0.0
    %v295 = vmax.f32 %v231, 0.0
    %v296 = vmax.f32 %v232, 0.0
    %v297 = vmax.f32 %v233, 0.0
    %v298 = vpack.c.bf16 %v234, %v234
    %v299 = vpack.c.bf16 %v235, %v235
    %v300 = vpack.c.bf16 %v236, %v236
    %v301 = vpack.c.bf16 %v237, %v237
    %v302 = vpack.c.bf16 %v238, %v238
    %v303 = vpack.c.bf16 %v239, %v239
    %v304 = vpack.c.bf16 %v240, %v240
    %v305 = vpack.c.bf16 %v241, %v241
    %v306 = vpack.c.bf16 %v242, %v242
    %v307 = vpack.c.bf16 %v243, %v243
    %v308 = vpack.c.bf16 %v244, %v244
    %v309 = vpack.c.bf16 %v245, %v245
    %v310 = vpack.c.bf16 %v246, %v246
    %v311 = vpack.c.bf16 %v247, %v247
    %v312 = vpack.c.bf16 %v248, %v248
    %v313 = vpack.c.bf16 %v249, %v249
    %v314 = vpack.c.bf16 %v250, %v250
    %v315 = vpack.c.bf16 %v251, %v251
    %v316 = vpack.c.bf16 %v252, %v252
    %v317 = vpack.c.bf16 %v253, %v253
    %v318 = vpack.c.bf16 %v254, %v254
    %v319 = vpack.c.bf16 %v255, %v255
    %v320 = vpack.c.bf16 %v256, %v256
    %v321 = vpack.c.bf16 %v257, %v257
    %v322 = vpack.c.bf16 %v258, %v258
    %v323 = vpack.c.bf16 %v259, %v259
    %v324 = vpack.c.bf16 %v260, %v260
    %v325 = vpack.c.bf16 %v261, %v261
    %v326 = vpack.c.bf16 %v262, %v262
    %v327 = vpack.c.bf16 %v263, %v263
    %v328 = vpack.c.bf16 %v264, %v264
    %v329 = vpack.c.bf16 %v265, %v265
    %v330 = vpack.c.bf16 %v266, %v266
    %v331 = vpack.c.bf16 %v267, %v267
    %v332 = vpack.c.bf16 %v268, %v268
    %v333 = vpack.c.bf16 %v269, %v269
    %v334 = vpack.c.bf16 %v270, %v270
    %v335 = vpack.c.bf16 %v271, %v271
    %v336 = vpack.c.bf16 %v272, %v272
    %v337 = vpack.c.bf16 %v273, %v273
    %v338 = vpack.c.bf16 %v274, %v274
    %v339 = vpack.c.bf16 %v275, %v275
    %v340 = vpack.c.bf16 %v276, %v276
    %v341 = vpack.c.bf16 %v277, %v277
    %v342 = vpack.c.bf16 %v278, %v278
    %v343 = vpack.c.bf16 %v279, %v279
    %v344 = vpack.c.bf16 %v280, %v280
    %v345 = vpack.c.bf16 %v281, %v281
    %v346 = vpack.c.bf16 %v282, %v282
    %v347 = vpack.c.bf16 %v283, %v283
    %v348 = vpack.c.bf16 %v284, %v284
    %v349 = vpack.c.bf16 %v285, %v285
    %v350 = vpack.c.bf16 %v286, %v286
    %v351 = vpack.c.bf16 %v287, %v287
    %v352 = vpack.c.bf16 %v288, %v288
    %v353 = vpack.c.bf16 %v289, %v289
    %v354 = vpack.c.bf16 %v290, %v290
    %v355 = vpack.c.bf16 %v291, %v291
    %v356 = vpack.c.bf16 %v292, %v292
    %v357 = vpack.c.bf16 %v293, %v293
    %v358 = vpack.c.bf16 %v294, %v294
    %v359 = vpack.c.bf16 %v295, %v295
    %v360 = vpack.c.bf16 %v296, %v296
    %v361 = vpack.c.bf16 %v297, %v297
    %v426 = vrot.slane %v298, 4
    %v427 = vrot.slane %v299, 4
    %v428 = vrot.slane %v300, 4
    %v429 = vrot.slane %v301, 4
    %v430 = vrot.slane %v302, 4
    %v431 = vrot.slane %v303, 4
    %v432 = vrot.slane %v304, 4
    %v433 = vrot.slane %v305, 4
    %v434 = vrot.slane %v306, 4
    %v435 = vrot.slane %v307, 4
    %v436 = vrot.slane %v308, 4
    %v437 = vrot.slane %v309, 4
    %v438 = vrot.slane %v310, 4
    %v439 = vrot.slane %v311, 4
    %v440 = vrot.slane %v312, 4
    %v441 = vrot.slane %v313, 4
    %v442 = vrot.slane %v314, 4
    %v443 = vrot.slane %v315, 4
    %v444 = vrot.slane %v316, 4
    %v445 = vrot.slane %v317, 4
    %v446 = vrot.slane %v318, 4
    %v447 = vrot.slane %v319, 4
    %v448 = vrot.slane %v320, 4
    %v449 = vrot.slane %v321, 4
    %v450 = vrot.slane %v322, 4
    %v451 = vrot.slane %v323, 4
    %v452 = vrot.slane %v324, 4
    %v453 = vrot.slane %v325, 4
    %v454 = vrot.slane %v326, 4
    %v455 = vrot.slane %v327, 4
    %v456 = vrot.slane %v328, 4
    %v457 = vrot.slane %v329, 4
    %v458 = vrot.slane %v330, 4
    %v459 = vrot.slane %v331, 4
    %v460 = vrot.slane %v332, 4
    %v461 = vrot.slane %v333, 4
    %v462 = vrot.slane %v334, 4
    %v463 = vrot.slane %v335, 4
    %v464 = vrot.slane %v336, 4
    %v465 = vrot.slane %v337, 4
    %v466 = vrot.slane %v338, 4
    %v467 = vrot.slane %v339, 4
    %v468 = vrot.slane %v340, 4
    %v469 = vrot.slane %v341, 4
    %v470 = vrot.slane %v342, 4
    %v471 = vrot.slane %v343, 4
    %v472 = vrot.slane %v344, 4
    %v473 = vrot.slane %v345, 4
    %v474 = vrot.slane %v346, 4
    %v475 = vrot.slane %v347, 4
    %v476 = vrot.slane %v348, 4
    %v477 = vrot.slane %v349, 4
    %v478 = vrot.slane %v350, 4
    %v479 = vrot.slane %v351, 4
    %v480 = vrot.slane %v352, 4
    %v481 = vrot.slane %v353, 4
    %v482 = vrot.slane %v354, 4
    %v483 = vrot.slane %v355, 4
    %v484 = vrot.slane %v356, 4
    %v485 = vrot.slane %v357, 4
    %v486 = vrot.slane %v358, 4
    %v487 = vrot.slane %v359, 4
    %v488 = vrot.slane %v360, 4
    %v489 = vrot.slane %v361, 4
    %s554 = scalar_lea.vmem [#allocation2], 8
    %vm555 = vcmask 31748
    %556 = vst.msk [vmem:[%s554] sm:$0xf0] %vm555, %v426
    %557 = vst.msk [vmem:[%s554 + $0x8] sm:$0xf0] %vm555, %v427
    %558 = vst.msk [vmem:[%s554 + $0x10] sm:$0xf0] %vm555, %v428
    %559 = vst.msk [vmem:[%s554 + $0x18] sm:$0xf0] %vm555, %v429
    %560 = vst.msk [vmem:[%s554 + $0x20] sm:$0xf0] %vm555, %v430
    %561 = vst.msk [vmem:[%s554 + $0x28] sm:$0xf0] %vm555, %v431
    %562 = vst.msk [vmem:[%s554 + $0x30] sm:$0xf0] %vm555, %v432
    %563 = vst.msk [vmem:[%s554 + $0x38] sm:$0xf0] %vm555, %v433
    %564 = vst.msk [vmem:[%s554 + $0x48] sm:$0xf0] %vm555, %v434
    %565 = vst.msk [vmem:[%s554 + $0x50] sm:$0xf0] %vm555, %v435
    %566 = vst.msk [vmem:[%s554 + $0x58] sm:$0xf0] %vm555, %v436
    %567 = vst.msk [vmem:[%s554 + $0x60] sm:$0xf0] %vm555, %v437
    %568 = vst.msk [vmem:[%s554 + $0x68] sm:$0xf0] %vm555, %v438
    %569 = vst.msk [vmem:[%s554 + $0x70] sm:$0xf0] %vm555, %v439
    %570 = vst.msk [vmem:[%s554 + $0x78] sm:$0xf0] %vm555, %v440
    %571 = vst.msk [vmem:[%s554 + $0x80] sm:$0xf0] %vm555, %v441
    %572 = vst.msk [vmem:[%s554 + $0x90] sm:$0xf0] %vm555, %v442
    %573 = vst.msk [vmem:[%s554 + $0x98] sm:$0xf0] %vm555, %v443
    %574 = vst.msk [vmem:[%s554 + $0xa0] sm:$0xf0] %vm555, %v444
    %575 = vst.msk [vmem:[%s554 + $0xa8] sm:$0xf0] %vm555, %v445
    %576 = vst.msk [vmem:[%s554 + $0xb0] sm:$0xf0] %vm555, %v446
    %577 = vst.msk [vmem:[%s554 + $0xb8] sm:$0xf0] %vm555, %v447
    %578 = vst.msk [vmem:[%s554 + $0xc0] sm:$0xf0] %vm555, %v448
    %579 = vst.msk [vmem:[%s554 + $0xc8] sm:$0xf0] %vm555, %v449
    %580 = vst.msk [vmem:[%s554 + $0xd8] sm:$0xf0] %vm555, %v450
    %581 = vst.msk [vmem:[%s554 + $0xe0] sm:$0xf0] %vm555, %v451
    %582 = vst.msk [vmem:[%s554 + $0xe8] sm:$0xf0] %vm555, %v452
    %583 = vst.msk [vmem:[%s554 + $0xf0] sm:$0xf0] %vm555, %v453
    %584 = vst.msk [vmem:[%s554 + $0xf8] sm:$0xf0] %vm555, %v454
    %585 = vst.msk [vmem:[%s554 + $0x100] sm:$0xf0] %vm555, %v455
    %586 = vst.msk [vmem:[%s554 + $0x108] sm:$0xf0] %vm555, %v456
    %587 = vst.msk [vmem:[%s554 + $0x110] sm:$0xf0] %vm555, %v457
    %588 = vst.msk [vmem:[%s554 + $0x120] sm:$0xf0] %vm555, %v458
    %589 = vst.msk [vmem:[%s554 + $0x128] sm:$0xf0] %vm555, %v459
    %590 = vst.msk [vmem:[%s554 + $0x130] sm:$0xf0] %vm555, %v460
    %591 = vst.msk [vmem:[%s554 + $0x138] sm:$0xf0] %vm555, %v461
    %592 = vst.msk [vmem:[%s554 + $0x140] sm:$0xf0] %vm555, %v462
    %593 = vst.msk [vmem:[%s554 + $0x148] sm:$0xf0] %vm555, %v463
    %594 = vst.msk [vmem:[%s554 + $0x150] sm:$0xf0] %vm555, %v464
    %595 = vst.msk [vmem:[%s554 + $0x158] sm:$0xf0] %vm555, %v465
    %596 = vst.msk [vmem:[%s554 + $0x168] sm:$0xf0] %vm555, %v466
    %597 = vst.msk [vmem:[%s554 + $0x170] sm:$0xf0] %vm555, %v467
    %598 = vst.msk [vmem:[%s554 + $0x178] sm:$0xf0] %vm555, %v468
    %599 = vst.msk [vmem:[%s554 + $0x180] sm:$0xf0] %vm555, %v469
    %600 = vst.msk [vmem:[%s554 + $0x188] sm:$0xf0] %vm555, %v470
    %601 = vst.msk [vmem:[%s554 + $0x190] sm:$0xf0] %vm555, %v471
    %602 = vst.msk [vmem:[%s554 + $0x198] sm:$0xf0] %vm555, %v472
    %603 = vst.msk [vmem:[%s554 + $0x1a0] sm:$0xf0] %vm555, %v473
    %604 = vst.msk [vmem:[%s554 + $0x1b0] sm:$0xf0] %vm555, %v474
    %605 = vst.msk [vmem:[%s554 + $0x1b8] sm:$0xf0] %vm555, %v475
    %606 = vst.msk [vmem:[%s554 + $0x1c0] sm:$0xf0] %vm555, %v476
    %607 = vst.msk [vmem:[%s554 + $0x1c8] sm:$0xf0] %vm555, %v477
    %608 = vst.msk [vmem:[%s554 + $0x1d0] sm:$0xf0] %vm555, %v478
    %609 = vst.msk [vmem:[%s554 + $0x1d8] sm:$0xf0] %vm555, %v479
    %610 = vst.msk [vmem:[%s554 + $0x1e0] sm:$0xf0] %vm555, %v480
    %611 = vst.msk [vmem:[%s554 + $0x1e8] sm:$0xf0] %vm555, %v481
    %612 = vst.msk [vmem:[%s554 + $0x1f8] sm:$0xf0] %vm555, %v482
    %613 = vst.msk [vmem:[%s554 + $0x200] sm:$0xf0] %vm555, %v483
    %614 = vst.msk [vmem:[%s554 + $0x208] sm:$0xf0] %vm555, %v484
    %615 = vst.msk [vmem:[%s554 + $0x210] sm:$0xf0] %vm555, %v485
    %616 = vst.msk [vmem:[%s554 + $0x218] sm:$0xf0] %vm555, %v486
    %617 = vst.msk [vmem:[%s554 + $0x220] sm:$0xf0] %vm555, %v487
    %618 = vst.msk [vmem:[%s554 + $0x228] sm:$0xf0] %vm555, %v488
    %619 = vst.msk [vmem:[%s554 + $0x230] sm:$0xf0] %vm555, %v489
    %vm620 = vcmask 31744
    %621 = vst.msk [vmem:[#allocation2] sm:$0xff] %vm620, 0
    %622 = vst.msk [vmem:[#allocation2 + $0x48] sm:$0xff] %vm620, 0
    %623 = vst.msk [vmem:[#allocation2 + $0x90] sm:$0xff] %vm620, 0
    %624 = vst.msk [vmem:[#allocation2 + $0xd8] sm:$0xff] %vm620, 0
    %625 = vst.msk [vmem:[#allocation2 + $0x120] sm:$0xff] %vm620, 0
    %626 = vst.msk [vmem:[#allocation2 + $0x168] sm:$0xff] %vm620, 0
    %627 = vst.msk [vmem:[#allocation2 + $0x1b0] sm:$0xff] %vm620, 0
    %628 = vst.msk [vmem:[#allocation2 + $0x1f8] sm:$0xff] %vm620, 0
    %vm629 = vcmask 27651
    %vm630 = vsmask.f32 7950
    %vm631 = vmand %vm629, %vm630
    %v632 = vld [vmem:[#allocation2] sm:$0x8]
    %v633 = vsel %vm631, 0, %v632
    %634 = vst [vmem:[#allocation2] sm:$0x8] %v633
    %v635 = vld [vmem:[#allocation2 + $0x8] sm:$0x8]
    %v636 = vsel %vm631, 0, %v635
    %637 = vst [vmem:[#allocation2 + $0x8] sm:$0x8] %v636
    %v638 = vld [vmem:[#allocation2 + $0x10] sm:$0x8]
    %v639 = vsel %vm631, 0, %v638
    %640 = vst [vmem:[#allocation2 + $0x10] sm:$0x8] %v639
    %v641 = vld [vmem:[#allocation2 + $0x18] sm:$0x8]
    %v642 = vsel %vm631, 0, %v641
    %643 = vst [vmem:[#allocation2 + $0x18] sm:$0x8] %v642
    %v644 = vld [vmem:[#allocation2 + $0x20] sm:$0x8]
    %v645 = vsel %vm631, 0, %v644
    %646 = vst [vmem:[#allocation2 + $0x20] sm:$0x8] %v645
    %v647 = vld [vmem:[#allocation2 + $0x28] sm:$0x8]
    %v648 = vsel %vm631, 0, %v647
    %649 = vst [vmem:[#allocation2 + $0x28] sm:$0x8] %v648
    %v650 = vld [vmem:[#allocation2 + $0x30] sm:$0x8]
    %v651 = vsel %vm631, 0, %v650
    %652 = vst [vmem:[#allocation2 + $0x30] sm:$0x8] %v651
    %v653 = vld [vmem:[#allocation2 + $0x38] sm:$0x8]
    %v654 = vsel %vm631, 0, %v653
    %655 = vst [vmem:[#allocation2 + $0x38] sm:$0x8] %v654
    %v656 = vld [vmem:[#allocation2 + $0x40] sm:$0x8]
    %v657 = vsel %vm631, 0, %v656
    %658 = vst [vmem:[#allocation2 + $0x40] sm:$0x8] %v657
    %v659 = vld [vmem:[#allocation2 + $0x48] sm:$0x8]
    %v660 = vsel %vm631, 0, %v659
    %661 = vst [vmem:[#allocation2 + $0x48] sm:$0x8] %v660
    %v662 = vld [vmem:[#allocation2 + $0x50] sm:$0x8]
    %v663 = vsel %vm631, 0, %v662
    %664 = vst [vmem:[#allocation2 + $0x50] sm:$0x8] %v663
    %v665 = vld [vmem:[#allocation2 + $0x58] sm:$0x8]
    %v666 = vsel %vm631, 0, %v665
    %667 = vst [vmem:[#allocation2 + $0x58] sm:$0x8] %v666
    %v668 = vld [vmem:[#allocation2 + $0x60] sm:$0x8]
    %v669 = vsel %vm631, 0, %v668
    %670 = vst [vmem:[#allocation2 + $0x60] sm:$0x8] %v669
    %v671 = vld [vmem:[#allocation2 + $0x68] sm:$0x8]
    %v672 = vsel %vm631, 0, %v671
    %673 = vst [vmem:[#allocation2 + $0x68] sm:$0x8] %v672
    %v674 = vld [vmem:[#allocation2 + $0x70] sm:$0x8]
    %v675 = vsel %vm631, 0, %v674
    %676 = vst [vmem:[#allocation2 + $0x70] sm:$0x8] %v675
    %v677 = vld [vmem:[#allocation2 + $0x78] sm:$0x8]
    %v678 = vsel %vm631, 0, %v677
    %679 = vst [vmem:[#allocation2 + $0x78] sm:$0x8] %v678
    %v680 = vld [vmem:[#allocation2 + $0x80] sm:$0x8]
    %v681 = vsel %vm631, 0, %v680
    %682 = vst [vmem:[#allocation2 + $0x80] sm:$0x8] %v681
    %v683 = vld [vmem:[#allocation2 + $0x88] sm:$0x8]
    %v684 = vsel %vm631, 0, %v683
    %685 = vst [vmem:[#allocation2 + $0x88] sm:$0x8] %v684
    %v686 = vld [vmem:[#allocation2 + $0x90] sm:$0x8]
    %v687 = vsel %vm631, 0, %v686
    %688 = vst [vmem:[#allocation2 + $0x90] sm:$0x8] %v687
    %v689 = vld [vmem:[#allocation2 + $0x98] sm:$0x8]
    %v690 = vsel %vm631, 0, %v689
    %691 = vst [vmem:[#allocation2 + $0x98] sm:$0x8] %v690
    %v692 = vld [vmem:[#allocation2 + $0xa0] sm:$0x8]
    %v693 = vsel %vm631, 0, %v692
    %694 = vst [vmem:[#allocation2 + $0xa0] sm:$0x8] %v693
    %v695 = vld [vmem:[#allocation2 + $0xa8] sm:$0x8]
    %v696 = vsel %vm631, 0, %v695
    %697 = vst [vmem:[#allocation2 + $0xa8] sm:$0x8] %v696
    %v698 = vld [vmem:[#allocation2 + $0xb0] sm:$0x8]
    %v699 = vsel %vm631, 0, %v698
    %700 = vst [vmem:[#allocation2 + $0xb0] sm:$0x8] %v699
    %v701 = vld [vmem:[#allocation2 + $0xb8] sm:$0x8]
    %v702 = vsel %vm631, 0, %v701
    %703 = vst [vmem:[#allocation2 + $0xb8] sm:$0x8] %v702
    %v704 = vld [vmem:[#allocation2 + $0xc0] sm:$0x8]
    %v705 = vsel %vm631, 0, %v704
    %706 = vst [vmem:[#allocation2 + $0xc0] sm:$0x8] %v705
    %v707 = vld [vmem:[#allocation2 + $0xc8] sm:$0x8]
    %v708 = vsel %vm631, 0, %v707
    %709 = vst [vmem:[#allocation2 + $0xc8] sm:$0x8] %v708
    %v710 = vld [vmem:[#allocation2 + $0xd0] sm:$0x8]
    %v711 = vsel %vm631, 0, %v710
    %712 = vst [vmem:[#allocation2 + $0xd0] sm:$0x8] %v711
    %v713 = vld [vmem:[#allocation2 + $0xd8] sm:$0x8]
    %v714 = vsel %vm631, 0, %v713
    %715 = vst [vmem:[#allocation2 + $0xd8] sm:$0x8] %v714
    %v716 = vld [vmem:[#allocation2 + $0xe0] sm:$0x8]
    %v717 = vsel %vm631, 0, %v716
    %718 = vst [vmem:[#allocation2 + $0xe0] sm:$0x8] %v717
    %v719 = vld [vmem:[#allocation2 + $0xe8] sm:$0x8]
    %v720 = vsel %vm631, 0, %v719
    %721 = vst [vmem:[#allocation2 + $0xe8] sm:$0x8] %v720
    %v722 = vld [vmem:[#allocation2 + $0xf0] sm:$0x8]
    %v723 = vsel %vm631, 0, %v722
    %724 = vst [vmem:[#allocation2 + $0xf0] sm:$0x8] %v723
    %v725 = vld [vmem:[#allocation2 + $0xf8] sm:$0x8]
    %v726 = vsel %vm631, 0, %v725
    %727 = vst [vmem:[#allocation2 + $0xf8] sm:$0x8] %v726
    %v728 = vld [vmem:[#allocation2 + $0x100] sm:$0x8]
    %v729 = vsel %vm631, 0, %v728
    %730 = vst [vmem:[#allocation2 + $0x100] sm:$0x8] %v729
    %v731 = vld [vmem:[#allocation2 + $0x108] sm:$0x8]
    %v732 = vsel %vm631, 0, %v731
    %733 = vst [vmem:[#allocation2 + $0x108] sm:$0x8] %v732
    %v734 = vld [vmem:[#allocation2 + $0x110] sm:$0x8]
    %v735 = vsel %vm631, 0, %v734
    %736 = vst [vmem:[#allocation2 + $0x110] sm:$0x8] %v735
    %v737 = vld [vmem:[#allocation2 + $0x118] sm:$0x8]
    %v738 = vsel %vm631, 0, %v737
    %739 = vst [vmem:[#allocation2 + $0x118] sm:$0x8] %v738
    %v740 = vld [vmem:[#allocation2 + $0x120] sm:$0x8]
    %v741 = vsel %vm631, 0, %v740
    %742 = vst [vmem:[#allocation2 + $0x120] sm:$0x8] %v741
    %v743 = vld [vmem:[#allocation2 + $0x128] sm:$0x8]
    %v744 = vsel %vm631, 0, %v743
    %745 = vst [vmem:[#allocation2 + $0x128] sm:$0x8] %v744
    %v746 = vld [vmem:[#allocation2 + $0x130] sm:$0x8]
    %v747 = vsel %vm631, 0, %v746
    %748 = vst [vmem:[#allocation2 + $0x130] sm:$0x8] %v747
    %v749 = vld [vmem:[#allocation2 + $0x138] sm:$0x8]
    %v750 = vsel %vm631, 0, %v749
    %751 = vst [vmem:[#allocation2 + $0x138] sm:$0x8] %v750
    %v752 = vld [vmem:[#allocation2 + $0x140] sm:$0x8]
    %v753 = vsel %vm631, 0, %v752
    %754 = vst [vmem:[#allocation2 + $0x140] sm:$0x8] %v753
    %v755 = vld [vmem:[#allocation2 + $0x148] sm:$0x8]
    %v756 = vsel %vm631, 0, %v755
    %757 = vst [vmem:[#allocation2 + $0x148] sm:$0x8] %v756
    %v758 = vld [vmem:[#allocation2 + $0x150] sm:$0x8]
    %v759 = vsel %vm631, 0, %v758
    %760 = vst [vmem:[#allocation2 + $0x150] sm:$0x8] %v759
    %v761 = vld [vmem:[#allocation2 + $0x158] sm:$0x8]
    %v762 = vsel %vm631, 0, %v761
    %763 = vst [vmem:[#allocation2 + $0x158] sm:$0x8] %v762
    %v764 = vld [vmem:[#allocation2 + $0x160] sm:$0x8]
    %v765 = vsel %vm631, 0, %v764
    %766 = vst [vmem:[#allocation2 + $0x160] sm:$0x8] %v765
    %v767 = vld [vmem:[#allocation2 + $0x168] sm:$0x8]
    %v768 = vsel %vm631, 0, %v767
    %769 = vst [vmem:[#allocation2 + $0x168] sm:$0x8] %v768
    %v770 = vld [vmem:[#allocation2 + $0x170] sm:$0x8]
    %v771 = vsel %vm631, 0, %v770
    %772 = vst [vmem:[#allocation2 + $0x170] sm:$0x8] %v771
    %v773 = vld [vmem:[#allocation2 + $0x178] sm:$0x8]
    %v774 = vsel %vm631, 0, %v773
    %775 = vst [vmem:[#allocation2 + $0x178] sm:$0x8] %v774
    %v776 = vld [vmem:[#allocation2 + $0x180] sm:$0x8]
    %v777 = vsel %vm631, 0, %v776
    %778 = vst [vmem:[#allocation2 + $0x180] sm:$0x8] %v777
    %v779 = vld [vmem:[#allocation2 + $0x188] sm:$0x8]
    %v780 = vsel %vm631, 0, %v779
    %781 = vst [vmem:[#allocation2 + $0x188] sm:$0x8] %v780
    %v782 = vld [vmem:[#allocation2 + $0x190] sm:$0x8]
    %v783 = vsel %vm631, 0, %v782
    %784 = vst [vmem:[#allocation2 + $0x190] sm:$0x8] %v783
    %v785 = vld [vmem:[#allocation2 + $0x198] sm:$0x8]
    %v786 = vsel %vm631, 0, %v785
    %787 = vst [vmem:[#allocation2 + $0x198] sm:$0x8] %v786
    %v788 = vld [vmem:[#allocation2 + $0x1a0] sm:$0x8]
    %v789 = vsel %vm631, 0, %v788
    %790 = vst [vmem:[#allocation2 + $0x1a0] sm:$0x8] %v789
    %v791 = vld [vmem:[#allocation2 + $0x1a8] sm:$0x8]
    %v792 = vsel %vm631, 0, %v791
    %793 = vst [vmem:[#allocation2 + $0x1a8] sm:$0x8] %v792
    %v794 = vld [vmem:[#allocation2 + $0x1b0] sm:$0x8]
    %v795 = vsel %vm631, 0, %v794
    %796 = vst [vmem:[#allocation2 + $0x1b0] sm:$0x8] %v795
    %v797 = vld [vmem:[#allocation2 + $0x1b8] sm:$0x8]
    %v798 = vsel %vm631, 0, %v797
    %799 = vst [vmem:[#allocation2 + $0x1b8] sm:$0x8] %v798
    %v800 = vld [vmem:[#allocation2 + $0x1c0] sm:$0x8]
    %v801 = vsel %vm631, 0, %v800
    %802 = vst [vmem:[#allocation2 + $0x1c0] sm:$0x8] %v801
    %v803 = vld [vmem:[#allocation2 + $0x1c8] sm:$0x8]
    %v804 = vsel %vm631, 0, %v803
    %805 = vst [vmem:[#allocation2 + $0x1c8] sm:$0x8] %v804
    %v806 = vld [vmem:[#allocation2 + $0x1d0] sm:$0x8]
    %v807 = vsel %vm631, 0, %v806
    %808 = vst [vmem:[#allocation2 + $0x1d0] sm:$0x8] %v807
    %v809 = vld [vmem:[#allocation2 + $0x1d8] sm:$0x8]
    %v810 = vsel %vm631, 0, %v809
    %811 = vst [vmem:[#allocation2 + $0x1d8] sm:$0x8] %v810
    %v812 = vld [vmem:[#allocation2 + $0x1e0] sm:$0x8]
    %v813 = vsel %vm631, 0, %v812
    %814 = vst [vmem:[#allocation2 + $0x1e0] sm:$0x8] %v813
    %v815 = vld [vmem:[#allocation2 + $0x1e8] sm:$0x8]
    %v816 = vsel %vm631, 0, %v815
    %817 = vst [vmem:[#allocation2 + $0x1e8] sm:$0x8] %v816
    %v818 = vld [vmem:[#allocation2 + $0x1f0] sm:$0x8]
    %v819 = vsel %vm631, 0, %v818
    %820 = vst [vmem:[#allocation2 + $0x1f0] sm:$0x8] %v819
    %v821 = vld [vmem:[#allocation2 + $0x1f8] sm:$0x8]
    %v822 = vsel %vm631, 0, %v821
    %823 = vst [vmem:[#allocation2 + $0x1f8] sm:$0x8] %v822
    %v824 = vld [vmem:[#allocation2 + $0x200] sm:$0x8]
    %v825 = vsel %vm631, 0, %v824
    %826 = vst [vmem:[#allocation2 + $0x200] sm:$0x8] %v825
    %v827 = vld [vmem:[#allocation2 + $0x208] sm:$0x8]
    %v828 = vsel %vm631, 0, %v827
    %829 = vst [vmem:[#allocation2 + $0x208] sm:$0x8] %v828
    %v830 = vld [vmem:[#allocation2 + $0x210] sm:$0x8]
    %v831 = vsel %vm631, 0, %v830
    %832 = vst [vmem:[#allocation2 + $0x210] sm:$0x8] %v831
    %v833 = vld [vmem:[#allocation2 + $0x218] sm:$0x8]
    %v834 = vsel %vm631, 0, %v833
    %835 = vst [vmem:[#allocation2 + $0x218] sm:$0x8] %v834
    %v836 = vld [vmem:[#allocation2 + $0x220] sm:$0x8]
    %v837 = vsel %vm631, 0, %v836
    %838 = vst [vmem:[#allocation2 + $0x220] sm:$0x8] %v837
    %v839 = vld [vmem:[#allocation2 + $0x228] sm:$0x8]
    %v840 = vsel %vm631, 0, %v839
    %841 = vst [vmem:[#allocation2 + $0x228] sm:$0x8] %v840
    %v842 = vld [vmem:[#allocation2 + $0x230] sm:$0x8]
    %v843 = vsel %vm631, 0, %v842
    %844 = vst [vmem:[#allocation2 + $0x230] sm:$0x8] %v843
    %v845 = vld [vmem:[#allocation2 + $0x238] sm:$0x8]
    %v846 = vsel %vm631, 0, %v845
    %847 = vst [vmem:[#allocation2 + $0x238] sm:$0x8] %v846
    %s848 = scalar_lea.vmem [#allocation2], 216
    %v849 = vld [vmem:[%s848] sm:$0xf8]
    %v850 = vld [vmem:[%s848 + $0x8] sm:$0xf8]
    %v851 = vld [vmem:[%s848 + $0x10] sm:$0xf8]
    %v852 = vld [vmem:[%s848 + $0x18] sm:$0xf8]
    %v853 = vld [vmem:[%s848 + $0x20] sm:$0xf8]
    %v854 = vld [vmem:[%s848 + $0x28] sm:$0xf8]
    %v855 = vld [vmem:[%s848 + $0x30] sm:$0xf8]
    %v856 = vld [vmem:[%s848 + $0x38] sm:$0xf8]
    %v857 = vld [vmem:[%s848 + $0x120] sm:$0xf8]
    %v858 = vld [vmem:[%s848 + $0x128] sm:$0xf8]
    %v859 = vld [vmem:[%s848 + $0x130] sm:$0xf8]
    %v860 = vld [vmem:[%s848 + $0x138] sm:$0xf8]
    %v861 = vld [vmem:[%s848 + $0x140] sm:$0xf8]
    %v862 = vld [vmem:[%s848 + $0x148] sm:$0xf8]
    %v863 = vld [vmem:[%s848 + $0x150] sm:$0xf8]
    %v864 = vld [vmem:[%s848 + $0x158] sm:$0xf8]
    %v881 = vunpack.c.l.b16 %v849
    %v882 = vunpack.c.h.b16 %v849
    %v883 = vunpack.c.l.b16 %v850
    %v884 = vunpack.c.h.b16 %v850
    %v885 = vunpack.c.l.b16 %v851
    %v886 = vunpack.c.h.b16 %v851
    %v887 = vunpack.c.l.b16 %v852
    %v888 = vunpack.c.h.b16 %v852
    %v889 = vunpack.c.l.b16 %v853
    %v890 = vunpack.c.h.b16 %v853
    %v891 = vunpack.c.l.b16 %v854
    %v892 = vunpack.c.h.b16 %v854
    %v893 = vunpack.c.l.b16 %v855
    %v894 = vunpack.c.h.b16 %v855
    %v895 = vunpack.c.l.b16 %v856
    %v896 = vunpack.c.h.b16 %v856
    %v897 = vunpack.c.l.b16 %v857
    %v898 = vunpack.c.h.b16 %v857
    %v899 = vunpack.c.l.b16 %v858
    %v900 = vunpack.c.h.b16 %v858
    %v901 = vunpack.c.l.b16 %v859
    %v902 = vunpack.c.h.b16 %v859
    %v903 = vunpack.c.l.b16 %v860
    %v904 = vunpack.c.h.b16 %v860
    %v905 = vunpack.c.l.b16 %v861
    %v906 = vunpack.c.h.b16 %v861
    %v907 = vunpack.c.l.b16 %v862
    %v908 = vunpack.c.h.b16 %v862
    %v909 = vunpack.c.l.b16 %v863
    %v910 = vunpack.c.h.b16 %v863
    %v911 = vunpack.c.l.b16 %v864
    %v912 = vunpack.c.h.b16 %v864
    %v913 = vpack.c.b16 %v881, %v881
    %v914 = vpack.c.b16 %v882, %v882
    %v915 = vpack.c.b16 %v883, %v883
    %v916 = vpack.c.b16 %v884, %v884
    %v917 = vpack.c.b16 %v885, %v885
    %v918 = vpack.c.b16 %v886, %v886
    %v919 = vpack.c.b16 %v887, %v887
    %v920 = vpack.c.b16 %v888, %v888
    %v921 = vpack.c.b16 %v889, %v889
    %v922 = vpack.c.b16 %v890, %v890
    %v923 = vpack.c.b16 %v891, %v891
    %v924 = vpack.c.b16 %v892, %v892
    %v925 = vpack.c.b16 %v893, %v893
    %v926 = vpack.c.b16 %v894, %v894
    %v927 = vpack.c.b16 %v895, %v895
    %v928 = vpack.c.b16 %v896, %v896
    %v929 = vpack.c.b16 %v897, %v897
    %v930 = vpack.c.b16 %v898, %v898
    %v931 = vpack.c.b16 %v899, %v899
    %v932 = vpack.c.b16 %v900, %v900
    %v933 = vpack.c.b16 %v901, %v901
    %v934 = vpack.c.b16 %v902, %v902
    %v935 = vpack.c.b16 %v903, %v903
    %v936 = vpack.c.b16 %v904, %v904
    %v937 = vpack.c.b16 %v905, %v905
    %v938 = vpack.c.b16 %v906, %v906
    %v939 = vpack.c.b16 %v907, %v907
    %v940 = vpack.c.b16 %v908, %v908
    %v941 = vpack.c.b16 %v909, %v909
    %v942 = vpack.c.b16 %v910, %v910
    %v943 = vpack.c.b16 %v911, %v911
    %v944 = vpack.c.b16 %v912, %v912
    %vm945 = vsmask.f32 256
    %vm946 = vsmask.f32 4368
    %vm947 = vmor %vm945, %vm946
    %v949 = vshrl.u32 %v913, 16
    %v951 = vrot.slane %v949, 7
    %v952 = vrot.slane %v951, 4
    %v954 = vshrl.u32 %v914, 16
    %v956 = vrot.slane %v954, 7
    %v957 = vshll.u32 %v914, 16
    %v959 = vor.u32 %v956, %v957
    %v960 = vsel %vm947, %v952, %v959
    %v962 = vshrl.u32 %v915, 16
    %v964 = vrot.slane %v962, 7
    %v965 = vrot.slane %v964, 4
    %v967 = vshrl.u32 %v916, 16
    %v969 = vrot.slane %v967, 7
    %v970 = vshll.u32 %v916, 16
    %v972 = vor.u32 %v969, %v970
    %v973 = vsel %vm947, %v965, %v972
    %v975 = vshrl.u32 %v917, 16
    %v977 = vrot.slane %v975, 7
    %v978 = vrot.slane %v977, 4
    %v980 = vshrl.u32 %v918, 16
    %v982 = vrot.slane %v980, 7
    %v983 = vshll.u32 %v918, 16
    %v985 = vor.u32 %v982, %v983
    %v986 = vsel %vm947, %v978, %v985
    %v988 = vshrl.u32 %v919, 16
    %v990 = vrot.slane %v988, 7
    %v991 = vrot.slane %v990, 4
    %v993 = vshrl.u32 %v920, 16
    %v995 = vrot.slane %v993, 7
    %v996 = vshll.u32 %v920, 16
    %v998 = vor.u32 %v995, %v996
    %v999 = vsel %vm947, %v991, %v998
    %v1001 = vshrl.u32 %v921, 16
    %v1003 = vrot.slane %v1001, 7
    %v1004 = vrot.slane %v1003, 4
    %v1006 = vshrl.u32 %v922, 16
    %v1008 = vrot.slane %v1006, 7
    %v1009 = vshll.u32 %v922, 16
    %v1011 = vor.u32 %v1008, %v1009
    %v1012 = vsel %vm947, %v1004, %v1011
    %v1014 = vshrl.u32 %v923, 16
    %v1016 = vrot.slane %v1014, 7
    %v1017 = vrot.slane %v1016, 4
    %v1019 = vshrl.u32 %v924, 16
    %v1021 = vrot.slane %v1019, 7
    %v1022 = vshll.u32 %v924, 16
    %v1024 = vor.u32 %v1021, %v1022
    %v1025 = vsel %vm947, %v1017, %v1024
    %v1027 = vshrl.u32 %v925, 16
    %v1029 = vrot.slane %v1027, 7
    %v1030 = vrot.slane %v1029, 4
    %v1032 = vshrl.u32 %v926, 16
    %v1034 = vrot.slane %v1032, 7
    %v1035 = vshll.u32 %v926, 16
    %v1037 = vor.u32 %v1034, %v1035
    %v1038 = vsel %vm947, %v1030, %v1037
    %v1040 = vshrl.u32 %v927, 16
    %v1042 = vrot.slane %v1040, 7
    %v1043 = vrot.slane %v1042, 4
    %v1045 = vshrl.u32 %v928, 16
    %v1047 = vrot.slane %v1045, 7
    %v1048 = vshll.u32 %v928, 16
    %v1050 = vor.u32 %v1047, %v1048
    %v1051 = vsel %vm947, %v1043, %v1050
    %v1053 = vshrl.u32 %v929, 16
    %v1055 = vrot.slane %v1053, 7
    %v1056 = vrot.slane %v1055, 4
    %v1058 = vshrl.u32 %v930, 16
    %v1060 = vrot.slane %v1058, 7
    %v1061 = vshll.u32 %v930, 16
    %v1063 = vor.u32 %v1060, %v1061
    %v1064 = vsel %vm947, %v1056, %v1063
    %v1066 = vshrl.u32 %v931, 16
    %v1068 = vrot.slane %v1066, 7
    %v1069 = vrot.slane %v1068, 4
    %v1071 = vshrl.u32 %v932, 16
    %v1073 = vrot.slane %v1071, 7
    %v1074 = vshll.u32 %v932, 16
    %v1076 = vor.u32 %v1073, %v1074
    %v1077 = vsel %vm947, %v1069, %v1076
    %v1079 = vshrl.u32 %v933, 16
    %v1081 = vrot.slane %v1079, 7
    %v1082 = vrot.slane %v1081, 4
    %v1084 = vshrl.u32 %v934, 16
    %v1086 = vrot.slane %v1084, 7
    %v1087 = vshll.u32 %v934, 16
    %v1089 = vor.u32 %v1086, %v1087
    %v1090 = vsel %vm947, %v1082, %v1089
    %v1092 = vshrl.u32 %v935, 16
    %v1094 = vrot.slane %v1092, 7
    %v1095 = vrot.slane %v1094, 4
    %v1097 = vshrl.u32 %v936, 16
    %v1099 = vrot.slane %v1097, 7
    %v1100 = vshll.u32 %v936, 16
    %v1102 = vor.u32 %v1099, %v1100
    %v1103 = vsel %vm947, %v1095, %v1102
    %v1105 = vshrl.u32 %v937, 16
    %v1107 = vrot.slane %v1105, 7
    %v1108 = vrot.slane %v1107, 4
    %v1110 = vshrl.u32 %v938, 16
    %v1112 = vrot.slane %v1110, 7
    %v1113 = vshll.u32 %v938, 16
    %v1115 = vor.u32 %v1112, %v1113
    %v1116 = vsel %vm947, %v1108, %v1115
    %v1118 = vshrl.u32 %v939, 16
    %v1120 = vrot.slane %v1118, 7
    %v1121 = vrot.slane %v1120, 4
    %v1123 = vshrl.u32 %v940, 16
    %v1125 = vrot.slane %v1123, 7
    %v1126 = vshll.u32 %v940, 16
    %v1128 = vor.u32 %v1125, %v1126
    %v1129 = vsel %vm947, %v1121, %v1128
    %v1131 = vshrl.u32 %v941, 16
    %v1133 = vrot.slane %v1131, 7
    %v1134 = vrot.slane %v1133, 4
    %v1136 = vshrl.u32 %v942, 16
    %v1138 = vrot.slane %v1136, 7
    %v1139 = vshll.u32 %v942, 16
    %v1141 = vor.u32 %v1138, %v1139
    %v1142 = vsel %vm947, %v1134, %v1141
    %v1144 = vshrl.u32 %v943, 16
    %v1146 = vrot.slane %v1144, 7
    %v1147 = vrot.slane %v1146, 4
    %v1149 = vshrl.u32 %v944, 16
    %v1151 = vrot.slane %v1149, 7
    %v1152 = vshll.u32 %v944, 16
    %v1154 = vor.u32 %v1151, %v1152
    %v1155 = vsel %vm947, %v1147, %v1154
    %v1156 = vld [vmem:[%s1] sm:$0x3]
    %s1157 = scalar_lea.vmem [#allocation2], 144
    %v1158 = vld [vmem:[%s1157] sm:$0xf0]
    %v1159 = vld [vmem:[%s1157 + $0x8] sm:$0xf0]
    %v1160 = vld [vmem:[%s1157 + $0x10] sm:$0xf0]
    %v1161 = vld [vmem:[%s1157 + $0x18] sm:$0xf0]
    %v1162 = vld [vmem:[%s1157 + $0x20] sm:$0xf0]
    %v1163 = vld [vmem:[%s1157 + $0x28] sm:$0xf0]
    %v1164 = vld [vmem:[%s1157 + $0x30] sm:$0xf0]
    %v1165 = vld [vmem:[%s1157 + $0x38] sm:$0xf0]
    %v1166 = vld [vmem:[%s1157 + $0x120] sm:$0xf0]
    %v1167 = vld [vmem:[%s1157 + $0x128] sm:$0xf0]
    %v1168 = vld [vmem:[%s1157 + $0x130] sm:$0xf0]
    %v1169 = vld [vmem:[%s1157 + $0x138] sm:$0xf0]
    %v1170 = vld [vmem:[%s1157 + $0x140] sm:$0xf0]
    %v1171 = vld [vmem:[%s1157 + $0x148] sm:$0xf0]
    %v1172 = vld [vmem:[%s1157 + $0x150] sm:$0xf0]
    %v1173 = vld [vmem:[%s1157 + $0x158] sm:$0xf0]
    %v1190 = vunpack.c.h.b16 %v1158
    %v1191 = vunpack.c.h.b16 %v1159
    %v1192 = vunpack.c.h.b16 %v1160
    %v1193 = vunpack.c.h.b16 %v1161
    %v1194 = vunpack.c.h.b16 %v1162
    %v1195 = vunpack.c.h.b16 %v1163
    %v1196 = vunpack.c.h.b16 %v1164
    %v1197 = vunpack.c.h.b16 %v1165
    %v1198 = vunpack.c.h.b16 %v1166
    %v1199 = vunpack.c.h.b16 %v1167
    %v1200 = vunpack.c.h.b16 %v1168
    %v1201 = vunpack.c.h.b16 %v1169
    %v1202 = vunpack.c.h.b16 %v1170
    %v1203 = vunpack.c.h.b16 %v1171
    %v1204 = vunpack.c.h.b16 %v1172
    %v1205 = vunpack.c.h.b16 %v1173
    %s1206 = scalar_lea.vmem %s1, 2
    %v1207 = vld [vmem:[%s1206] sm:$0x3]
    %v1208 = vpack.c.b16 %v1191, %v1190
    %v1209 = vpack.c.b16 %v1193, %v1192
    %v1210 = vpack.c.b16 %v1195, %v1194
    %v1211 = vpack.c.b16 %v1197, %v1196
    %v1212 = vpack.c.b16 %v1199, %v1198
    %v1213 = vpack.c.b16 %v1201, %v1200
    %v1214 = vpack.c.b16 %v1203, %v1202
    %v1215 = vpack.c.b16 %v1205, %v1204
    %v1217 = vsel %vm620, %v1208, 0
    %v1220 = vsel %vm620, %v1209, 0
    %v1223 = vsel %vm620, %v1210, 0
    %v1226 = vsel %vm620, %v1211, 0
    %v1229 = vsel %vm620, %v1212, 0
    %v1232 = vsel %vm620, %v1213, 0
    %v1235 = vsel %vm620, %v1214, 0
    %v1238 = vsel %vm620, %v1215, 0
    %vm1240 = vcmask 1041408
    %v1242 = vsel %vm1240, %v1207, 0
    %1244 = vmatprep.subr.bf16.mxu0 0
    %1245 = vmatpush1.bf16.msra.mxu0 %v1242
    %1246 = vmatprep.subr.bf16.mxu0 0
    %1247 = vmatpush1.bf16.msra.mxu0 0
    %1248 = vmatprep.subr.bf16.mxu0 0
    %1249 = vmatpush1.bf16.msra.mxu0 0
    %1250 = vmatprep.subr.bf16.mxu0 0
    %1251 = vmatpush1.bf16.msra.mxu0 0
    %1252 = vmatprep.subr.bf16.mxu0 0
    %1253 = vmatpush1.bf16.msra.mxu0 0
    %1254 = vmatprep.subr.bf16.mxu0 0
    %1255 = vmatpush1.bf16.msra.mxu0 0
    %1256 = vmatprep.subr.bf16.mxu0 0
    %1257 = vmatpush1.bf16.msra.mxu0 0
    %1258 = vmatprep.subr.bf16.mxu0 0
    %1259 = vmatpush1.bf16.msra.mxu0 0
    %1260 = vmatprep.subr.bf16.mxu0 0
    %1261 = vmatpush1.bf16.msra.mxu0 0
    %1262 = vmatprep.subr.bf16.mxu0 0
    %1263 = vmatpush1.bf16.msra.mxu0 0
    %1264 = vmatprep.subr.bf16.mxu0 0
    %1265 = vmatpush1.bf16.msra.mxu0 0
    %1266 = vmatprep.subr.bf16.mxu0 0
    %1267 = vmatpush1.bf16.msra.mxu0 0
    %1268 = vmatprep.subr.bf16.mxu0 0
    %1269 = vmatpush1.bf16.msra.mxu0 0
    %1270 = vmatprep.subr.bf16.mxu0 0
    %1271 = vmatpush1.bf16.msra.mxu0 0
    %1272 = vmatprep.subr.bf16.mxu0 0
    %1273 = vmatpush1.bf16.msra.mxu0 0
    %1274 = vmatprep.subr.bf16.mxu0 0
    %1275 = vmatpush1.bf16.msra.mxu0 0
    %1276 = vmatprep.mubr.bf16.mxu0 0
    %1277 = vmatmul.mubr.bf16.gmra.mrb[0].mxu0 %v1217
    %v1278 = vpop.f32.mrb[0].mxu0
    %v1279 = vadd.f32 0.0, %v1278
    %v1280 = vpop.f32.mrb[0].mxu0
    %v1281 = vpop.f32.mrb[0].mxu0
    %v1282 = vadd.f32 0.0, %v1281
    %v1283 = vpop.f32.mrb[0].mxu0
    %1284 = vmatprep.mubr.bf16.mxu0 0
    %1285 = vmatmul.mubr.bf16.gmra.mrb[0].mxu0 %v1220
    %v1286 = vpop.f32.mrb[0].mxu0
    %v1287 = vadd.f32 0.0, %v1286
    %v1288 = vpop.f32.mrb[0].mxu0
    %v1289 = vpop.f32.mrb[0].mxu0
    %v1290 = vadd.f32 0.0, %v1289
    %v1291 = vpop.f32.mrb[0].mxu0
    %1292 = vmatprep.mubr.bf16.mxu0 0
    %1293 = vmatmul.mubr.bf16.gmra.mrb[0].mxu0 %v1223
    %v1294 = vpop.f32.mrb[0].mxu0
    %v1295 = vadd.f32 0.0, %v1294
    %v1296 = vpop.f32.mrb[0].mxu0
    %v1297 = vpop.f32.mrb[0].mxu0
    %v1298 = vadd.f32 0.0, %v1297
    %v1299 = vpop.f32.mrb[0].mxu0
    %1300 = vmatprep.mubr.bf16.mxu0 0
    %1301 = vmatmul.mubr.bf16.gmra.mrb[0].mxu0 %v1226
    %v1302 = vpop.f32.mrb[0].mxu0
    %v1303 = vadd.f32 0.0, %v1302
    %v1304 = vpop.f32.mrb[0].mxu0
    %v1305 = vpop.f32.mrb[0].mxu0
    %v1306 = vadd.f32 0.0, %v1305
    %v1307 = vpop.f32.mrb[0].mxu0
    %1308 = vmatprep.mubr.bf16.mxu0 0
    %1309 = vmatmul.mubr.bf16.gmra.mrb[0].mxu0 %v1229
    %v1310 = vpop.f32.mrb[0].mxu0
    %v1311 = vadd.f32 0.0, %v1310
    %v1312 = vpop.f32.mrb[0].mxu0
    %v1313 = vpop.f32.mrb[0].mxu0
    %v1314 = vadd.f32 0.0, %v1313
    %v1315 = vpop.f32.mrb[0].mxu0
    %1316 = vmatprep.mubr.bf16.mxu0 0
    %1317 = vmatmul.mubr.bf16.gmra.mrb[0].mxu0 %v1232
    %v1318 = vpop.f32.mrb[0].mxu0
    %v1319 = vadd.f32 0.0, %v1318
    %v1320 = vpop.f32.mrb[0].mxu0
    %v1321 = vpop.f32.mrb[0].mxu0
    %v1322 = vadd.f32 0.0, %v1321
    %v1323 = vpop.f32.mrb[0].mxu0
    %1324 = vmatprep.mubr.bf16.mxu0 0
    %1325 = vmatmul.mubr.bf16.gmra.mrb[0].mxu0 %v1235
    %v1326 = vpop.f32.mrb[0].mxu0
    %v1327 = vadd.f32 0.0, %v1326
    %v1328 = vpop.f32.mrb[0].mxu0
    %v1329 = vpop.f32.mrb[0].mxu0
    %v1330 = vadd.f32 0.0, %v1329
    %v1331 = vpop.f32.mrb[0].mxu0
    %1332 = vmatprep.mubr.bf16.mxu0 0
    %1333 = vmatmul.mubr.bf16.gmra.mrb[0].mxu0 %v1238
    %v1334 = vpop.f32.mrb[0].mxu0
    %v1335 = vadd.f32 0.0, %v1334
    %v1336 = vpop.f32.mrb[0].mxu0
    %v1337 = vpop.f32.mrb[0].mxu0
    %v1338 = vadd.f32 0.0, %v1337
    %v1339 = vpop.f32.mrb[0].mxu0
    %1340 = vdwg.mxu0
    %v1341 = vunpack.c.l.b16 %v960
    %v1342 = vunpack.c.l.b16 %v973
    %v1343 = vunpack.c.l.b16 %v986
    %v1344 = vunpack.c.l.b16 %v999
    %v1345 = vunpack.c.l.b16 %v1012
    %v1346 = vunpack.c.l.b16 %v1025
    %v1347 = vunpack.c.l.b16 %v1038
    %v1348 = vunpack.c.l.b16 %v1051
    %v1349 = vunpack.c.l.b16 %v1064
    %v1350 = vunpack.c.l.b16 %v1077
    %v1351 = vunpack.c.l.b16 %v1090
    %v1352 = vunpack.c.l.b16 %v1103
    %v1353 = vunpack.c.l.b16 %v1116
    %v1354 = vunpack.c.l.b16 %v1129
    %v1355 = vunpack.c.l.b16 %v1142
    %v1356 = vunpack.c.l.b16 %v1155
    %v1357 = vpack.c.b16 %v1342, %v1341
    %v1358 = vpack.c.b16 %v1344, %v1343
    %v1359 = vpack.c.b16 %v1346, %v1345
    %v1360 = vpack.c.b16 %v1348, %v1347
    %v1361 = vpack.c.b16 %v1350, %v1349
    %v1362 = vpack.c.b16 %v1352, %v1351
    %v1363 = vpack.c.b16 %v1354, %v1353
    %v1364 = vpack.c.b16 %v1356, %v1355
    %v1366 = vsel %vm620, %v1357, 0
    %v1369 = vsel %vm620, %v1358, 0
    %v1372 = vsel %vm620, %v1359, 0
    %v1375 = vsel %vm620, %v1360, 0
    %v1378 = vsel %vm620, %v1361, 0
    %v1381 = vsel %vm620, %v1362, 0
    %v1384 = vsel %vm620, %v1363, 0
    %v1387 = vsel %vm620, %v1364, 0
    %v1390 = vsel %vm1240, %v1156, 0
    %1392 = vmatprep.subr.bf16.mxu0 0
    %1393 = vmatpush1.bf16.msra.mxu0 %v1390
    %1394 = vmatprep.subr.bf16.mxu0 0
    %1395 = vmatpush1.bf16.msra.mxu0 0
    %1396 = vmatprep.subr.bf16.mxu0 0
    %1397 = vmatpush1.bf16.msra.mxu0 0
    %1398 = vmatprep.subr.bf16.mxu0 0
    %1399 = vmatpush1.bf16.msra.mxu0 0
    %1400 = vmatprep.subr.bf16.mxu0 0
    %1401 = vmatpush1.bf16.msra.mxu0 0
    %1402 = vmatprep.subr.bf16.mxu0 0
    %1403 = vmatpush1.bf16.msra.mxu0 0
    %1404 = vmatprep.subr.bf16.mxu0 0
    %1405 = vmatpush1.bf16.msra.mxu0 0
    %1406 = vmatprep.subr.bf16.mxu0 0
    %1407 = vmatpush1.bf16.msra.mxu0 0
    %1408 = vmatprep.subr.bf16.mxu0 0
    %1409 = vmatpush1.bf16.msra.mxu0 0
    %1410 = vmatprep.subr.bf16.mxu0 0
    %1411 = vmatpush1.bf16.msra.mxu0 0
    %1412 = vmatprep.subr.bf16.mxu0 0
    %1413 = vmatpush1.bf16.msra.mxu0 0
    %1414 = vmatprep.subr.bf16.mxu0 0
    %1415 = vmatpush1.bf16.msra.mxu0 0
    %1416 = vmatprep.subr.bf16.mxu0 0
    %1417 = vmatpush1.bf16.msra.mxu0 0
    %1418 = vmatprep.subr.bf16.mxu0 0
    %1419 = vmatpush1.bf16.msra.mxu0 0
    %1420 = vmatprep.subr.bf16.mxu0 0
    %1421 = vmatpush1.bf16.msra.mxu0 0
    %1422 = vmatprep.subr.bf16.mxu0 0
    %1423 = vmatpush1.bf16.msra.mxu0 0
    %1424 = vmatprep.mubr.bf16.mxu0 0
    %1425 = vmatmul.mubr.bf16.gmra.mrb[0].mxu0 %v1366
    %v1426 = vpop.f32.mrb[0].mxu0
    %v1427 = vadd.f32 %v1279, %v1426
    %v1428 = vpop.f32.mrb[0].mxu0
    %v1429 = vpop.f32.mrb[0].mxu0
    %v1430 = vadd.f32 %v1282, %v1429
    %v1431 = vpop.f32.mrb[0].mxu0
    %1432 = vmatprep.mubr.bf16.mxu0 0
    %1433 = vmatmul.mubr.bf16.gmra.mrb[0].mxu0 %v1369
    %v1434 = vpop.f32.mrb[0].mxu0
    %v1435 = vadd.f32 %v1287, %v1434
    %v1436 = vpop.f32.mrb[0].mxu0
    %v1437 = vpop.f32.mrb[0].mxu0
    %v1438 = vadd.f32 %v1290, %v1437
    %v1439 = vpop.f32.mrb[0].mxu0
    %1440 = vmatprep.mubr.bf16.mxu0 0
    %1441 = vmatmul.mubr.bf16.gmra.mrb[0].mxu0 %v1372
    %v1442 = vpop.f32.mrb[0].mxu0
    %v1443 = vadd.f32 %v1295, %v1442
    %v1444 = vpop.f32.mrb[0].mxu0
    %v1445 = vpop.f32.mrb[0].mxu0
    %v1446 = vadd.f32 %v1298, %v1445
    %v1447 = vpop.f32.mrb[0].mxu0
    %1448 = vmatprep.mubr.bf16.mxu0 0
    %1449 = vmatmul.mubr.bf16.gmra.mrb[0].mxu0 %v1375
    %v1450 = vpop.f32.mrb[0].mxu0
    %v1451 = vadd.f32 %v1303, %v1450
    %v1452 = vpop.f32.mrb[0].mxu0
    %v1453 = vpop.f32.mrb[0].mxu0
    %v1454 = vadd.f32 %v1306, %v1453
    %v1455 = vpop.f32.mrb[0].mxu0
    %1456 = vmatprep.mubr.bf16.mxu0 0
    %1457 = vmatmul.mubr.bf16.gmra.mrb[0].mxu0 %v1378
    %v1458 = vpop.f32.mrb[0].mxu0
    %v1459 = vadd.f32 %v1311, %v1458
    %v1460 = vpop.f32.mrb[0].mxu0
    %v1461 = vpop.f32.mrb[0].mxu0
    %v1462 = vadd.f32 %v1314, %v1461
    %v1463 = vpop.f32.mrb[0].mxu0
    %1464 = vmatprep.mubr.bf16.mxu0 0
    %1465 = vmatmul.mubr.bf16.gmra.mrb[0].mxu0 %v1381
    %v1466 = vpop.f32.mrb[0].mxu0
    %v1467 = vadd.f32 %v1319, %v1466
    %v1468 = vpop.f32.mrb[0].mxu0
    %v1469 = vpop.f32.mrb[0].mxu0
    %v1470 = vadd.f32 %v1322, %v1469
    %v1471 = vpop.f32.mrb[0].mxu0
    %1472 = vmatprep.mubr.bf16.mxu0 0
    %1473 = vmatmul.mubr.bf16.gmra.mrb[0].mxu0 %v1384
    %v1474 = vpop.f32.mrb[0].mxu0
    %v1475 = vadd.f32 %v1327, %v1474
    %v1476 = vpop.f32.mrb[0].mxu0
    %v1477 = vpop.f32.mrb[0].mxu0
    %v1478 = vadd.f32 %v1330, %v1477
    %v1479 = vpop.f32.mrb[0].mxu0
    %1480 = vmatprep.mubr.bf16.mxu0 0
    %1481 = vmatmul.mubr.bf16.gmra.mrb[0].mxu0 %v1387
    %v1482 = vpop.f32.mrb[0].mxu0
    %v1483 = vadd.f32 %v1335, %v1482
    %v1484 = vpop.f32.mrb[0].mxu0
    %v1485 = vpop.f32.mrb[0].mxu0
    %v1486 = vadd.f32 %v1338, %v1485
    %v1487 = vpop.f32.mrb[0].mxu0
    %1488 = vdwg.mxu0
    %v1489 = vld [vmem:[%s848] sm:$0xf0]
    %v1490 = vld [vmem:[%s848 + $0x8] sm:$0xf0]
    %v1491 = vld [vmem:[%s848 + $0x10] sm:$0xf0]
    %v1492 = vld [vmem:[%s848 + $0x18] sm:$0xf0]
    %v1493 = vld [vmem:[%s848 + $0x20] sm:$0xf0]
    %v1494 = vld [vmem:[%s848 + $0x28] sm:$0xf0]
    %v1495 = vld [vmem:[%s848 + $0x30] sm:$0xf0]
    %v1496 = vld [vmem:[%s848 + $0x38] sm:$0xf0]
    %v1497 = vld [vmem:[%s848 + $0x120] sm:$0xf0]
    %v1498 = vld [vmem:[%s848 + $0x128] sm:$0xf0]
    %v1499 = vld [vmem:[%s848 + $0x130] sm:$0xf0]
    %v1500 = vld [vmem:[%s848 + $0x138] sm:$0xf0]
    %v1501 = vld [vmem:[%s848 + $0x140] sm:$0xf0]
    %v1502 = vld [vmem:[%s848 + $0x148] sm:$0xf0]
    %v1503 = vld [vmem:[%s848 + $0x150] sm:$0xf0]
    %v1504 = vld [vmem:[%s848 + $0x158] sm:$0xf0]
    %v1521 = vunpack.c.h.b16 %v1489
    %v1522 = vunpack.c.h.b16 %v1490
    %v1523 = vunpack.c.h.b16 %v1491
    %v1524 = vunpack.c.h.b16 %v1492
    %v1525 = vunpack.c.h.b16 %v1493
    %v1526 = vunpack.c.h.b16 %v1494
    %v1527 = vunpack.c.h.b16 %v1495
    %v1528 = vunpack.c.h.b16 %v1496
    %v1529 = vunpack.c.h.b16 %v1497
    %v1530 = vunpack.c.h.b16 %v1498
    %v1531 = vunpack.c.h.b16 %v1499
    %v1532 = vunpack.c.h.b16 %v1500
    %v1533 = vunpack.c.h.b16 %v1501
    %v1534 = vunpack.c.h.b16 %v1502
    %v1535 = vunpack.c.h.b16 %v1503
    %v1536 = vunpack.c.h.b16 %v1504
    %s1537 = scalar_lea.vmem %s1, 4
    %v1538 = vld [vmem:[%s1537] sm:$0x3]
    %v1539 = vpack.c.b16 %v1522, %v1521
    %v1540 = vpack.c.b16 %v1524, %v1523
    %v1541 = vpack.c.b16 %v1526, %v1525
    %v1542 = vpack.c.b16 %v1528, %v1527
    %v1543 = vpack.c.b16 %v1530, %v1529
    %v1544 = vpack.c.b16 %v1532, %v1531
    %v1545 = vpack.c.b16 %v1534, %v1533
    %v1546 = vpack.c.b16 %v1536, %v1535
    %v1548 = vsel %vm620, %v1539, 0
    %v1551 = vsel %vm620, %v1540, 0
    %v1554 = vsel %vm620, %v1541, 0
    %v1557 = vsel %vm620, %v1542, 0
    %v1560 = vsel %vm620, %v1543, 0
    %v1563 = vsel %vm620, %v1544, 0
    %v1566 = vsel %vm620, %v1545, 0
    %v1569 = vsel %vm620, %v1546, 0
    %v1572 = vsel %vm1240, %v1538, 0
    %1574 = vmatprep.subr.bf16.mxu0 0
    %1575 = vmatpush1.bf16.msra.mxu0 %v1572
    %1576 = vmatprep.subr.bf16.mxu0 0
    %1577 = vmatpush1.bf16.msra.mxu0 0
    %1578 = vmatprep.subr.bf16.mxu0 0
    %1579 = vmatpush1.bf16.msra.mxu0 0
    %1580 = vmatprep.subr.bf16.mxu0 0
    %1581 = vmatpush1.bf16.msra.mxu0 0
    %1582 = vmatprep.subr.bf16.mxu0 0
    %1583 = vmatpush1.bf16.msra.mxu0 0
    %1584 = vmatprep.subr.bf16.mxu0 0
    %1585 = vmatpush1.bf16.msra.mxu0 0
    %1586 = vmatprep.subr.bf16.mxu0 0
    %1587 = vmatpush1.bf16.msra.mxu0 0
    %1588 = vmatprep.subr.bf16.mxu0 0
    %1589 = vmatpush1.bf16.msra.mxu0 0
    %1590 = vmatprep.subr.bf16.mxu0 0
    %1591 = vmatpush1.bf16.msra.mxu0 0
    %1592 = vmatprep.subr.bf16.mxu0 0
    %1593 = vmatpush1.bf16.msra.mxu0 0
    %1594 = vmatprep.subr.bf16.mxu0 0
    %1595 = vmatpush1.bf16.msra.mxu0 0
    %1596 = vmatprep.subr.bf16.mxu0 0
    %1597 = vmatpush1.bf16.msra.mxu0 0
    %1598 = vmatprep.subr.bf16.mxu0 0
    %1599 = vmatpush1.bf16.msra.mxu0 0
    %1600 = vmatprep.subr.bf16.mxu0 0
    %1601 = vmatpush1.bf16.msra.mxu0 0
    %1602 = vmatprep.subr.bf16.mxu0 0
    %1603 = vmatpush1.bf16.msra.mxu0 0
    %1604 = vmatprep.subr.bf16.mxu0 0
    %1605 = vmatpush1.bf16.msra.mxu0 0
    %1606 = vmatprep.mubr.bf16.mxu0 0
    %1607 = vmatmul.mubr.bf16.gmra.mrb[0].mxu0 %v1548
    %v1608 = vpop.f32.mrb[0].mxu0
    %v1609 = vadd.f32 0.0, %v1608
    %v1610 = vpop.f32.mrb[0].mxu0
    %v1611 = vpop.f32.mrb[0].mxu0
    %v1612 = vadd.f32 0.0, %v1611
    %v1613 = vpop.f32.mrb[0].mxu0
    %1614 = vmatprep.mubr.bf16.mxu0 0
    %1615 = vmatmul.mubr.bf16.gmra.mrb[0].mxu0 %v1551
    %v1616 = vpop.f32.mrb[0].mxu0
    %v1617 = vadd.f32 0.0, %v1616
    %v1618 = vpop.f32.mrb[0].mxu0
    %v1619 = vpop.f32.mrb[0].mxu0
    %v1620 = vadd.f32 0.0, %v1619
    %v1621 = vpop.f32.mrb[0].mxu0
    %1622 = vmatprep.mubr.bf16.mxu0 0
    %1623 = vmatmul.mubr.bf16.gmra.mrb[0].mxu0 %v1554
    %v1624 = vpop.f32.mrb[0].mxu0
    %v1625 = vadd.f32 0.0, %v1624
    %v1626 = vpop.f32.mrb[0].mxu0
    %v1627 = vpop.f32.mrb[0].mxu0
    %v1628 = vadd.f32 0.0, %v1627
    %v1629 = vpop.f32.mrb[0].mxu0
    %1630 = vmatprep.mubr.bf16.mxu0 0
    %1631 = vmatmul.mubr.bf16.gmra.mrb[0].mxu0 %v1557
    %v1632 = vpop.f32.mrb[0].mxu0
    %v1633 = vadd.f32 0.0, %v1632
    %v1634 = vpop.f32.mrb[0].mxu0
    %v1635 = vpop.f32.mrb[0].mxu0
    %v1636 = vadd.f32 0.0, %v1635
    %v1637 = vpop.f32.mrb[0].mxu0
    %1638 = vmatprep.mubr.bf16.mxu0 0
    %1639 = vmatmul.mubr.bf16.gmra.mrb[0].mxu0 %v1560
    %v1640 = vpop.f32.mrb[0].mxu0
    %v1641 = vadd.f32 0.0, %v1640
    %v1642 = vpop.f32.mrb[0].mxu0
    %v1643 = vpop.f32.mrb[0].mxu0
    %v1644 = vadd.f32 0.0, %v1643
    %v1645 = vpop.f32.mrb[0].mxu0
    %1646 = vmatprep.mubr.bf16.mxu0 0
    %1647 = vmatmul.mubr.bf16.gmra.mrb[0].mxu0 %v1563
    %v1648 = vpop.f32.mrb[0].mxu0
    %v1649 = vadd.f32 0.0, %v1648
    %v1650 = vpop.f32.mrb[0].mxu0
    %v1651 = vpop.f32.mrb[0].mxu0
    %v1652 = vadd.f32 0.0, %v1651
    %v1653 = vpop.f32.mrb[0].mxu0
    %1654 = vmatprep.mubr.bf16.mxu0 0
    %1655 = vmatmul.mubr.bf16.gmra.mrb[0].mxu0 %v1566
    %v1656 = vpop.f32.mrb[0].mxu0
    %v1657 = vadd.f32 0.0, %v1656
    %v1658 = vpop.f32.mrb[0].mxu0
    %v1659 = vpop.f32.mrb[0].mxu0
    %v1660 = vadd.f32 0.0, %v1659
    %v1661 = vpop.f32.mrb[0].mxu0
    %1662 = vmatprep.mubr.bf16.mxu0 0
    %1663 = vmatmul.mubr.bf16.gmra.mrb[0].mxu0 %v1569
    %v1664 = vpop.f32.mrb[0].mxu0
    %v1665 = vadd.f32 0.0, %v1664
    %v1666 = vpop.f32.mrb[0].mxu0
    %v1667 = vpop.f32.mrb[0].mxu0
    %v1668 = vadd.f32 0.0, %v1667
    %v1669 = vpop.f32.mrb[0].mxu0
    %1670 = vdwg.mxu0
    %v1671 = vadd.f32 %v1427, %v1609
    %v1672 = vadd.f32 %v1430, %v1612
    %v1673 = vadd.f32 %v1435, %v1617
    %v1674 = vadd.f32 %v1438, %v1620
    %v1675 = vadd.f32 %v1443, %v1625
    %v1676 = vadd.f32 %v1446, %v1628
    %v1677 = vadd.f32 %v1451, %v1633
    %v1678 = vadd.f32 %v1454, %v1636
    %v1679 = vadd.f32 %v1459, %v1641
    %v1680 = vadd.f32 %v1462, %v1644
    %v1681 = vadd.f32 %v1467, %v1649
    %v1682 = vadd.f32 %v1470, %v1652
    %v1683 = vadd.f32 %v1475, %v1657
    %v1684 = vadd.f32 %v1478, %v1660
    %v1685 = vadd.f32 %v1483, %v1665
    %v1686 = vadd.f32 %v1486, %v1668
    %s1687 = scalar_lea.vmem [#allocation2], 80
    %v1688 = vld [vmem:[%s1687] sm:$0xf8]
    %v1689 = vld [vmem:[%s1687 + $0x8] sm:$0xf8]
    %v1690 = vld [vmem:[%s1687 + $0x10] sm:$0xf8]
    %v1691 = vld [vmem:[%s1687 + $0x18] sm:$0xf8]
    %v1692 = vld [vmem:[%s1687 + $0x20] sm:$0xf8]
    %v1693 = vld [vmem:[%s1687 + $0x28] sm:$0xf8]
    %v1694 = vld [vmem:[%s1687 + $0x30] sm:$0xf8]
    %v1695 = vld [vmem:[%s1687 + $0x38] sm:$0xf8]
    %v1696 = vld [vmem:[%s1687 + $0x120] sm:$0xf8]
    %v1697 = vld [vmem:[%s1687 + $0x128] sm:$0xf8]
    %v1698 = vld [vmem:[%s1687 + $0x130] sm:$0xf8]
    %v1699 = vld [vmem:[%s1687 + $0x138] sm:$0xf8]
    %v1700 = vld [vmem:[%s1687 + $0x140] sm:$0xf8]
    %v1701 = vld [vmem:[%s1687 + $0x148] sm:$0xf8]
    %v1702 = vld [vmem:[%s1687 + $0x150] sm:$0xf8]
    %v1703 = vld [vmem:[%s1687 + $0x158] sm:$0xf8]
    %v1720 = vunpack.c.l.b16 %v1688
    %v1721 = vunpack.c.h.b16 %v1688
    %v1722 = vunpack.c.l.b16 %v1689
    %v1723 = vunpack.c.h.b16 %v1689
    %v1724 = vunpack.c.l.b16 %v1690
    %v1725 = vunpack.c.h.b16 %v1690
    %v1726 = vunpack.c.l.b16 %v1691
    %v1727 = vunpack.c.h.b16 %v1691
    %v1728 = vunpack.c.l.b16 %v1692
    %v1729 = vunpack.c.h.b16 %v1692
    %v1730 = vunpack.c.l.b16 %v1693
    %v1731 = vunpack.c.h.b16 %v1693
    %v1732 = vunpack.c.l.b16 %v1694
    %v1733 = vunpack.c.h.b16 %v1694
    %v1734 = vunpack.c.l.b16 %v1695
    %v1735 = vunpack.c.h.b16 %v1695
    %v1736 = vunpack.c.l.b16 %v1696
    %v1737 = vunpack.c.h.b16 %v1696
    %v1738 = vunpack.c.l.b16 %v1697
    %v1739 = vunpack.c.h.b16 %v1697
    %v1740 = vunpack.c.l.b16 %v1698
    %v1741 = vunpack.c.h.b16 %v1698
    %v1742 = vunpack.c.l.b16 %v1699
    %v1743 = vunpack.c.h.b16 %v1699
    %v1744 = vunpack.c.l.b16 %v1700
    %v1745 = vunpack.c.h.b16 %v1700
    %v1746 = vunpack.c.l.b16 %v1701
    %v1747 = vunpack.c.h.b16 %v1701
    %v1748 = vunpack.c.l.b16 %v1702
    %v1749 = vunpack.c.h.b16 %v1702
    %v1750 = vunpack.c.l.b16 %v1703
    %v1751 = vunpack.c.h.b16 %v1703
    %v1752 = vpack.c.b16 %v1720, %v1720
    %v1753 = vpack.c.b16 %v1721, %v1721
    %v1754 = vpack.c.b16 %v1722, %v1722
    %v1755 = vpack.c.b16 %v1723, %v1723
    %v1756 = vpack.c.b16 %v1724, %v1724
    %v1757 = vpack.c.b16 %v1725, %v1725
    %v1758 = vpack.c.b16 %v1726, %v1726
    %v1759 = vpack.c.b16 %v1727, %v1727
    %v1760 = vpack.c.b16 %v1728, %v1728
    %v1761 = vpack.c.b16 %v1729, %v1729
    %v1762 = vpack.c.b16 %v1730, %v1730
    %v1763 = vpack.c.b16 %v1731, %v1731
    %v1764 = vpack.c.b16 %v1732, %v1732
    %v1765 = vpack.c.b16 %v1733, %v1733
    %v1766 = vpack.c.b16 %v1734, %v1734
    %v1767 = vpack.c.b16 %v1735, %v1735
    %v1768 = vpack.c.b16 %v1736, %v1736
    %v1769 = vpack.c.b16 %v1737, %v1737
    %v1770 = vpack.c.b16 %v1738, %v1738
    %v1771 = vpack.c.b16 %v1739, %v1739
    %v1772 = vpack.c.b16 %v1740, %v1740
    %v1773 = vpack.c.b16 %v1741, %v1741
    %v1774 = vpack.c.b16 %v1742, %v1742
    %v1775 = vpack.c.b16 %v1743, %v1743
    %v1776 = vpack.c.b16 %v1744, %v1744
    %v1777 = vpack.c.b16 %v1745, %v1745
    %v1778 = vpack.c.b16 %v1746, %v1746
    %v1779 = vpack.c.b16 %v1747, %v1747
    %v1780 = vpack.c.b16 %v1748, %v1748
    %v1781 = vpack.c.b16 %v1749, %v1749
    %v1782 = vpack.c.b16 %v1750, %v1750
    %v1783 = vpack.c.b16 %v1751, %v1751
    %v1785 = vshrl.u32 %v1752, 16
    %v1787 = vrot.slane %v1785, 7
    %v1788 = vrot.slane %v1787, 4
    %v1790 = vshrl.u32 %v1753, 16
    %v1792 = vrot.slane %v1790, 7
    %v1793 = vshll.u32 %v1753, 16
    %v1795 = vor.u32 %v1792, %v1793
    %v1796 = vsel %vm947, %v1788, %v1795
    %v1798 = vshrl.u32 %v1754, 16
    %v1800 = vrot.slane %v1798, 7
    %v1801 = vrot.slane %v1800, 4
    %v1803 = vshrl.u32 %v1755, 16
    %v1805 = vrot.slane %v1803, 7
    %v1806 = vshll.u32 %v1755, 16
    %v1808 = vor.u32 %v1805, %v1806
    %v1809 = vsel %vm947, %v1801, %v1808
    %v1811 = vshrl.u32 %v1756, 16
    %v1813 = vrot.slane %v1811, 7
    %v1814 = vrot.slane %v1813, 4
    %v1816 = vshrl.u32 %v1757, 16
    %v1818 = vrot.slane %v1816, 7
    %v1819 = vshll.u32 %v1757, 16
    %v1821 = vor.u32 %v1818, %v1819
    %v1822 = vsel %vm947, %v1814, %v1821
    %v1824 = vshrl.u32 %v1758, 16
    %v1826 = vrot.slane %v1824, 7
    %v1827 = vrot.slane %v1826, 4
    %v1829 = vshrl.u32 %v1759, 16
    %v1831 = vrot.slane %v1829, 7
    %v1832 = vshll.u32 %v1759, 16
    %v1834 = vor.u32 %v1831, %v1832
    %v1835 = vsel %vm947, %v1827, %v1834
    %v1837 = vshrl.u32 %v1760, 16
    %v1839 = vrot.slane %v1837, 7
    %v1840 = vrot.slane %v1839, 4
    %v1842 = vshrl.u32 %v1761, 16
    %v1844 = vrot.slane %v1842, 7
    %v1845 = vshll.u32 %v1761, 16
    %v1847 = vor.u32 %v1844, %v1845
    %v1848 = vsel %vm947, %v1840, %v1847
    %v1850 = vshrl.u32 %v1762, 16
    %v1852 = vrot.slane %v1850, 7
    %v1853 = vrot.slane %v1852, 4
    %v1855 = vshrl.u32 %v1763, 16
    %v1857 = vrot.slane %v1855, 7
    %v1858 = vshll.u32 %v1763, 16
    %v1860 = vor.u32 %v1857, %v1858
    %v1861 = vsel %vm947, %v1853, %v1860
    %v1863 = vshrl.u32 %v1764, 16
    %v1865 = vrot.slane %v1863, 7
    %v1866 = vrot.slane %v1865, 4
    %v1868 = vshrl.u32 %v1765, 16
    %v1870 = vrot.slane %v1868, 7
    %v1871 = vshll.u32 %v1765, 16
    %v1873 = vor.u32 %v1870, %v1871
    %v1874 = vsel %vm947, %v1866, %v1873
    %v1876 = vshrl.u32 %v1766, 16
    %v1878 = vrot.slane %v1876, 7
    %v1879 = vrot.slane %v1878, 4
    %v1881 = vshrl.u32 %v1767, 16
    %v1883 = vrot.slane %v1881, 7
    %v1884 = vshll.u32 %v1767, 16
    %v1886 = vor.u32 %v1883, %v1884
    %v1887 = vsel %vm947, %v1879, %v1886
    %v1889 = vshrl.u32 %v1768, 16
    %v1891 = vrot.slane %v1889, 7
    %v1892 = vrot.slane %v1891, 4
    %v1894 = vshrl.u32 %v1769, 16
    %v1896 = vrot.slane %v1894, 7
    %v1897 = vshll.u32 %v1769, 16
    %v1899 = vor.u32 %v1896, %v1897
    %v1900 = vsel %vm947, %v1892, %v1899
    %v1902 = vshrl.u32 %v1770, 16
    %v1904 = vrot.slane %v1902, 7
    %v1905 = vrot.slane %v1904, 4
    %v1907 = vshrl.u32 %v1771, 16
    %v1909 = vrot.slane %v1907, 7
    %v1910 = vshll.u32 %v1771, 16
    %v1912 = vor.u32 %v1909, %v1910
    %v1913 = vsel %vm947, %v1905, %v1912
    %v1915 = vshrl.u32 %v1772, 16
    %v1917 = vrot.slane %v1915, 7
    %v1918 = vrot.slane %v1917, 4
    %v1920 = vshrl.u32 %v1773, 16
    %v1922 = vrot.slane %v1920, 7
    %v1923 = vshll.u32 %v1773, 16
    %v1925 = vor.u32 %v1922, %v1923
    %v1926 = vsel %vm947, %v1918, %v1925
    %v1928 = vshrl.u32 %v1774, 16
    %v1930 = vrot.slane %v1928, 7
    %v1931 = vrot.slane %v1930, 4
    %v1933 = vshrl.u32 %v1775, 16
    %v1935 = vrot.slane %v1933, 7
    %v1936 = vshll.u32 %v1775, 16
    %v1938 = vor.u32 %v1935, %v1936
    %v1939 = vsel %vm947, %v1931, %v1938
    %v1941 = vshrl.u32 %v1776, 16
    %v1943 = vrot.slane %v1941, 7
    %v1944 = vrot.slane %v1943, 4
    %v1946 = vshrl.u32 %v1777, 16
    %v1948 = vrot.slane %v1946, 7
    %v1949 = vshll.u32 %v1777, 16
    %v1951 = vor.u32 %v1948, %v1949
    %v1952 = vsel %vm947, %v1944, %v1951
    %v1954 = vshrl.u32 %v1778, 16
    %v1956 = vrot.slane %v1954, 7
    %v1957 = vrot.slane %v1956, 4
    %v1959 = vshrl.u32 %v1779, 16
    %v1961 = vrot.slane %v1959, 7
    %v1962 = vshll.u32 %v1779, 16
    %v1964 = vor.u32 %v1961, %v1962
    %v1965 = vsel %vm947, %v1957, %v1964
    %v1967 = vshrl.u32 %v1780, 16
    %v1969 = vrot.slane %v1967, 7
    %v1970 = vrot.slane %v1969, 4
    %v1972 = vshrl.u32 %v1781, 16
    %v1974 = vrot.slane %v1972, 7
    %v1975 = vshll.u32 %v1781, 16
    %v1977 = vor.u32 %v1974, %v1975
    %v1978 = vsel %vm947, %v1970, %v1977
    %v1980 = vshrl.u32 %v1782, 16
    %v1982 = vrot.slane %v1980, 7
    %v1983 = vrot.slane %v1982, 4
    %v1985 = vshrl.u32 %v1783, 16
    %v1987 = vrot.slane %v1985, 7
    %v1988 = vshll.u32 %v1783, 16
    %v1990 = vor.u32 %v1987, %v1988
    %v1991 = vsel %vm947, %v1983, %v1990
    %s1992 = scalar_lea.vmem %s1, 6
    %v1993 = vld [vmem:[%s1992] sm:$0x3]
    %v1994 = vunpack.c.l.b16 %v1796
    %v1995 = vunpack.c.l.b16 %v1809
    %v1996 = vunpack.c.l.b16 %v1822
    %v1997 = vunpack.c.l.b16 %v1835
    %v1998 = vunpack.c.l.b16 %v1848
    %v1999 = vunpack.c.l.b16 %v1861
    %v2000 = vunpack.c.l.b16 %v1874
    %v2001 = vunpack.c.l.b16 %v1887
    %v2002 = vunpack.c.l.b16 %v1900
    %v2003 = vunpack.c.l.b16 %v1913
    %v2004 = vunpack.c.l.b16 %v1926
    %v2005 = vunpack.c.l.b16 %v1939
    %v2006 = vunpack.c.l.b16 %v1952
    %v2007 = vunpack.c.l.b16 %v1965
    %v2008 = vunpack.c.l.b16 %v1978
    %v2009 = vunpack.c.l.b16 %v1991
    %v2010 = vpack.c.b16 %v1995, %v1994
    %v2011 = vpack.c.b16 %v1997, %v1996
    %v2012 = vpack.c.b16 %v1999, %v1998
    %v2013 = vpack.c.b16 %v2001, %v2000
    %v2014 = vpack.c.b16 %v2003, %v2002
    %v2015 = vpack.c.b16 %v2005, %v2004
    %v2016 = vpack.c.b16 %v2007, %v2006
    %v2017 = vpack.c.b16 %v2009, %v2008
    %v2019 = vsel %vm620, %v2010, 0
    %v2022 = vsel %vm620, %v2011, 0
    %v2025 = vsel %vm620, %v2012, 0
    %v2028 = vsel %vm620, %v2013, 0
    %v2031 = vsel %vm620, %v2014, 0
    %v2034 = vsel %vm620, %v2015, 0
    %v2037 = vsel %vm620, %v2016, 0
    %v2040 = vsel %vm620, %v2017, 0
    %v2043 = vsel %vm1240, %v1993, 0
    %2045 = vmatprep.subr.bf16.mxu0 0
    %2046 = vmatpush1.bf16.msra.mxu0 %v2043
    %2047 = vmatprep.subr.bf16.mxu0 0
    %2048 = vmatpush1.bf16.msra.mxu0 0
    %2049 = vmatprep.subr.bf16.mxu0 0
    %2050 = vmatpush1.bf16.msra.mxu0 0
    %2051 = vmatprep.subr.bf16.mxu0 0
    %2052 = vmatpush1.bf16.msra.mxu0 0
    %2053 = vmatprep.subr.bf16.mxu0 0
    %2054 = vmatpush1.bf16.msra.mxu0 0
    %2055 = vmatprep.subr.bf16.mxu0 0
    %2056 = vmatpush1.bf16.msra.mxu0 0
    %2057 = vmatprep.subr.bf16.mxu0 0
    %2058 = vmatpush1.bf16.msra.mxu0 0
    %2059 = vmatprep.subr.bf16.mxu0 0
    %2060 = vmatpush1.bf16.msra.mxu0 0
    %2061 = vmatprep.subr.bf16.mxu0 0
    %2062 = vmatpush1.bf16.msra.mxu0 0
    %2063 = vmatprep.subr.bf16.mxu0 0
    %2064 = vmatpush1.bf16.msra.mxu0 0
    %2065 = vmatprep.subr.bf16.mxu0 0
    %2066 = vmatpush1.bf16.msra.mxu0 0
    %2067 = vmatprep.subr.bf16.mxu0 0
    %2068 = vmatpush1.bf16.msra.mxu0 0
    %2069 = vmatprep.subr.bf16.mxu0 0
    %2070 = vmatpush1.bf16.msra.mxu0 0
    %2071 = vmatprep.subr.bf16.mxu0 0
    %2072 = vmatpush1.bf16.msra.mxu0 0
    %2073 = vmatprep.subr.bf16.mxu0 0
    %2074 = vmatpush1.bf16.msra.mxu0 0
    %2075 = vmatprep.subr.bf16.mxu0 0
    %2076 = vmatpush1.bf16.msra.mxu0 0
    %2077 = vmatprep.mubr.bf16.mxu0 0
    %2078 = vmatmul.mubr.bf16.gmra.mrb[0].mxu0 %v2019
    %v2079 = vpop.f32.mrb[0].mxu0
    %v2080 = vadd.f32 0.0, %v2079
    %v2081 = vpop.f32.mrb[0].mxu0
    %v2082 = vpop.f32.mrb[0].mxu0
    %v2083 = vadd.f32 0.0, %v2082
    %v2084 = vpop.f32.mrb[0].mxu0
    %2085 = vmatprep.mubr.bf16.mxu0 0
    %2086 = vmatmul.mubr.bf16.gmra.mrb[0].mxu0 %v2022
    %v2087 = vpop.f32.mrb[0].mxu0
    %v2088 = vadd.f32 0.0, %v2087
    %v2089 = vpop.f32.mrb[0].mxu0
    %v2090 = vpop.f32.mrb[0].mxu0
    %v2091 = vadd.f32 0.0, %v2090
    %v2092 = vpop.f32.mrb[0].mxu0
    %2093 = vmatprep.mubr.bf16.mxu0 0
    %2094 = vmatmul.mubr.bf16.gmra.mrb[0].mxu0 %v2025
    %v2095 = vpop.f32.mrb[0].mxu0
    %v2096 = vadd.f32 0.0, %v2095
    %v2097 = vpop.f32.mrb[0].mxu0
    %v2098 = vpop.f32.mrb[0].mxu0
    %v2099 = vadd.f32 0.0, %v2098
    %v2100 = vpop.f32.mrb[0].mxu0
    %2101 = vmatprep.mubr.bf16.mxu0 0
    %2102 = vmatmul.mubr.bf16.gmra.mrb[0].mxu0 %v2028
    %v2103 = vpop.f32.mrb[0].mxu0
    %v2104 = vadd.f32 0.0, %v2103
    %v2105 = vpop.f32.mrb[0].mxu0
    %v2106 = vpop.f32.mrb[0].mxu0
    %v2107 = vadd.f32 0.0, %v2106
    %v2108 = vpop.f32.mrb[0].mxu0
    %2109 = vmatprep.mubr.bf16.mxu0 0
    %2110 = vmatmul.mubr.bf16.gmra.mrb[0].mxu0 %v2031
    %v2111 = vpop.f32.mrb[0].mxu0
    %v2112 = vadd.f32 0.0, %v2111
    %v2113 = vpop.f32.mrb[0].mxu0
    %v2114 = vpop.f32.mrb[0].mxu0
    %v2115 = vadd.f32 0.0, %v2114
    %v2116 = vpop.f32.mrb[0].mxu0
    %2117 = vmatprep.mubr.bf16.mxu0 0
    %2118 = vmatmul.mubr.bf16.gmra.mrb[0].mxu0 %v2034
    %v2119 = vpop.f32.mrb[0].mxu0
    %v2120 = vadd.f32 0.0, %v2119
    %v2121 = vpop.f32.mrb[0].mxu0
    %v2122 = vpop.f32.mrb[0].mxu0
    %v2123 = vadd.f32 0.0, %v2122
    %v2124 = vpop.f32.mrb[0].mxu0
    %2125 = vmatprep.mubr.bf16.mxu0 0
    %2126 = vmatmul.mubr.bf16.gmra.mrb[0].mxu0 %v2037
    %v2127 = vpop.f32.mrb[0].mxu0
    %v2128 = vadd.f32 0.0, %v2127
    %v2129 = vpop.f32.mrb[0].mxu0
    %v2130 = vpop.f32.mrb[0].mxu0
    %v2131 = vadd.f32 0.0, %v2130
    %v2132 = vpop.f32.mrb[0].mxu0
    %2133 = vmatprep.mubr.bf16.mxu0 0
    %2134 = vmatmul.mubr.bf16.gmra.mrb[0].mxu0 %v2040
    %v2135 = vpop.f32.mrb[0].mxu0
    %v2136 = vadd.f32 0.0, %v2135
    %v2137 = vpop.f32.mrb[0].mxu0
    %v2138 = vpop.f32.mrb[0].mxu0
    %v2139 = vadd.f32 0.0, %v2138
    %v2140 = vpop.f32.mrb[0].mxu0
    %2141 = vdwg.mxu0
    %v2142 = vadd.f32 %v1671, %v2080
    %v2143 = vadd.f32 %v1672, %v2083
    %v2144 = vadd.f32 %v1673, %v2088
    %v2145 = vadd.f32 %v1674, %v2091
    %v2146 = vadd.f32 %v1675, %v2096
    %v2147 = vadd.f32 %v1676, %v2099
    %v2148 = vadd.f32 %v1677, %v2104
    %v2149 = vadd.f32 %v1678, %v2107
    %v2150 = vadd.f32 %v1679, %v2112
    %v2151 = vadd.f32 %v1680, %v2115
    %v2152 = vadd.f32 %v1681, %v2120
    %v2153 = vadd.f32 %v1682, %v2123
    %v2154 = vadd.f32 %v1683, %v2128
    %v2155 = vadd.f32 %v1684, %v2131
    %v2156 = vadd.f32 %v1685, %v2136
    %v2157 = vadd.f32 %v1686, %v2139
    %v2158 = vld [vmem:[%s554] sm:$0xf0]
    %v2159 = vld [vmem:[%s554 + $0x8] sm:$0xf0]
    %v2160 = vld [vmem:[%s554 + $0x10] sm:$0xf0]
    %v2161 = vld [vmem:[%s554 + $0x18] sm:$0xf0]
    %v2162 = vld [vmem:[%s554 + $0x20] sm:$0xf0]
    %v2163 = vld [vmem:[%s554 + $0x28] sm:$0xf0]
    %v2164 = vld [vmem:[%s554 + $0x30] sm:$0xf0]
    %v2165 = vld [vmem:[%s554 + $0x38] sm:$0xf0]
    %v2166 = vld [vmem:[%s554 + $0x120] sm:$0xf0]
    %v2167 = vld [vmem:[%s554 + $0x128] sm:$0xf0]
    %v2168 = vld [vmem:[%s554 + $0x130] sm:$0xf0]
    %v2169 = vld [vmem:[%s554 + $0x138] sm:$0xf0]
    %v2170 = vld [vmem:[%s554 + $0x140] sm:$0xf0]
    %v2171 = vld [vmem:[%s554 + $0x148] sm:$0xf0]
    %v2172 = vld [vmem:[%s554 + $0x150] sm:$0xf0]
    %v2173 = vld [vmem:[%s554 + $0x158] sm:$0xf0]
    %v2190 = vunpack.c.h.b16 %v2158
    %v2191 = vunpack.c.h.b16 %v2159
    %v2192 = vunpack.c.h.b16 %v2160
    %v2193 = vunpack.c.h.b16 %v2161
    %v2194 = vunpack.c.h.b16 %v2162
    %v2195 = vunpack.c.h.b16 %v2163
    %v2196 = vunpack.c.h.b16 %v2164
    %v2197 = vunpack.c.h.b16 %v2165
    %v2198 = vunpack.c.h.b16 %v2166
    %v2199 = vunpack.c.h.b16 %v2167
    %v2200 = vunpack.c.h.b16 %v2168
    %v2201 = vunpack.c.h.b16 %v2169
    %v2202 = vunpack.c.h.b16 %v2170
    %v2203 = vunpack.c.h.b16 %v2171
    %v2204 = vunpack.c.h.b16 %v2172
    %v2205 = vunpack.c.h.b16 %v2173
    %s2206 = scalar_lea.vmem %s1, 8
    %v2207 = vld [vmem:[%s2206] sm:$0x3]
    %v2208 = vpack.c.b16 %v2191, %v2190
    %v2209 = vpack.c.b16 %v2193, %v2192
    %v2210 = vpack.c.b16 %v2195, %v2194
    %v2211 = vpack.c.b16 %v2197, %v2196
    %v2212 = vpack.c.b16 %v2199, %v2198
    %v2213 = vpack.c.b16 %v2201, %v2200
    %v2214 = vpack.c.b16 %v2203, %v2202
    %v2215 = vpack.c.b16 %v2205, %v2204
    %v2217 = vsel %vm620, %v2208, 0
    %v2220 = vsel %vm620, %v2209, 0
    %v2223 = vsel %vm620, %v2210, 0
    %v2226 = vsel %vm620, %v2211, 0
    %v2229 = vsel %vm620, %v2212, 0
    %v2232 = vsel %vm620, %v2213, 0
    %v2235 = vsel %vm620, %v2214, 0
    %v2238 = vsel %vm620, %v2215, 0
    %v2241 = vsel %vm1240, %v2207, 0
    %2243 = vmatprep.subr.bf16.mxu0 0
    %2244 = vmatpush1.bf16.msra.mxu0 %v2241
    %2245 = vmatprep.subr.bf16.mxu0 0
    %2246 = vmatpush1.bf16.msra.mxu0 0
    %2247 = vmatprep.subr.bf16.mxu0 0
    %2248 = vmatpush1.bf16.msra.mxu0 0
    %2249 = vmatprep.subr.bf16.mxu0 0
    %2250 = vmatpush1.bf16.msra.mxu0 0
    %2251 = vmatprep.subr.bf16.mxu0 0
    %2252 = vmatpush1.bf16.msra.mxu0 0
    %2253 = vmatprep.subr.bf16.mxu0 0
    %2254 = vmatpush1.bf16.msra.mxu0 0
    %2255 = vmatprep.subr.bf16.mxu0 0
    %2256 = vmatpush1.bf16.msra.mxu0 0
    %2257 = vmatprep.subr.bf16.mxu0 0
    %2258 = vmatpush1.bf16.msra.mxu0 0
    %2259 = vmatprep.subr.bf16.mxu0 0
    %2260 = vmatpush1.bf16.msra.mxu0 0
    %2261 = vmatprep.subr.bf16.mxu0 0
    %2262 = vmatpush1.bf16.msra.mxu0 0
    %2263 = vmatprep.subr.bf16.mxu0 0
    %2264 = vmatpush1.bf16.msra.mxu0 0
    %2265 = vmatprep.subr.bf16.mxu0 0
    %2266 = vmatpush1.bf16.msra.mxu0 0
    %2267 = vmatprep.subr.bf16.mxu0 0
    %2268 = vmatpush1.bf16.msra.mxu0 0
    %2269 = vmatprep.subr.bf16.mxu0 0
    %2270 = vmatpush1.bf16.msra.mxu0 0
    %2271 = vmatprep.subr.bf16.mxu0 0
    %2272 = vmatpush1.bf16.msra.mxu0 0
    %2273 = vmatprep.subr.bf16.mxu0 0
    %2274 = vmatpush1.bf16.msra.mxu0 0
    %2275 = vmatprep.mubr.bf16.mxu0 0
    %2276 = vmatmul.mubr.bf16.gmra.mrb[0].mxu0 %v2217
    %v2277 = vpop.f32.mrb[0].mxu0
    %v2278 = vadd.f32 0.0, %v2277
    %v2279 = vpop.f32.mrb[0].mxu0
    %v2280 = vpop.f32.mrb[0].mxu0
    %v2281 = vadd.f32 0.0, %v2280
    %v2282 = vpop.f32.mrb[0].mxu0
    %2283 = vmatprep.mubr.bf16.mxu0 0
    %2284 = vmatmul.mubr.bf16.gmra.mrb[0].mxu0 %v2220
    %v2285 = vpop.f32.mrb[0].mxu0
    %v2286 = vadd.f32 0.0, %v2285
    %v2287 = vpop.f32.mrb[0].mxu0
    %v2288 = vpop.f32.mrb[0].mxu0
    %v2289 = vadd.f32 0.0, %v2288
    %v2290 = vpop.f32.mrb[0].mxu0
    %2291 = vmatprep.mubr.bf16.mxu0 0
    %2292 = vmatmul.mubr.bf16.gmra.mrb[0].mxu0 %v2223
    %v2293 = vpop.f32.mrb[0].mxu0
    %v2294 = vadd.f32 0.0, %v2293
    %v2295 = vpop.f32.mrb[0].mxu0
    %v2296 = vpop.f32.mrb[0].mxu0
    %v2297 = vadd.f32 0.0, %v2296
    %v2298 = vpop.f32.mrb[0].mxu0
    %2299 = vmatprep.mubr.bf16.mxu0 0
    %2300 = vmatmul.mubr.bf16.gmra.mrb[0].mxu0 %v2226
    %v2301 = vpop.f32.mrb[0].mxu0
    %v2302 = vadd.f32 0.0, %v2301
    %v2303 = vpop.f32.mrb[0].mxu0
    %v2304 = vpop.f32.mrb[0].mxu0
    %v2305 = vadd.f32 0.0, %v2304
    %v2306 = vpop.f32.mrb[0].mxu0
    %2307 = vmatprep.mubr.bf16.mxu0 0
    %2308 = vmatmul.mubr.bf16.gmra.mrb[0].mxu0 %v2229
    %v2309 = vpop.f32.mrb[0].mxu0
    %v2310 = vadd.f32 0.0, %v2309
    %v2311 = vpop.f32.mrb[0].mxu0
    %v2312 = vpop.f32.mrb[0].mxu0
    %v2313 = vadd.f32 0.0, %v2312
    %v2314 = vpop.f32.mrb[0].mxu0
    %2315 = vmatprep.mubr.bf16.mxu0 0
    %2316 = vmatmul.mubr.bf16.gmra.mrb[0].mxu0 %v2232
    %v2317 = vpop.f32.mrb[0].mxu0
    %v2318 = vadd.f32 0.0, %v2317
    %v2319 = vpop.f32.mrb[0].mxu0
    %v2320 = vpop.f32.mrb[0].mxu0
    %v2321 = vadd.f32 0.0, %v2320
    %v2322 = vpop.f32.mrb[0].mxu0
    %2323 = vmatprep.mubr.bf16.mxu0 0
    %2324 = vmatmul.mubr.bf16.gmra.mrb[0].mxu0 %v2235
    %v2325 = vpop.f32.mrb[0].mxu0
    %v2326 = vadd.f32 0.0, %v2325
    %v2327 = vpop.f32.mrb[0].mxu0
    %v2328 = vpop.f32.mrb[0].mxu0
    %v2329 = vadd.f32 0.0, %v2328
    %v2330 = vpop.f32.mrb[0].mxu0
    %2331 = vmatprep.mubr.bf16.mxu0 0
    %2332 = vmatmul.mubr.bf16.gmra.mrb[0].mxu0 %v2238
    %v2333 = vpop.f32.mrb[0].mxu0
    %v2334 = vadd.f32 0.0, %v2333
    %v2335 = vpop.f32.mrb[0].mxu0
    %v2336 = vpop.f32.mrb[0].mxu0
    %v2337 = vadd.f32 0.0, %v2336
    %v2338 = vpop.f32.mrb[0].mxu0
    %2339 = vdwg.mxu0
    %v2340 = vadd.f32 %v2142, %v2278
    %v2341 = vadd.f32 %v2143, %v2281
    %v2342 = vadd.f32 %v2144, %v2286
    %v2343 = vadd.f32 %v2145, %v2289
    %v2344 = vadd.f32 %v2146, %v2294
    %v2345 = vadd.f32 %v2147, %v2297
    %v2346 = vadd.f32 %v2148, %v2302
    %v2347 = vadd.f32 %v2149, %v2305
    %v2348 = vadd.f32 %v2150, %v2310
    %v2349 = vadd.f32 %v2151, %v2313
    %v2350 = vadd.f32 %v2152, %v2318
    %v2351 = vadd.f32 %v2153, %v2321
    %v2352 = vadd.f32 %v2154, %v2326
    %v2353 = vadd.f32 %v2155, %v2329
    %v2354 = vadd.f32 %v2156, %v2334
    %v2355 = vadd.f32 %v2157, %v2337
    %v2356 = vld [vmem:[%s1687] sm:$0xf0]
    %v2357 = vld [vmem:[%s1687 + $0x8] sm:$0xf0]
    %v2358 = vld [vmem:[%s1687 + $0x10] sm:$0xf0]
    %v2359 = vld [vmem:[%s1687 + $0x18] sm:$0xf0]
    %v2360 = vld [vmem:[%s1687 + $0x20] sm:$0xf0]
    %v2361 = vld [vmem:[%s1687 + $0x28] sm:$0xf0]
    %v2362 = vld [vmem:[%s1687 + $0x30] sm:$0xf0]
    %v2363 = vld [vmem:[%s1687 + $0x38] sm:$0xf0]
    %v2364 = vld [vmem:[%s1687 + $0x120] sm:$0xf0]
    %v2365 = vld [vmem:[%s1687 + $0x128] sm:$0xf0]
    %v2366 = vld [vmem:[%s1687 + $0x130] sm:$0xf0]
    %v2367 = vld [vmem:[%s1687 + $0x138] sm:$0xf0]
    %v2368 = vld [vmem:[%s1687 + $0x140] sm:$0xf0]
    %v2369 = vld [vmem:[%s1687 + $0x148] sm:$0xf0]
    %v2370 = vld [vmem:[%s1687 + $0x150] sm:$0xf0]
    %v2371 = vld [vmem:[%s1687 + $0x158] sm:$0xf0]
    %v2388 = vunpack.c.h.b16 %v2356
    %v2389 = vunpack.c.h.b16 %v2357
    %v2390 = vunpack.c.h.b16 %v2358
    %v2391 = vunpack.c.h.b16 %v2359
    %v2392 = vunpack.c.h.b16 %v2360
    %v2393 = vunpack.c.h.b16 %v2361
    %v2394 = vunpack.c.h.b16 %v2362
    %v2395 = vunpack.c.h.b16 %v2363
    %v2396 = vunpack.c.h.b16 %v2364
    %v2397 = vunpack.c.h.b16 %v2365
    %v2398 = vunpack.c.h.b16 %v2366
    %v2399 = vunpack.c.h.b16 %v2367
    %v2400 = vunpack.c.h.b16 %v2368
    %v2401 = vunpack.c.h.b16 %v2369
    %v2402 = vunpack.c.h.b16 %v2370
    %v2403 = vunpack.c.h.b16 %v2371
    %s2404 = scalar_lea.vmem %s1, 10
    %v2405 = vld [vmem:[%s2404] sm:$0x3]
    %v2406 = vpack.c.b16 %v2389, %v2388
    %v2407 = vpack.c.b16 %v2391, %v2390
    %v2408 = vpack.c.b16 %v2393, %v2392
    %v2409 = vpack.c.b16 %v2395, %v2394
    %v2410 = vpack.c.b16 %v2397, %v2396
    %v2411 = vpack.c.b16 %v2399, %v2398
    %v2412 = vpack.c.b16 %v2401, %v2400
    %v2413 = vpack.c.b16 %v2403, %v2402
    %v2415 = vsel %vm620, %v2406, 0
    %v2418 = vsel %vm620, %v2407, 0
    %v2421 = vsel %vm620, %v2408, 0
    %v2424 = vsel %vm620, %v2409, 0
    %v2427 = vsel %vm620, %v2410, 0
    %v2430 = vsel %vm620, %v2411, 0
    %v2433 = vsel %vm620, %v2412, 0
    %v2436 = vsel %vm620, %v2413, 0
    %v2439 = vsel %vm1240, %v2405, 0
    %2441 = vmatprep.subr.bf16.mxu0 0
    %2442 = vmatpush1.bf16.msra.mxu0 %v2439
    %2443 = vmatprep.subr.bf16.mxu0 0
    %2444 = vmatpush1.bf16.msra.mxu0 0
    %2445 = vmatprep.subr.bf16.mxu0 0
    %2446 = vmatpush1.bf16.msra.mxu0 0
    %2447 = vmatprep.subr.bf16.mxu0 0
    %2448 = vmatpush1.bf16.msra.mxu0 0
    %2449 = vmatprep.subr.bf16.mxu0 0
    %2450 = vmatpush1.bf16.msra.mxu0 0
    %2451 = vmatprep.subr.bf16.mxu0 0
    %2452 = vmatpush1.bf16.msra.mxu0 0
    %2453 = vmatprep.subr.bf16.mxu0 0
    %2454 = vmatpush1.bf16.msra.mxu0 0
    %2455 = vmatprep.subr.bf16.mxu0 0
    %2456 = vmatpush1.bf16.msra.mxu0 0
    %2457 = vmatprep.subr.bf16.mxu0 0
    %2458 = vmatpush1.bf16.msra.mxu0 0
    %2459 = vmatprep.subr.bf16.mxu0 0
    %2460 = vmatpush1.bf16.msra.mxu0 0
    %2461 = vmatprep.subr.bf16.mxu0 0
    %2462 = vmatpush1.bf16.msra.mxu0 0
    %2463 = vmatprep.subr.bf16.mxu0 0
    %2464 = vmatpush1.bf16.msra.mxu0 0
    %2465 = vmatprep.subr.bf16.mxu0 0
    %2466 = vmatpush1.bf16.msra.mxu0 0
    %2467 = vmatprep.subr.bf16.mxu0 0
    %2468 = vmatpush1.bf16.msra.mxu0 0
    %2469 = vmatprep.subr.bf16.mxu0 0
    %2470 = vmatpush1.bf16.msra.mxu0 0
    %2471 = vmatprep.subr.bf16.mxu0 0
    %2472 = vmatpush1.bf16.msra.mxu0 0
    %2473 = vmatprep.mubr.bf16.mxu0 0
    %2474 = vmatmul.mubr.bf16.gmra.mrb[0].mxu0 %v2415
    %v2475 = vpop.f32.mrb[0].mxu0
    %v2476 = vadd.f32 0.0, %v2475
    %v2477 = vpop.f32.mrb[0].mxu0
    %v2478 = vpop.f32.mrb[0].mxu0
    %v2479 = vadd.f32 0.0, %v2478
    %v2480 = vpop.f32.mrb[0].mxu0
    %2481 = vmatprep.mubr.bf16.mxu0 0
    %2482 = vmatmul.mubr.bf16.gmra.mrb[0].mxu0 %v2418
    %v2483 = vpop.f32.mrb[0].mxu0
    %v2484 = vadd.f32 0.0, %v2483
    %v2485 = vpop.f32.mrb[0].mxu0
    %v2486 = vpop.f32.mrb[0].mxu0
    %v2487 = vadd.f32 0.0, %v2486
    %v2488 = vpop.f32.mrb[0].mxu0
    %2489 = vmatprep.mubr.bf16.mxu0 0
    %2490 = vmatmul.mubr.bf16.gmra.mrb[0].mxu0 %v2421
    %v2491 = vpop.f32.mrb[0].mxu0
    %v2492 = vadd.f32 0.0, %v2491
    %v2493 = vpop.f32.mrb[0].mxu0
    %v2494 = vpop.f32.mrb[0].mxu0
    %v2495 = vadd.f32 0.0, %v2494
    %v2496 = vpop.f32.mrb[0].mxu0
    %2497 = vmatprep.mubr.bf16.mxu0 0
    %2498 = vmatmul.mubr.bf16.gmra.mrb[0].mxu0 %v2424
    %v2499 = vpop.f32.mrb[0].mxu0
    %v2500 = vadd.f32 0.0, %v2499
    %v2501 = vpop.f32.mrb[0].mxu0
    %v2502 = vpop.f32.mrb[0].mxu0
    %v2503 = vadd.f32 0.0, %v2502
    %v2504 = vpop.f32.mrb[0].mxu0
    %2505 = vmatprep.mubr.bf16.mxu0 0
    %2506 = vmatmul.mubr.bf16.gmra.mrb[0].mxu0 %v2427
    %v2507 = vpop.f32.mrb[0].mxu0
    %v2508 = vadd.f32 0.0, %v2507
    %v2509 = vpop.f32.mrb[0].mxu0
    %v2510 = vpop.f32.mrb[0].mxu0
    %v2511 = vadd.f32 0.0, %v2510
    %v2512 = vpop.f32.mrb[0].mxu0
    %2513 = vmatprep.mubr.bf16.mxu0 0
    %2514 = vmatmul.mubr.bf16.gmra.mrb[0].mxu0 %v2430
    %v2515 = vpop.f32.mrb[0].mxu0
    %v2516 = vadd.f32 0.0, %v2515
    %v2517 = vpop.f32.mrb[0].mxu0
    %v2518 = vpop.f32.mrb[0].mxu0
    %v2519 = vadd.f32 0.0, %v2518
    %v2520 = vpop.f32.mrb[0].mxu0
    %2521 = vmatprep.mubr.bf16.mxu0 0
    %2522 = vmatmul.mubr.bf16.gmra.mrb[0].mxu0 %v2433
    %v2523 = vpop.f32.mrb[0].mxu0
    %v2524 = vadd.f32 0.0, %v2523
    %v2525 = vpop.f32.mrb[0].mxu0
    %v2526 = vpop.f32.mrb[0].mxu0
    %v2527 = vadd.f32 0.0, %v2526
    %v2528 = vpop.f32.mrb[0].mxu0
    %2529 = vmatprep.mubr.bf16.mxu0 0
    %2530 = vmatmul.mubr.bf16.gmra.mrb[0].mxu0 %v2436
    %v2531 = vpop.f32.mrb[0].mxu0
    %v2532 = vadd.f32 0.0, %v2531
    %v2533 = vpop.f32.mrb[0].mxu0
    %v2534 = vpop.f32.mrb[0].mxu0
    %v2535 = vadd.f32 0.0, %v2534
    %v2536 = vpop.f32.mrb[0].mxu0
    %2537 = vdwg.mxu0
    %v2538 = vadd.f32 %v2340, %v2476
    %v2539 = vadd.f32 %v2341, %v2479
    %v2540 = vadd.f32 %v2342, %v2484
    %v2541 = vadd.f32 %v2343, %v2487
    %v2542 = vadd.f32 %v2344, %v2492
    %v2543 = vadd.f32 %v2345, %v2495
    %v2544 = vadd.f32 %v2346, %v2500
    %v2545 = vadd.f32 %v2347, %v2503
    %v2546 = vadd.f32 %v2348, %v2508
    %v2547 = vadd.f32 %v2349, %v2511
    %v2548 = vadd.f32 %v2350, %v2516
    %v2549 = vadd.f32 %v2351, %v2519
    %v2550 = vadd.f32 %v2352, %v2524
    %v2551 = vadd.f32 %v2353, %v2527
    %v2552 = vadd.f32 %v2354, %v2532
    %v2553 = vadd.f32 %v2355, %v2535
    %s2554 = scalar_lea.vmem [#allocation2], 224
    %v2555 = vld [vmem:[%s2554] sm:$0xf8]
    %v2556 = vld [vmem:[%s2554 + $0x8] sm:$0xf8]
    %v2557 = vld [vmem:[%s2554 + $0x10] sm:$0xf8]
    %v2558 = vld [vmem:[%s2554 + $0x18] sm:$0xf8]
    %v2559 = vld [vmem:[%s2554 + $0x20] sm:$0xf8]
    %v2560 = vld [vmem:[%s2554 + $0x28] sm:$0xf8]
    %v2561 = vld [vmem:[%s2554 + $0x30] sm:$0xf8]
    %v2562 = vld [vmem:[%s2554 + $0x38] sm:$0xf8]
    %v2563 = vld [vmem:[%s2554 + $0x120] sm:$0xf8]
    %v2564 = vld [vmem:[%s2554 + $0x128] sm:$0xf8]
    %v2565 = vld [vmem:[%s2554 + $0x130] sm:$0xf8]
    %v2566 = vld [vmem:[%s2554 + $0x138] sm:$0xf8]
    %v2567 = vld [vmem:[%s2554 + $0x140] sm:$0xf8]
    %v2568 = vld [vmem:[%s2554 + $0x148] sm:$0xf8]
    %v2569 = vld [vmem:[%s2554 + $0x150] sm:$0xf8]
    %v2570 = vld [vmem:[%s2554 + $0x158] sm:$0xf8]
    %v2587 = vunpack.c.l.b16 %v2555
    %v2588 = vunpack.c.h.b16 %v2555
    %v2589 = vunpack.c.l.b16 %v2556
    %v2590 = vunpack.c.h.b16 %v2556
    %v2591 = vunpack.c.l.b16 %v2557
    %v2592 = vunpack.c.h.b16 %v2557
    %v2593 = vunpack.c.l.b16 %v2558
    %v2594 = vunpack.c.h.b16 %v2558
    %v2595 = vunpack.c.l.b16 %v2559
    %v2596 = vunpack.c.h.b16 %v2559
    %v2597 = vunpack.c.l.b16 %v2560
    %v2598 = vunpack.c.h.b16 %v2560
    %v2599 = vunpack.c.l.b16 %v2561
    %v2600 = vunpack.c.h.b16 %v2561
    %v2601 = vunpack.c.l.b16 %v2562
    %v2602 = vunpack.c.h.b16 %v2562
    %v2603 = vunpack.c.l.b16 %v2563
    %v2604 = vunpack.c.h.b16 %v2563
    %v2605 = vunpack.c.l.b16 %v2564
    %v2606 = vunpack.c.h.b16 %v2564
    %v2607 = vunpack.c.l.b16 %v2565
    %v2608 = vunpack.c.h.b16 %v2565
    %v2609 = vunpack.c.l.b16 %v2566
    %v2610 = vunpack.c.h.b16 %v2566
    %v2611 = vunpack.c.l.b16 %v2567
    %v2612 = vunpack.c.h.b16 %v2567
    %v2613 = vunpack.c.l.b16 %v2568
    %v2614 = vunpack.c.h.b16 %v2568
    %v2615 = vunpack.c.l.b16 %v2569
    %v2616 = vunpack.c.h.b16 %v2569
    %v2617 = vunpack.c.l.b16 %v2570
    %v2618 = vunpack.c.h.b16 %v2570
    %v2619 = vpack.c.b16 %v2587, %v2587
    %v2620 = vpack.c.b16 %v2588, %v2588
    %v2621 = vpack.c.b16 %v2589, %v2589
    %v2622 = vpack.c.b16 %v2590, %v2590
    %v2623 = vpack.c.b16 %v2591, %v2591
    %v2624 = vpack.c.b16 %v2592, %v2592
    %v2625 = vpack.c.b16 %v2593, %v2593
    %v2626 = vpack.c.b16 %v2594, %v2594
    %v2627 = vpack.c.b16 %v2595, %v2595
    %v2628 = vpack.c.b16 %v2596, %v2596
    %v2629 = vpack.c.b16 %v2597, %v2597
    %v2630 = vpack.c.b16 %v2598, %v2598
    %v2631 = vpack.c.b16 %v2599, %v2599
    %v2632 = vpack.c.b16 %v2600, %v2600
    %v2633 = vpack.c.b16 %v2601, %v2601
    %v2634 = vpack.c.b16 %v2602, %v2602
    %v2635 = vpack.c.b16 %v2603, %v2603
    %v2636 = vpack.c.b16 %v2604, %v2604
    %v2637 = vpack.c.b16 %v2605, %v2605
    %v2638 = vpack.c.b16 %v2606, %v2606
    %v2639 = vpack.c.b16 %v2607, %v2607
    %v2640 = vpack.c.b16 %v2608, %v2608
    %v2641 = vpack.c.b16 %v2609, %v2609
    %v2642 = vpack.c.b16 %v2610, %v2610
    %v2643 = vpack.c.b16 %v2611, %v2611
    %v2644 = vpack.c.b16 %v2612, %v2612
    %v2645 = vpack.c.b16 %v2613, %v2613
    %v2646 = vpack.c.b16 %v2614, %v2614
    %v2647 = vpack.c.b16 %v2615, %v2615
    %v2648 = vpack.c.b16 %v2616, %v2616
    %v2649 = vpack.c.b16 %v2617, %v2617
    %v2650 = vpack.c.b16 %v2618, %v2618
    %v2652 = vshrl.u32 %v2619, 16
    %v2654 = vrot.slane %v2652, 7
    %v2655 = vrot.slane %v2654, 4
    %v2657 = vshrl.u32 %v2620, 16
    %v2659 = vrot.slane %v2657, 7
    %v2660 = vshll.u32 %v2620, 16
    %v2662 = vor.u32 %v2659, %v2660
    %v2663 = vsel %vm947, %v2655, %v2662
    %v2665 = vshrl.u32 %v2621, 16
    %v2667 = vrot.slane %v2665, 7
    %v2668 = vrot.slane %v2667, 4
    %v2670 = vshrl.u32 %v2622, 16
    %v2672 = vrot.slane %v2670, 7
    %v2673 = vshll.u32 %v2622, 16
    %v2675 = vor.u32 %v2672, %v2673
    %v2676 = vsel %vm947, %v2668, %v2675
    %v2678 = vshrl.u32 %v2623, 16
    %v2680 = vrot.slane %v2678, 7
    %v2681 = vrot.slane %v2680, 4
    %v2683 = vshrl.u32 %v2624, 16
    %v2685 = vrot.slane %v2683, 7
    %v2686 = vshll.u32 %v2624, 16
    %v2688 = vor.u32 %v2685, %v2686
    %v2689 = vsel %vm947, %v2681, %v2688
    %v2691 = vshrl.u32 %v2625, 16
    %v2693 = vrot.slane %v2691, 7
    %v2694 = vrot.slane %v2693, 4
    %v2696 = vshrl.u32 %v2626, 16
    %v2698 = vrot.slane %v2696, 7
    %v2699 = vshll.u32 %v2626, 16
    %v2701 = vor.u32 %v2698, %v2699
    %v2702 = vsel %vm947, %v2694, %v2701
    %v2704 = vshrl.u32 %v2627, 16
    %v2706 = vrot.slane %v2704, 7
    %v2707 = vrot.slane %v2706, 4
    %v2709 = vshrl.u32 %v2628, 16
    %v2711 = vrot.slane %v2709, 7
    %v2712 = vshll.u32 %v2628, 16
    %v2714 = vor.u32 %v2711, %v2712
    %v2715 = vsel %vm947, %v2707, %v2714
    %v2717 = vshrl.u32 %v2629, 16
    %v2719 = vrot.slane %v2717, 7
    %v2720 = vrot.slane %v2719, 4
    %v2722 = vshrl.u32 %v2630, 16
    %v2724 = vrot.slane %v2722, 7
    %v2725 = vshll.u32 %v2630, 16
    %v2727 = vor.u32 %v2724, %v2725
    %v2728 = vsel %vm947, %v2720, %v2727
    %v2730 = vshrl.u32 %v2631, 16
    %v2732 = vrot.slane %v2730, 7
    %v2733 = vrot.slane %v2732, 4
    %v2735 = vshrl.u32 %v2632, 16
    %v2737 = vrot.slane %v2735, 7
    %v2738 = vshll.u32 %v2632, 16
    %v2740 = vor.u32 %v2737, %v2738
    %v2741 = vsel %vm947, %v2733, %v2740
    %v2743 = vshrl.u32 %v2633, 16
    %v2745 = vrot.slane %v2743, 7
    %v2746 = vrot.slane %v2745, 4
    %v2748 = vshrl.u32 %v2634, 16
    %v2750 = vrot.slane %v2748, 7
    %v2751 = vshll.u32 %v2634, 16
    %v2753 = vor.u32 %v2750, %v2751
    %v2754 = vsel %vm947, %v2746, %v2753
    %v2756 = vshrl.u32 %v2635, 16
    %v2758 = vrot.slane %v2756, 7
    %v2759 = vrot.slane %v2758, 4
    %v2761 = vshrl.u32 %v2636, 16
    %v2763 = vrot.slane %v2761, 7
    %v2764 = vshll.u32 %v2636, 16
    %v2766 = vor.u32 %v2763, %v2764
    %v2767 = vsel %vm947, %v2759, %v2766
    %v2769 = vshrl.u32 %v2637, 16
    %v2771 = vrot.slane %v2769, 7
    %v2772 = vrot.slane %v2771, 4
    %v2774 = vshrl.u32 %v2638, 16
    %v2776 = vrot.slane %v2774, 7
    %v2777 = vshll.u32 %v2638, 16
    %v2779 = vor.u32 %v2776, %v2777
    %v2780 = vsel %vm947, %v2772, %v2779
    %v2782 = vshrl.u32 %v2639, 16
    %v2784 = vrot.slane %v2782, 7
    %v2785 = vrot.slane %v2784, 4
    %v2787 = vshrl.u32 %v2640, 16
    %v2789 = vrot.slane %v2787, 7
    %v2790 = vshll.u32 %v2640, 16
    %v2792 = vor.u32 %v2789, %v2790
    %v2793 = vsel %vm947, %v2785, %v2792
    %v2795 = vshrl.u32 %v2641, 16
    %v2797 = vrot.slane %v2795, 7
    %v2798 = vrot.slane %v2797, 4
    %v2800 = vshrl.u32 %v2642, 16
    %v2802 = vrot.slane %v2800, 7
    %v2803 = vshll.u32 %v2642, 16
    %v2805 = vor.u32 %v2802, %v2803
    %v2806 = vsel %vm947, %v2798, %v2805
    %v2808 = vshrl.u32 %v2643, 16
    %v2810 = vrot.slane %v2808, 7
    %v2811 = vrot.slane %v2810, 4
    %v2813 = vshrl.u32 %v2644, 16
    %v2815 = vrot.slane %v2813, 7
    %v2816 = vshll.u32 %v2644, 16
    %v2818 = vor.u32 %v2815, %v2816
    %v2819 = vsel %vm947, %v2811, %v2818
    %v2821 = vshrl.u32 %v2645, 16
    %v2823 = vrot.slane %v2821, 7
    %v2824 = vrot.slane %v2823, 4
    %v2826 = vshrl.u32 %v2646, 16
    %v2828 = vrot.slane %v2826, 7
    %v2829 = vshll.u32 %v2646, 16
    %v2831 = vor.u32 %v2828, %v2829
    %v2832 = vsel %vm947, %v2824, %v2831
    %v2834 = vshrl.u32 %v2647, 16
    %v2836 = vrot.slane %v2834, 7
    %v2837 = vrot.slane %v2836, 4
    %v2839 = vshrl.u32 %v2648, 16
    %v2841 = vrot.slane %v2839, 7
    %v2842 = vshll.u32 %v2648, 16
    %v2844 = vor.u32 %v2841, %v2842
    %v2845 = vsel %vm947, %v2837, %v2844
    %v2847 = vshrl.u32 %v2649, 16
    %v2849 = vrot.slane %v2847, 7
    %v2850 = vrot.slane %v2849, 4
    %v2852 = vshrl.u32 %v2650, 16
    %v2854 = vrot.slane %v2852, 7
    %v2855 = vshll.u32 %v2650, 16
    %v2857 = vor.u32 %v2854, %v2855
    %v2858 = vsel %vm947, %v2850, %v2857
    %s2859 = scalar_lea.vmem %s1, 12
    %v2860 = vld [vmem:[%s2859] sm:$0x3]
    %v2861 = vunpack.c.l.b16 %v2663
    %v2862 = vunpack.c.l.b16 %v2676
    %v2863 = vunpack.c.l.b16 %v2689
    %v2864 = vunpack.c.l.b16 %v2702
    %v2865 = vunpack.c.l.b16 %v2715
    %v2866 = vunpack.c.l.b16 %v2728
    %v2867 = vunpack.c.l.b16 %v2741
    %v2868 = vunpack.c.l.b16 %v2754
    %v2869 = vunpack.c.l.b16 %v2767
    %v2870 = vunpack.c.l.b16 %v2780
    %v2871 = vunpack.c.l.b16 %v2793
    %v2872 = vunpack.c.l.b16 %v2806
    %v2873 = vunpack.c.l.b16 %v2819
    %v2874 = vunpack.c.l.b16 %v2832
    %v2875 = vunpack.c.l.b16 %v2845
    %v2876 = vunpack.c.l.b16 %v2858
    %v2877 = vpack.c.b16 %v2862, %v2861
    %v2878 = vpack.c.b16 %v2864, %v2863
    %v2879 = vpack.c.b16 %v2866, %v2865
    %v2880 = vpack.c.b16 %v2868, %v2867
    %v2881 = vpack.c.b16 %v2870, %v2869
    %v2882 = vpack.c.b16 %v2872, %v2871
    %v2883 = vpack.c.b16 %v2874, %v2873
    %v2884 = vpack.c.b16 %v2876, %v2875
    %v2886 = vsel %vm620, %v2877, 0
    %v2889 = vsel %vm620, %v2878, 0
    %v2892 = vsel %vm620, %v2879, 0
    %v2895 = vsel %vm620, %v2880, 0
    %v2898 = vsel %vm620, %v2881, 0
    %v2901 = vsel %vm620, %v2882, 0
    %v2904 = vsel %vm620, %v2883, 0
    %v2907 = vsel %vm620, %v2884, 0
    %v2910 = vsel %vm1240, %v2860, 0
    %2912 = vmatprep.subr.bf16.mxu0 0
    %2913 = vmatpush1.bf16.msra.mxu0 %v2910
    %2914 = vmatprep.subr.bf16.mxu0 0
    %2915 = vmatpush1.bf16.msra.mxu0 0
    %2916 = vmatprep.subr.bf16.mxu0 0
    %2917 = vmatpush1.bf16.msra.mxu0 0
    %2918 = vmatprep.subr.bf16.mxu0 0
    %2919 = vmatpush1.bf16.msra.mxu0 0
    %2920 = vmatprep.subr.bf16.mxu0 0
    %2921 = vmatpush1.bf16.msra.mxu0 0
    %2922 = vmatprep.subr.bf16.mxu0 0
    %2923 = vmatpush1.bf16.msra.mxu0 0
    %2924 = vmatprep.subr.bf16.mxu0 0
    %2925 = vmatpush1.bf16.msra.mxu0 0
    %2926 = vmatprep.subr.bf16.mxu0 0
    %2927 = vmatpush1.bf16.msra.mxu0 0
    %2928 = vmatprep.subr.bf16.mxu0 0
    %2929 = vmatpush1.bf16.msra.mxu0 0
    %2930 = vmatprep.subr.bf16.mxu0 0
    %2931 = vmatpush1.bf16.msra.mxu0 0
    %2932 = vmatprep.subr.bf16.mxu0 0
    %2933 = vmatpush1.bf16.msra.mxu0 0
    %2934 = vmatprep.subr.bf16.mxu0 0
    %2935 = vmatpush1.bf16.msra.mxu0 0
    %2936 = vmatprep.subr.bf16.mxu0 0
    %2937 = vmatpush1.bf16.msra.mxu0 0
    %2938 = vmatprep.subr.bf16.mxu0 0
    %2939 = vmatpush1.bf16.msra.mxu0 0
    %2940 = vmatprep.subr.bf16.mxu0 0
    %2941 = vmatpush1.bf16.msra.mxu0 0
    %2942 = vmatprep.subr.bf16.mxu0 0
    %2943 = vmatpush1.bf16.msra.mxu0 0
    %2944 = vmatprep.mubr.bf16.mxu0 0
    %2945 = vmatmul.mubr.bf16.gmra.mrb[0].mxu0 %v2886
    %v2946 = vpop.f32.mrb[0].mxu0
    %v2947 = vadd.f32 0.0, %v2946
    %v2948 = vpop.f32.mrb[0].mxu0
    %v2949 = vpop.f32.mrb[0].mxu0
    %v2950 = vadd.f32 0.0, %v2949
    %v2951 = vpop.f32.mrb[0].mxu0
    %2952 = vmatprep.mubr.bf16.mxu0 0
    %2953 = vmatmul.mubr.bf16.gmra.mrb[0].mxu0 %v2889
    %v2954 = vpop.f32.mrb[0].mxu0
    %v2955 = vadd.f32 0.0, %v2954
    %v2956 = vpop.f32.mrb[0].mxu0
    %v2957 = vpop.f32.mrb[0].mxu0
    %v2958 = vadd.f32 0.0, %v2957
    %v2959 = vpop.f32.mrb[0].mxu0
    %2960 = vmatprep.mubr.bf16.mxu0 0
    %2961 = vmatmul.mubr.bf16.gmra.mrb[0].mxu0 %v2892
    %v2962 = vpop.f32.mrb[0].mxu0
    %v2963 = vadd.f32 0.0, %v2962
    %v2964 = vpop.f32.mrb[0].mxu0
    %v2965 = vpop.f32.mrb[0].mxu0
    %v2966 = vadd.f32 0.0, %v2965
    %v2967 = vpop.f32.mrb[0].mxu0
    %2968 = vmatprep.mubr.bf16.mxu0 0
    %2969 = vmatmul.mubr.bf16.gmra.mrb[0].mxu0 %v2895
    %v2970 = vpop.f32.mrb[0].mxu0
    %v2971 = vadd.f32 0.0, %v2970
    %v2972 = vpop.f32.mrb[0].mxu0
    %v2973 = vpop.f32.mrb[0].mxu0
    %v2974 = vadd.f32 0.0, %v2973
    %v2975 = vpop.f32.mrb[0].mxu0
    %2976 = vmatprep.mubr.bf16.mxu0 0
    %2977 = vmatmul.mubr.bf16.gmra.mrb[0].mxu0 %v2898
    %v2978 = vpop.f32.mrb[0].mxu0
    %v2979 = vadd.f32 0.0, %v2978
    %v2980 = vpop.f32.mrb[0].mxu0
    %v2981 = vpop.f32.mrb[0].mxu0
    %v2982 = vadd.f32 0.0, %v2981
    %v2983 = vpop.f32.mrb[0].mxu0
    %2984 = vmatprep.mubr.bf16.mxu0 0
    %2985 = vmatmul.mubr.bf16.gmra.mrb[0].mxu0 %v2901
    %v2986 = vpop.f32.mrb[0].mxu0
    %v2987 = vadd.f32 0.0, %v2986
    %v2988 = vpop.f32.mrb[0].mxu0
    %v2989 = vpop.f32.mrb[0].mxu0
    %v2990 = vadd.f32 0.0, %v2989
    %v2991 = vpop.f32.mrb[0].mxu0
    %2992 = vmatprep.mubr.bf16.mxu0 0
    %2993 = vmatmul.mubr.bf16.gmra.mrb[0].mxu0 %v2904
    %v2994 = vpop.f32.mrb[0].mxu0
    %v2995 = vadd.f32 0.0, %v2994
    %v2996 = vpop.f32.mrb[0].mxu0
    %v2997 = vpop.f32.mrb[0].mxu0
    %v2998 = vadd.f32 0.0, %v2997
    %v2999 = vpop.f32.mrb[0].mxu0
    %3000 = vmatprep.mubr.bf16.mxu0 0
    %3001 = vmatmul.mubr.bf16.gmra.mrb[0].mxu0 %v2907
    %v3002 = vpop.f32.mrb[0].mxu0
    %v3003 = vadd.f32 0.0, %v3002
    %v3004 = vpop.f32.mrb[0].mxu0
    %v3005 = vpop.f32.mrb[0].mxu0
    %v3006 = vadd.f32 0.0, %v3005
    %v3007 = vpop.f32.mrb[0].mxu0
    %3008 = vdwg.mxu0
    %v3009 = vadd.f32 %v2538, %v2947
    %v3010 = vadd.f32 %v2539, %v2950
    %v3011 = vadd.f32 %v2540, %v2955
    %v3012 = vadd.f32 %v2541, %v2958
    %v3013 = vadd.f32 %v2542, %v2963
    %v3014 = vadd.f32 %v2543, %v2966
    %v3015 = vadd.f32 %v2544, %v2971
    %v3016 = vadd.f32 %v2545, %v2974
    %v3017 = vadd.f32 %v2546, %v2979
    %v3018 = vadd.f32 %v2547, %v2982
    %v3019 = vadd.f32 %v2548, %v2987
    %v3020 = vadd.f32 %v2549, %v2990
    %v3021 = vadd.f32 %v2550, %v2995
    %v3022 = vadd.f32 %v2551, %v2998
    %v3023 = vadd.f32 %v2552, %v3003
    %v3024 = vadd.f32 %v2553, %v3006
    %s3025 = scalar_lea.vmem [#allocation2], 152
    %v3026 = vld [vmem:[%s3025] sm:$0xf0]
    %v3027 = vld [vmem:[%s3025 + $0x8] sm:$0xf0]
    %v3028 = vld [vmem:[%s3025 + $0x10] sm:$0xf0]
    %v3029 = vld [vmem:[%s3025 + $0x18] sm:$0xf0]
    %v3030 = vld [vmem:[%s3025 + $0x20] sm:$0xf0]
    %v3031 = vld [vmem:[%s3025 + $0x28] sm:$0xf0]
    %v3032 = vld [vmem:[%s3025 + $0x30] sm:$0xf0]
    %v3033 = vld [vmem:[%s3025 + $0x38] sm:$0xf0]
    %v3034 = vld [vmem:[%s3025 + $0x120] sm:$0xf0]
    %v3035 = vld [vmem:[%s3025 + $0x128] sm:$0xf0]
    %v3036 = vld [vmem:[%s3025 + $0x130] sm:$0xf0]
    %v3037 = vld [vmem:[%s3025 + $0x138] sm:$0xf0]
    %v3038 = vld [vmem:[%s3025 + $0x140] sm:$0xf0]
    %v3039 = vld [vmem:[%s3025 + $0x148] sm:$0xf0]
    %v3040 = vld [vmem:[%s3025 + $0x150] sm:$0xf0]
    %v3041 = vld [vmem:[%s3025 + $0x158] sm:$0xf0]
    %v3058 = vunpack.c.h.b16 %v3026
    %v3059 = vunpack.c.h.b16 %v3027
    %v3060 = vunpack.c.h.b16 %v3028
    %v3061 = vunpack.c.h.b16 %v3029
    %v3062 = vunpack.c.h.b16 %v3030
    %v3063 = vunpack.c.h.b16 %v3031
    %v3064 = vunpack.c.h.b16 %v3032
    %v3065 = vunpack.c.h.b16 %v3033
    %v3066 = vunpack.c.h.b16 %v3034
    %v3067 = vunpack.c.h.b16 %v3035
    %v3068 = vunpack.c.h.b16 %v3036
    %v3069 = vunpack.c.h.b16 %v3037
    %v3070 = vunpack.c.h.b16 %v3038
    %v3071 = vunpack.c.h.b16 %v3039
    %v3072 = vunpack.c.h.b16 %v3040
    %v3073 = vunpack.c.h.b16 %v3041
    %s3074 = scalar_lea.vmem %s1, 14
    %v3075 = vld [vmem:[%s3074] sm:$0x3]
    %v3076 = vpack.c.b16 %v3059, %v3058
    %v3077 = vpack.c.b16 %v3061, %v3060
    %v3078 = vpack.c.b16 %v3063, %v3062
    %v3079 = vpack.c.b16 %v3065, %v3064
    %v3080 = vpack.c.b16 %v3067, %v3066
    %v3081 = vpack.c.b16 %v3069, %v3068
    %v3082 = vpack.c.b16 %v3071, %v3070
    %v3083 = vpack.c.b16 %v3073, %v3072
    %v3085 = vsel %vm620, %v3076, 0
    %v3088 = vsel %vm620, %v3077, 0
    %v3091 = vsel %vm620, %v3078, 0
    %v3094 = vsel %vm620, %v3079, 0
    %v3097 = vsel %vm620, %v3080, 0
    %v3100 = vsel %vm620, %v3081, 0
    %v3103 = vsel %vm620, %v3082, 0
    %v3106 = vsel %vm620, %v3083, 0
    %v3109 = vsel %vm1240, %v3075, 0
    %3111 = vmatprep.subr.bf16.mxu0 0
    %3112 = vmatpush1.bf16.msra.mxu0 %v3109
    %3113 = vmatprep.subr.bf16.mxu0 0
    %3114 = vmatpush1.bf16.msra.mxu0 0
    %3115 = vmatprep.subr.bf16.mxu0 0
    %3116 = vmatpush1.bf16.msra.mxu0 0
    %3117 = vmatprep.subr.bf16.mxu0 0
    %3118 = vmatpush1.bf16.msra.mxu0 0
    %3119 = vmatprep.subr.bf16.mxu0 0
    %3120 = vmatpush1.bf16.msra.mxu0 0
    %3121 = vmatprep.subr.bf16.mxu0 0
    %3122 = vmatpush1.bf16.msra.mxu0 0
    %3123 = vmatprep.subr.bf16.mxu0 0
    %3124 = vmatpush1.bf16.msra.mxu0 0
    %3125 = vmatprep.subr.bf16.mxu0 0
    %3126 = vmatpush1.bf16.msra.mxu0 0
    %3127 = vmatprep.subr.bf16.mxu0 0
    %3128 = vmatpush1.bf16.msra.mxu0 0
    %3129 = vmatprep.subr.bf16.mxu0 0
    %3130 = vmatpush1.bf16.msra.mxu0 0
    %3131 = vmatprep.subr.bf16.mxu0 0
    %3132 = vmatpush1.bf16.msra.mxu0 0
    %3133 = vmatprep.subr.bf16.mxu0 0
    %3134 = vmatpush1.bf16.msra.mxu0 0
    %3135 = vmatprep.subr.bf16.mxu0 0
    %3136 = vmatpush1.bf16.msra.mxu0 0
    %3137 = vmatprep.subr.bf16.mxu0 0
    %3138 = vmatpush1.bf16.msra.mxu0 0
    %3139 = vmatprep.subr.bf16.mxu0 0
    %3140 = vmatpush1.bf16.msra.mxu0 0
    %3141 = vmatprep.subr.bf16.mxu0 0
    %3142 = vmatpush1.bf16.msra.mxu0 0
    %3143 = vmatprep.mubr.bf16.mxu0 0
    %3144 = vmatmul.mubr.bf16.gmra.mrb[0].mxu0 %v3085
    %v3145 = vpop.f32.mrb[0].mxu0
    %v3146 = vadd.f32 0.0, %v3145
    %v3147 = vpop.f32.mrb[0].mxu0
    %v3148 = vpop.f32.mrb[0].mxu0
    %v3149 = vadd.f32 0.0, %v3148
    %v3150 = vpop.f32.mrb[0].mxu0
    %3151 = vmatprep.mubr.bf16.mxu0 0
    %3152 = vmatmul.mubr.bf16.gmra.mrb[0].mxu0 %v3088
    %v3153 = vpop.f32.mrb[0].mxu0
    %v3154 = vadd.f32 0.0, %v3153
    %v3155 = vpop.f32.mrb[0].mxu0
    %v3156 = vpop.f32.mrb[0].mxu0
    %v3157 = vadd.f32 0.0, %v3156
    %v3158 = vpop.f32.mrb[0].mxu0
    %3159 = vmatprep.mubr.bf16.mxu0 0
    %3160 = vmatmul.mubr.bf16.gmra.mrb[0].mxu0 %v3091
    %v3161 = vpop.f32.mrb[0].mxu0
    %v3162 = vadd.f32 0.0, %v3161
    %v3163 = vpop.f32.mrb[0].mxu0
    %v3164 = vpop.f32.mrb[0].mxu0
    %v3165 = vadd.f32 0.0, %v3164
    %v3166 = vpop.f32.mrb[0].mxu0
    %3167 = vmatprep.mubr.bf16.mxu0 0
    %3168 = vmatmul.mubr.bf16.gmra.mrb[0].mxu0 %v3094
    %v3169 = vpop.f32.mrb[0].mxu0
    %v3170 = vadd.f32 0.0, %v3169
    %v3171 = vpop.f32.mrb[0].mxu0
    %v3172 = vpop.f32.mrb[0].mxu0
    %v3173 = vadd.f32 0.0, %v3172
    %v3174 = vpop.f32.mrb[0].mxu0
    %3175 = vmatprep.mubr.bf16.mxu0 0
    %3176 = vmatmul.mubr.bf16.gmra.mrb[0].mxu0 %v3097
    %v3177 = vpop.f32.mrb[0].mxu0
    %v3178 = vadd.f32 0.0, %v3177
    %v3179 = vpop.f32.mrb[0].mxu0
    %v3180 = vpop.f32.mrb[0].mxu0
    %v3181 = vadd.f32 0.0, %v3180
    %v3182 = vpop.f32.mrb[0].mxu0
    %3183 = vmatprep.mubr.bf16.mxu0 0
    %3184 = vmatmul.mubr.bf16.gmra.mrb[0].mxu0 %v3100
    %v3185 = vpop.f32.mrb[0].mxu0
    %v3186 = vadd.f32 0.0, %v3185
    %v3187 = vpop.f32.mrb[0].mxu0
    %v3188 = vpop.f32.mrb[0].mxu0
    %v3189 = vadd.f32 0.0, %v3188
    %v3190 = vpop.f32.mrb[0].mxu0
    %3191 = vmatprep.mubr.bf16.mxu0 0
    %3192 = vmatmul.mubr.bf16.gmra.mrb[0].mxu0 %v3103
    %v3193 = vpop.f32.mrb[0].mxu0
    %v3194 = vadd.f32 0.0, %v3193
    %v3195 = vpop.f32.mrb[0].mxu0
    %v3196 = vpop.f32.mrb[0].mxu0
    %v3197 = vadd.f32 0.0, %v3196
    %v3198 = vpop.f32.mrb[0].mxu0
    %3199 = vmatprep.mubr.bf16.mxu0 0
    %3200 = vmatmul.mubr.bf16.gmra.mrb[0].mxu0 %v3106
    %v3201 = vpop.f32.mrb[0].mxu0
    %v3202 = vadd.f32 0.0, %v3201
    %v3203 = vpop.f32.mrb[0].mxu0
    %v3204 = vpop.f32.mrb[0].mxu0
    %v3205 = vadd.f32 0.0, %v3204
    %v3206 = vpop.f32.mrb[0].mxu0
    %3207 = vdwg.mxu0
    %v3208 = vadd.f32 %v3009, %v3146
    %v3209 = vadd.f32 %v3010, %v3149
    %v3210 = vadd.f32 %v3011, %v3154
    %v3211 = vadd.f32 %v3012, %v3157
    %v3212 = vadd.f32 %v3013, %v3162
    %v3213 = vadd.f32 %v3014, %v3165
    %v3214 = vadd.f32 %v3015, %v3170
    %v3215 = vadd.f32 %v3016, %v3173
    %v3216 = vadd.f32 %v3017, %v3178
    %v3217 = vadd.f32 %v3018, %v3181
    %v3218 = vadd.f32 %v3019, %v3186
    %v3219 = vadd.f32 %v3020, %v3189
    %v3220 = vadd.f32 %v3021, %v3194
    %v3221 = vadd.f32 %v3022, %v3197
    %v3222 = vadd.f32 %v3023, %v3202
    %v3223 = vadd.f32 %v3024, %v3205
    %v3224 = vld [vmem:[%s2554] sm:$0xf0]
    %v3225 = vld [vmem:[%s2554 + $0x8] sm:$0xf0]
    %v3226 = vld [vmem:[%s2554 + $0x10] sm:$0xf0]
    %v3227 = vld [vmem:[%s2554 + $0x18] sm:$0xf0]
    %v3228 = vld [vmem:[%s2554 + $0x20] sm:$0xf0]
    %v3229 = vld [vmem:[%s2554 + $0x28] sm:$0xf0]
    %v3230 = vld [vmem:[%s2554 + $0x30] sm:$0xf0]
    %v3231 = vld [vmem:[%s2554 + $0x38] sm:$0xf0]
    %v3232 = vld [vmem:[%s2554 + $0x120] sm:$0xf0]
    %v3233 = vld [vmem:[%s2554 + $0x128] sm:$0xf0]
    %v3234 = vld [vmem:[%s2554 + $0x130] sm:$0xf0]
    %v3235 = vld [vmem:[%s2554 + $0x138] sm:$0xf0]
    %v3236 = vld [vmem:[%s2554 + $0x140] sm:$0xf0]
    %v3237 = vld [vmem:[%s2554 + $0x148] sm:$0xf0]
    %v3238 = vld [vmem:[%s2554 + $0x150] sm:$0xf0]
    %v3239 = vld [vmem:[%s2554 + $0x158] sm:$0xf0]
    %v3256 = vunpack.c.h.b16 %v3224
    %v3257 = vunpack.c.h.b16 %v3225
    %v3258 = vunpack.c.h.b16 %v3226
    %v3259 = vunpack.c.h.b16 %v3227
    %v3260 = vunpack.c.h.b16 %v3228
    %v3261 = vunpack.c.h.b16 %v3229
    %v3262 = vunpack.c.h.b16 %v3230
    %v3263 = vunpack.c.h.b16 %v3231
    %v3264 = vunpack.c.h.b16 %v3232
    %v3265 = vunpack.c.h.b16 %v3233
    %v3266 = vunpack.c.h.b16 %v3234
    %v3267 = vunpack.c.h.b16 %v3235
    %v3268 = vunpack.c.h.b16 %v3236
    %v3269 = vunpack.c.h.b16 %v3237
    %v3270 = vunpack.c.h.b16 %v3238
    %v3271 = vunpack.c.h.b16 %v3239
    %s3272 = scalar_lea.vmem %s1, 16
    %v3273 = vld [vmem:[%s3272] sm:$0x3]
    %v3274 = vpack.c.b16 %v3257, %v3256
    %v3275 = vpack.c.b16 %v3259, %v3258
    %v3276 = vpack.c.b16 %v3261, %v3260
    %v3277 = vpack.c.b16 %v3263, %v3262
    %v3278 = vpack.c.b16 %v3265, %v3264
    %v3279 = vpack.c.b16 %v3267, %v3266
    %v3280 = vpack.c.b16 %v3269, %v3268
    %v3281 = vpack.c.b16 %v3271, %v3270
    %v3283 = vsel %vm620, %v3274, 0
    %v3286 = vsel %vm620, %v3275, 0
    %v3289 = vsel %vm620, %v3276, 0
    %v3292 = vsel %vm620, %v3277, 0
    %v3295 = vsel %vm620, %v3278, 0
    %v3298 = vsel %vm620, %v3279, 0
    %v3301 = vsel %vm620, %v3280, 0
    %v3304 = vsel %vm620, %v3281, 0
    %v3307 = vsel %vm1240, %v3273, 0
    %3309 = vmatprep.subr.bf16.mxu0 0
    %3310 = vmatpush1.bf16.msra.mxu0 %v3307
    %3311 = vmatprep.subr.bf16.mxu0 0
    %3312 = vmatpush1.bf16.msra.mxu0 0
    %3313 = vmatprep.subr.bf16.mxu0 0
    %3314 = vmatpush1.bf16.msra.mxu0 0
    %3315 = vmatprep.subr.bf16.mxu0 0
    %3316 = vmatpush1.bf16.msra.mxu0 0
    %3317 = vmatprep.subr.bf16.mxu0 0
    %3318 = vmatpush1.bf16.msra.mxu0 0
    %3319 = vmatprep.subr.bf16.mxu0 0
    %3320 = vmatpush1.bf16.msra.mxu0 0
    %3321 = vmatprep.subr.bf16.mxu0 0
    %3322 = vmatpush1.bf16.msra.mxu0 0
    %3323 = vmatprep.subr.bf16.mxu0 0
    %3324 = vmatpush1.bf16.msra.mxu0 0
    %3325 = vmatprep.subr.bf16.mxu0 0
    %3326 = vmatpush1.bf16.msra.mxu0 0
    %3327 = vmatprep.subr.bf16.mxu0 0
    %3328 = vmatpush1.bf16.msra.mxu0 0
    %3329 = vmatprep.subr.bf16.mxu0 0
    %3330 = vmatpush1.bf16.msra.mxu0 0
    %3331 = vmatprep.subr.bf16.mxu0 0
    %3332 = vmatpush1.bf16.msra.mxu0 0
    %3333 = vmatprep.subr.bf16.mxu0 0
    %3334 = vmatpush1.bf16.msra.mxu0 0
    %3335 = vmatprep.subr.bf16.mxu0 0
    %3336 = vmatpush1.bf16.msra.mxu0 0
    %3337 = vmatprep.subr.bf16.mxu0 0
    %3338 = vmatpush1.bf16.msra.mxu0 0
    %3339 = vmatprep.subr.bf16.mxu0 0
    %3340 = vmatpush1.bf16.msra.mxu0 0
    %3341 = vmatprep.mubr.bf16.mxu0 0
    %3342 = vmatmul.mubr.bf16.gmra.mrb[0].mxu0 %v3283
    %v3343 = vpop.f32.mrb[0].mxu0
    %v3344 = vadd.f32 0.0, %v3343
    %v3345 = vpop.f32.mrb[0].mxu0
    %v3346 = vpop.f32.mrb[0].mxu0
    %v3347 = vadd.f32 0.0, %v3346
    %v3348 = vpop.f32.mrb[0].mxu0
    %3349 = vmatprep.mubr.bf16.mxu0 0
    %3350 = vmatmul.mubr.bf16.gmra.mrb[0].mxu0 %v3286
    %v3351 = vpop.f32.mrb[0].mxu0
    %v3352 = vadd.f32 0.0, %v3351
    %v3353 = vpop.f32.mrb[0].mxu0
    %v3354 = vpop.f32.mrb[0].mxu0
    %v3355 = vadd.f32 0.0, %v3354
    %v3356 = vpop.f32.mrb[0].mxu0
    %3357 = vmatprep.mubr.bf16.mxu0 0
    %3358 = vmatmul.mubr.bf16.gmra.mrb[0].mxu0 %v3289
    %v3359 = vpop.f32.mrb[0].mxu0
    %v3360 = vadd.f32 0.0, %v3359
    %v3361 = vpop.f32.mrb[0].mxu0
    %v3362 = vpop.f32.mrb[0].mxu0
    %v3363 = vadd.f32 0.0, %v3362
    %v3364 = vpop.f32.mrb[0].mxu0
    %3365 = vmatprep.mubr.bf16.mxu0 0
    %3366 = vmatmul.mubr.bf16.gmra.mrb[0].mxu0 %v3292
    %v3367 = vpop.f32.mrb[0].mxu0
    %v3368 = vadd.f32 0.0, %v3367
    %v3369 = vpop.f32.mrb[0].mxu0
    %v3370 = vpop.f32.mrb[0].mxu0
    %v3371 = vadd.f32 0.0, %v3370
    %v3372 = vpop.f32.mrb[0].mxu0
    %3373 = vmatprep.mubr.bf16.mxu0 0
    %3374 = vmatmul.mubr.bf16.gmra.mrb[0].mxu0 %v3295
    %v3375 = vpop.f32.mrb[0].mxu0
    %v3376 = vadd.f32 0.0, %v3375
    %v3377 = vpop.f32.mrb[0].mxu0
    %v3378 = vpop.f32.mrb[0].mxu0
    %v3379 = vadd.f32 0.0, %v3378
    %v3380 = vpop.f32.mrb[0].mxu0
    %3381 = vmatprep.mubr.bf16.mxu0 0
    %3382 = vmatmul.mubr.bf16.gmra.mrb[0].mxu0 %v3298
    %v3383 = vpop.f32.mrb[0].mxu0
    %v3384 = vadd.f32 0.0, %v3383
    %v3385 = vpop.f32.mrb[0].mxu0
    %v3386 = vpop.f32.mrb[0].mxu0
    %v3387 = vadd.f32 0.0, %v3386
    %v3388 = vpop.f32.mrb[0].mxu0
    %3389 = vmatprep.mubr.bf16.mxu0 0
    %3390 = vmatmul.mubr.bf16.gmra.mrb[0].mxu0 %v3301
    %v3391 = vpop.f32.mrb[0].mxu0
    %v3392 = vadd.f32 0.0, %v3391
    %v3393 = vpop.f32.mrb[0].mxu0
    %v3394 = vpop.f32.mrb[0].mxu0
    %v3395 = vadd.f32 0.0, %v3394
    %v3396 = vpop.f32.mrb[0].mxu0
    %3397 = vmatprep.mubr.bf16.mxu0 0
    %3398 = vmatmul.mubr.bf16.gmra.mrb[0].mxu0 %v3304
    %v3399 = vpop.f32.mrb[0].mxu0
    %v3400 = vadd.f32 0.0, %v3399
    %v3401 = vpop.f32.mrb[0].mxu0
    %v3402 = vpop.f32.mrb[0].mxu0
    %v3403 = vadd.f32 0.0, %v3402
    %v3404 = vpop.f32.mrb[0].mxu0
    %3405 = vdwg.mxu0
    %v3406 = vadd.f32 %v3208, %v3344
    %v3407 = vadd.f32 %v3209, %v3347
    %v3408 = vadd.f32 %v3210, %v3352
    %v3409 = vadd.f32 %v3211, %v3355
    %v3410 = vadd.f32 %v3212, %v3360
    %v3411 = vadd.f32 %v3213, %v3363
    %v3412 = vadd.f32 %v3214, %v3368
    %v3413 = vadd.f32 %v3215, %v3371
    %v3414 = vadd.f32 %v3216, %v3376
    %v3415 = vadd.f32 %v3217, %v3379
    %v3416 = vadd.f32 %v3218, %v3384
    %v3417 = vadd.f32 %v3219, %v3387
    %v3418 = vadd.f32 %v3220, %v3392
    %v3419 = vadd.f32 %v3221, %v3395
    %v3420 = vadd.f32 %v3222, %v3400
    %v3421 = vadd.f32 %v3223, %v3403
    %v3422 = vld [vmem:[%s5] sm:$0x1]
    %v3424 = vlaneseq
    %v3425 = vshrl.u32 %v3424, 7
    %v3426 = vsub.s32 0, %v3425
    %v3427 = vrot.slane %v3422, %v3426
    %v3429 = vmul.f32 %v3406, %v3427
    %v3430 = vmul.f32 %v3407, %v3427
    %v3431 = vmul.f32 %v3408, %v3427
    %v3432 = vmul.f32 %v3409, %v3427
    %v3433 = vmul.f32 %v3410, %v3427
    %v3434 = vmul.f32 %v3411, %v3427
    %v3435 = vmul.f32 %v3412, %v3427
    %v3436 = vmul.f32 %v3413, %v3427
    %v3437 = vmul.f32 %v3414, %v3427
    %v3438 = vmul.f32 %v3415, %v3427
    %v3439 = vmul.f32 %v3416, %v3427
    %v3440 = vmul.f32 %v3417, %v3427
    %v3441 = vmul.f32 %v3418, %v3427
    %v3442 = vmul.f32 %v3419, %v3427
    %v3443 = vmul.f32 %v3420, %v3427
    %v3444 = vmul.f32 %v3421, %v3427
    %v3445 = vld [vmem:[%s6] sm:$0x1]
    %v3447 = vlaneseq
    %v3448 = vshrl.u32 %v3447, 7
    %v3449 = vsub.s32 0, %v3448
    %v3450 = vrot.slane %v3445, %v3449
    %v3452 = vadd.f32 %v3429, %v3450
    %v3453 = vadd.f32 %v3430, %v3450
    %v3454 = vadd.f32 %v3431, %v3450
    %v3455 = vadd.f32 %v3432, %v3450
    %v3456 = vadd.f32 %v3433, %v3450
    %v3457 = vadd.f32 %v3434, %v3450
    %v3458 = vadd.f32 %v3435, %v3450
    %v3459 = vadd.f32 %v3436, %v3450
    %v3460 = vadd.f32 %v3437, %v3450
    %v3461 = vadd.f32 %v3438, %v3450
    %v3462 = vadd.f32 %v3439, %v3450
    %v3463 = vadd.f32 %v3440, %v3450
    %v3464 = vadd.f32 %v3441, %v3450
    %v3465 = vadd.f32 %v3442, %v3450
    %v3466 = vadd.f32 %v3443, %v3450
    %v3467 = vadd.f32 %v3444, %v3450
    %v3468 = vmax.f32 %v3452, 0.0
    %v3469 = vmax.f32 %v3453, 0.0
    %v3470 = vmax.f32 %v3454, 0.0
    %v3471 = vmax.f32 %v3455, 0.0
    %v3472 = vmax.f32 %v3456, 0.0
    %v3473 = vmax.f32 %v3457, 0.0
    %v3474 = vmax.f32 %v3458, 0.0
    %v3475 = vmax.f32 %v3459, 0.0
    %v3476 = vmax.f32 %v3460, 0.0
    %v3477 = vmax.f32 %v3461, 0.0
    %v3478 = vmax.f32 %v3462, 0.0
    %v3479 = vmax.f32 %v3463, 0.0
    %v3480 = vmax.f32 %v3464, 0.0
    %v3481 = vmax.f32 %v3465, 0.0
    %v3482 = vmax.f32 %v3466, 0.0
    %v3483 = vmax.f32 %v3467, 0.0
    %v3484 = vpack.c.bf16 %v3469, %v3468
    %v3485 = vpack.c.bf16 %v3471, %v3470
    %v3486 = vpack.c.bf16 %v3473, %v3472
    %v3487 = vpack.c.bf16 %v3475, %v3474
    %v3488 = vpack.c.bf16 %v3477, %v3476
    %v3489 = vpack.c.bf16 %v3479, %v3478
    %v3490 = vpack.c.bf16 %v3481, %v3480
    %v3491 = vpack.c.bf16 %v3483, %v3482
    %v3500 = vunpack.c.l.b16 %v3484
    %v3501 = vunpack.c.h.b16 %v3484
    %v3502 = vunpack.c.l.b16 %v3485
    %v3503 = vunpack.c.h.b16 %v3485
    %v3504 = vunpack.c.l.b16 %v3486
    %v3505 = vunpack.c.h.b16 %v3486
    %v3506 = vunpack.c.l.b16 %v3487
    %v3507 = vunpack.c.h.b16 %v3487
    %v3508 = vunpack.c.l.b16 %v3488
    %v3509 = vunpack.c.h.b16 %v3488
    %v3510 = vunpack.c.l.b16 %v3489
    %v3511 = vunpack.c.h.b16 %v3489
    %v3512 = vunpack.c.l.b16 %v3490
    %v3513 = vunpack.c.h.b16 %v3490
    %v3514 = vunpack.c.l.b16 %v3491
    %v3515 = vunpack.c.h.b16 %v3491
    %v3516 = vpack.c.b16 %v3500, %v3500
    %v3517 = vpack.c.b16 %v3501, %v3501
    %v3518 = vpack.c.b16 %v3502, %v3502
    %v3519 = vpack.c.b16 %v3503, %v3503
    %v3520 = vpack.c.b16 %v3504, %v3504
    %v3521 = vpack.c.b16 %v3505, %v3505
    %v3522 = vpack.c.b16 %v3506, %v3506
    %v3523 = vpack.c.b16 %v3507, %v3507
    %v3524 = vpack.c.b16 %v3508, %v3508
    %v3525 = vpack.c.b16 %v3509, %v3509
    %v3526 = vpack.c.b16 %v3510, %v3510
    %v3527 = vpack.c.b16 %v3511, %v3511
    %v3528 = vpack.c.b16 %v3512, %v3512
    %v3529 = vpack.c.b16 %v3513, %v3513
    %v3530 = vpack.c.b16 %v3514, %v3514
    %v3531 = vpack.c.b16 %v3515, %v3515
    %s3548 = scalar_lea.vmem [#allocation3], 12
    %vm3549 = vcmask 60416
    %3550 = vst.msk [vmem:[%s3548 + $0x4] sm:$0xf] %vm3549, %v3516
    %3551 = vst.msk [vmem:[%s3548 + $0x10] sm:$0xf] %vm3549, %v3517
    %3552 = vst.msk [vmem:[%s3548 + $0x1c] sm:$0xf] %vm3549, %v3518
    %3553 = vst.msk [vmem:[%s3548 + $0x28] sm:$0xf] %vm3549, %v3519
    %3554 = vst.msk [vmem:[%s3548 + $0x34] sm:$0xf] %vm3549, %v3520
    %3555 = vst.msk [vmem:[%s3548 + $0x40] sm:$0xf] %vm3549, %v3521
    %3556 = vst.msk [vmem:[%s3548 + $0x4c] sm:$0xf] %vm3549, %v3522
    %3557 = vst.msk [vmem:[%s3548 + $0x58] sm:$0xf] %vm3549, %v3523
    %3558 = vst.msk [vmem:[%s3548 + $0x7c] sm:$0xf] %vm3549, %v3524
    %3559 = vst.msk [vmem:[%s3548 + $0x88] sm:$0xf] %vm3549, %v3525
    %3560 = vst.msk [vmem:[%s3548 + $0x94] sm:$0xf] %vm3549, %v3526
    %3561 = vst.msk [vmem:[%s3548 + $0xa0] sm:$0xf] %vm3549, %v3527
    %3562 = vst.msk [vmem:[%s3548 + $0xac] sm:$0xf] %vm3549, %v3528
    %3563 = vst.msk [vmem:[%s3548 + $0xb8] sm:$0xf] %vm3549, %v3529
    %3564 = vst.msk [vmem:[%s3548 + $0xc4] sm:$0xf] %vm3549, %v3530
    %3565 = vst.msk [vmem:[%s3548 + $0xd0] sm:$0xf] %vm3549, %v3531
    %3566 = vst.msk [vmem:[#allocation3] sm:$0xf] %vm3549, 0
    %3567 = vst.msk [vmem:[#allocation3 + $0x4] sm:$0xf] %vm3549, 0
    %vm3568 = vcmask 57344
    %vm3569 = vmand %vm3568, %vm945
    %v3570 = vld [vmem:[#allocation3 + $0x8] sm:$0x1]
    %v3571 = vsel %vm3569, 0, %v3570
    %3572 = vst [vmem:[#allocation3 + $0x8] sm:$0x1] %v3571
    %3573 = vst.msk [vmem:[#allocation3 + $0x78] sm:$0xf] %vm3549, 0
    %3574 = vst.msk [vmem:[#allocation3 + $0x7c] sm:$0xf] %vm3549, 0
    %v3575 = vld [vmem:[#allocation3 + $0x80] sm:$0x1]
    %v3576 = vsel %vm3569, 0, %v3575
    %3577 = vst [vmem:[#allocation3 + $0x80] sm:$0x1] %v3576
    %s3578 = scalar_lea.vmem [#allocation3], 108
    %3579 = vst.msk [vmem:[%s3578] sm:$0xf] %vm3549, 0
    %3580 = vst.msk [vmem:[%s3578 + $0x4] sm:$0xf] %vm3549, 0
    %v3581 = vld [vmem:[%s3578 + $0x8] sm:$0x1]
    %v3582 = vsel %vm3569, 0, %v3581
    %3583 = vst [vmem:[%s3578 + $0x8] sm:$0x1] %v3582
    %3584 = vst.msk [vmem:[%s3578 + $0x78] sm:$0xf] %vm3549, 0
    %3585 = vst.msk [vmem:[%s3578 + $0x7c] sm:$0xf] %vm3549, 0
    %v3586 = vld [vmem:[%s3578 + $0x80] sm:$0x1]
    %v3587 = vsel %vm3569, 0, %v3586
    %3588 = vst [vmem:[%s3578 + $0x80] sm:$0x1] %v3587
    %vm3589 = vcmask 60419
    %vm3590 = vmand %vm3589, %vm630
    %v3591 = vld [vmem:[#allocation3] sm:$0x8]
    %v3592 = vsel %vm3590, 0, %v3591
    %3593 = vst [vmem:[#allocation3] sm:$0x8] %v3592
    %v3594 = vld [vmem:[#allocation3 + $0xc] sm:$0x8]
    %v3595 = vsel %vm3590, 0, %v3594
    %3596 = vst [vmem:[#allocation3 + $0xc] sm:$0x8] %v3595
    %v3597 = vld [vmem:[#allocation3 + $0x18] sm:$0x8]
    %v3598 = vsel %vm3590, 0, %v3597
    %3599 = vst [vmem:[#allocation3 + $0x18] sm:$0x8] %v3598
    %v3600 = vld [vmem:[#allocation3 + $0x24] sm:$0x8]
    %v3601 = vsel %vm3590, 0, %v3600
    %3602 = vst [vmem:[#allocation3 + $0x24] sm:$0x8] %v3601
    %v3603 = vld [vmem:[#allocation3 + $0x30] sm:$0x8]
    %v3604 = vsel %vm3590, 0, %v3603
    %3605 = vst [vmem:[#allocation3 + $0x30] sm:$0x8] %v3604
    %v3606 = vld [vmem:[#allocation3 + $0x3c] sm:$0x8]
    %v3607 = vsel %vm3590, 0, %v3606
    %3608 = vst [vmem:[#allocation3 + $0x3c] sm:$0x8] %v3607
    %v3609 = vld [vmem:[#allocation3 + $0x48] sm:$0x8]
    %v3610 = vsel %vm3590, 0, %v3609
    %3611 = vst [vmem:[#allocation3 + $0x48] sm:$0x8] %v3610
    %v3612 = vld [vmem:[#allocation3 + $0x54] sm:$0x8]
    %v3613 = vsel %vm3590, 0, %v3612
    %3614 = vst [vmem:[#allocation3 + $0x54] sm:$0x8] %v3613
    %v3615 = vld [vmem:[#allocation3 + $0x60] sm:$0x8]
    %v3616 = vsel %vm3590, 0, %v3615
    %3617 = vst [vmem:[#allocation3 + $0x60] sm:$0x8] %v3616
    %v3618 = vld [vmem:[#allocation3 + $0x6c] sm:$0x8]
    %v3619 = vsel %vm3590, 0, %v3618
    %3620 = vst [vmem:[#allocation3 + $0x6c] sm:$0x8] %v3619
    %v3621 = vld [vmem:[#allocation3 + $0x78] sm:$0x8]
    %v3622 = vsel %vm3590, 0, %v3621
    %3623 = vst [vmem:[#allocation3 + $0x78] sm:$0x8] %v3622
    %v3624 = vld [vmem:[#allocation3 + $0x84] sm:$0x8]
    %v3625 = vsel %vm3590, 0, %v3624
    %3626 = vst [vmem:[#allocation3 + $0x84] sm:$0x8] %v3625
    %v3627 = vld [vmem:[#allocation3 + $0x90] sm:$0x8]
    %v3628 = vsel %vm3590, 0, %v3627
    %3629 = vst [vmem:[#allocation3 + $0x90] sm:$0x8] %v3628
    %v3630 = vld [vmem:[#allocation3 + $0x9c] sm:$0x8]
    %v3631 = vsel %vm3590, 0, %v3630
    %3632 = vst [vmem:[#allocation3 + $0x9c] sm:$0x8] %v3631
    %v3633 = vld [vmem:[#allocation3 + $0xa8] sm:$0x8]
    %v3634 = vsel %vm3590, 0, %v3633
    %3635 = vst [vmem:[#allocation3 + $0xa8] sm:$0x8] %v3634
    %v3636 = vld [vmem:[#allocation3 + $0xb4] sm:$0x8]
    %v3637 = vsel %vm3590, 0, %v3636
    %3638 = vst [vmem:[#allocation3 + $0xb4] sm:$0x8] %v3637
    %v3639 = vld [vmem:[#allocation3 + $0xc0] sm:$0x8]
    %v3640 = vsel %vm3590, 0, %v3639
    %3641 = vst [vmem:[#allocation3 + $0xc0] sm:$0x8] %v3640
    %v3642 = vld [vmem:[#allocation3 + $0xcc] sm:$0x8]
    %v3643 = vsel %vm3590, 0, %v3642
    %3644 = vst [vmem:[#allocation3 + $0xcc] sm:$0x8] %v3643
    %v3645 = vld [vmem:[#allocation3 + $0xd8] sm:$0x8]
    %v3646 = vsel %vm3590, 0, %v3645
    %3647 = vst [vmem:[#allocation3 + $0xd8] sm:$0x8] %v3646
    %v3648 = vld [vmem:[#allocation3 + $0xe4] sm:$0x8]
    %v3649 = vsel %vm3590, 0, %v3648
    %3650 = vst [vmem:[#allocation3 + $0xe4] sm:$0x8] %v3649
    %v3651 = vld [vmem:[#allocation3 + $0x8] sm:$0x1]
    %v3652 = vsel %vm3569, 0, %v3651
    %3653 = vst [vmem:[#allocation3 + $0x8] sm:$0x1] %v3652
    %v3654 = vld [vmem:[#allocation3 + $0x14] sm:$0x1]
    %v3655 = vsel %vm3569, 0, %v3654
    %3656 = vst [vmem:[#allocation3 + $0x14] sm:$0x1] %v3655
    %v3657 = vld [vmem:[#allocation3 + $0x20] sm:$0x1]
    %v3658 = vsel %vm3569, 0, %v3657
    %3659 = vst [vmem:[#allocation3 + $0x20] sm:$0x1] %v3658
    %v3660 = vld [vmem:[#allocation3 + $0x2c] sm:$0x1]
    %v3661 = vsel %vm3569, 0, %v3660
    %3662 = vst [vmem:[#allocation3 + $0x2c] sm:$0x1] %v3661
    %v3663 = vld [vmem:[#allocation3 + $0x38] sm:$0x1]
    %v3664 = vsel %vm3569, 0, %v3663
    %3665 = vst [vmem:[#allocation3 + $0x38] sm:$0x1] %v3664
    %v3666 = vld [vmem:[#allocation3 + $0x44] sm:$0x1]
    %v3667 = vsel %vm3569, 0, %v3666
    %3668 = vst [vmem:[#allocation3 + $0x44] sm:$0x1] %v3667
    %v3669 = vld [vmem:[#allocation3 + $0x50] sm:$0x1]
    %v3670 = vsel %vm3569, 0, %v3669
    %3671 = vst [vmem:[#allocation3 + $0x50] sm:$0x1] %v3670
    %v3672 = vld [vmem:[#allocation3 + $0x5c] sm:$0x1]
    %v3673 = vsel %vm3569, 0, %v3672
    %3674 = vst [vmem:[#allocation3 + $0x5c] sm:$0x1] %v3673
    %v3675 = vld [vmem:[#allocation3 + $0x68] sm:$0x1]
    %v3676 = vsel %vm3569, 0, %v3675
    %3677 = vst [vmem:[#allocation3 + $0x68] sm:$0x1] %v3676
    %v3678 = vld [vmem:[#allocation3 + $0x74] sm:$0x1]
    %v3679 = vsel %vm3569, 0, %v3678
    %3680 = vst [vmem:[#allocation3 + $0x74] sm:$0x1] %v3679
    %v3681 = vld [vmem:[#allocation3 + $0x80] sm:$0x1]
    %v3682 = vsel %vm3569, 0, %v3681
    %3683 = vst [vmem:[#allocation3 + $0x80] sm:$0x1] %v3682
    %v3684 = vld [vmem:[#allocation3 + $0x8c] sm:$0x1]
    %v3685 = vsel %vm3569, 0, %v3684
    %3686 = vst [vmem:[#allocation3 + $0x8c] sm:$0x1] %v3685
    %v3687 = vld [vmem:[#allocation3 + $0x98] sm:$0x1]
    %v3688 = vsel %vm3569, 0, %v3687
    %3689 = vst [vmem:[#allocation3 + $0x98] sm:$0x1] %v3688
    %v3690 = vld [vmem:[#allocation3 + $0xa4] sm:$0x1]
    %v3691 = vsel %vm3569, 0, %v3690
    %3692 = vst [vmem:[#allocation3 + $0xa4] sm:$0x1] %v3691
    %v3693 = vld [vmem:[#allocation3 + $0xb0] sm:$0x1]
    %v3694 = vsel %vm3569, 0, %v3693
    %3695 = vst [vmem:[#allocation3 + $0xb0] sm:$0x1] %v3694
    %v3696 = vld [vmem:[#allocation3 + $0xbc] sm:$0x1]
    %v3697 = vsel %vm3569, 0, %v3696
    %3698 = vst [vmem:[#allocation3 + $0xbc] sm:$0x1] %v3697
    %v3699 = vld [vmem:[#allocation3 + $0xc8] sm:$0x1]
    %v3700 = vsel %vm3569, 0, %v3699
    %3701 = vst [vmem:[#allocation3 + $0xc8] sm:$0x1] %v3700
    %v3702 = vld [vmem:[#allocation3 + $0xd4] sm:$0x1]
    %v3703 = vsel %vm3569, 0, %v3702
    %3704 = vst [vmem:[#allocation3 + $0xd4] sm:$0x1] %v3703
    %v3705 = vld [vmem:[#allocation3 + $0xe0] sm:$0x1]
    %v3706 = vsel %vm3569, 0, %v3705
    %3707 = vst [vmem:[#allocation3 + $0xe0] sm:$0x1] %v3706
    %v3708 = vld [vmem:[#allocation3 + $0xec] sm:$0x1]
    %v3709 = vsel %vm3569, 0, %v3708
    %3710 = vst [vmem:[#allocation3 + $0xec] sm:$0x1] %v3709
    %v3711 = vld [vmem:[%s0] sm:$0xff]
    %v3712 = vld [vmem:[%s0 + $0x8] sm:$0xff]
    %v3713 = vld [vmem:[%s0 + $0x10] sm:$0xff]
    %v3714 = vld [vmem:[%s0 + $0x18] sm:$0xff]
    %v3715 = vld [vmem:[%s0 + $0x20] sm:$0xff]
    %v3716 = vld [vmem:[%s0 + $0x28] sm:$0xff]
    %v3717 = vld [vmem:[%s0 + $0x30] sm:$0xff]
    %v3718 = vld [vmem:[%s0 + $0x38] sm:$0xff]
    %v3719 = vld [vmem:[%s0 + $0x100] sm:$0xff]
    %v3720 = vld [vmem:[%s0 + $0x108] sm:$0xff]
    %v3721 = vld [vmem:[%s0 + $0x110] sm:$0xff]
    %v3722 = vld [vmem:[%s0 + $0x118] sm:$0xff]
    %v3723 = vld [vmem:[%s0 + $0x120] sm:$0xff]
    %v3724 = vld [vmem:[%s0 + $0x128] sm:$0xff]
    %v3725 = vld [vmem:[%s0 + $0x130] sm:$0xff]
    %v3726 = vld [vmem:[%s0 + $0x138] sm:$0xff]
    %v3727 = vsel %vm620, %v3711, 0.0
    %v3728 = vsel %vm620, %v3712, 0.0
    %v3729 = vsel %vm620, %v3713, 0.0
    %v3730 = vsel %vm620, %v3714, 0.0
    %v3731 = vsel %vm620, %v3715, 0.0
    %v3732 = vsel %vm620, %v3716, 0.0
    %v3733 = vsel %vm620, %v3717, 0.0
    %v3734 = vsel %vm620, %v3718, 0.0
    %v3735 = vsel %vm620, %v3719, 0.0
    %v3736 = vsel %vm620, %v3720, 0.0
    %v3737 = vsel %vm620, %v3721, 0.0
    %v3738 = vsel %vm620, %v3722, 0.0
    %v3739 = vsel %vm620, %v3723, 0.0
    %v3740 = vsel %vm620, %v3724, 0.0
    %v3741 = vsel %vm620, %v3725, 0.0
    %v3742 = vsel %vm620, %v3726, 0.0
    %v3743 = vld [vmem:[#allocation3] sm:$0x8]
    %v3744 = vld [vmem:[#allocation3 + $0x4] sm:$0xf]
    %v3745 = vld [vmem:[#allocation3 + $0xc] sm:$0x8]
    %v3746 = vld [vmem:[#allocation3 + $0x10] sm:$0xf]
    %v3747 = vld [vmem:[#allocation3 + $0x18] sm:$0x8]
    %v3748 = vld [vmem:[#allocation3 + $0x1c] sm:$0xf]
    %v3749 = vld [vmem:[#allocation3 + $0x24] sm:$0x8]
    %v3750 = vld [vmem:[#allocation3 + $0x28] sm:$0xf]
    %v3751 = vld [vmem:[#allocation3 + $0x30] sm:$0x8]
    %v3752 = vld [vmem:[#allocation3 + $0x34] sm:$0xf]
    %v3753 = vld [vmem:[#allocation3 + $0x3c] sm:$0x8]
    %v3754 = vld [vmem:[#allocation3 + $0x40] sm:$0xf]
    %v3755 = vld [vmem:[#allocation3 + $0x48] sm:$0x8]
    %v3756 = vld [vmem:[#allocation3 + $0x4c] sm:$0xf]
    %v3757 = vld [vmem:[#allocation3 + $0x54] sm:$0x8]
    %v3758 = vld [vmem:[#allocation3 + $0x58] sm:$0xf]
    %v3759 = vld [vmem:[#allocation3 + $0x78] sm:$0x8]
    %v3760 = vld [vmem:[#allocation3 + $0x7c] sm:$0xf]
    %v3761 = vld [vmem:[#allocation3 + $0x84] sm:$0x8]
    %v3762 = vld [vmem:[#allocation3 + $0x88] sm:$0xf]
    %v3763 = vld [vmem:[#allocation3 + $0x90] sm:$0x8]
    %v3764 = vld [vmem:[#allocation3 + $0x94] sm:$0xf]
    %v3765 = vld [vmem:[#allocation3 + $0x9c] sm:$0x8]
    %v3766 = vld [vmem:[#allocation3 + $0xa0] sm:$0xf]
    %v3767 = vld [vmem:[#allocation3 + $0xa8] sm:$0x8]
    %v3768 = vld [vmem:[#allocation3 + $0xac] sm:$0xf]
    %v3769 = vld [vmem:[#allocation3 + $0xb4] sm:$0x8]
    %v3770 = vld [vmem:[#allocation3 + $0xb8] sm:$0xf]
    %v3771 = vld [vmem:[#allocation3 + $0xc0] sm:$0x8]
    %v3772 = vld [vmem:[#allocation3 + $0xc4] sm:$0xf]
    %v3773 = vld [vmem:[#allocation3 + $0xcc] sm:$0x8]
    %v3774 = vld [vmem:[#allocation3 + $0xd0] sm:$0xf]
    %v3776 = vshrl.u32 %v3743, 16
    %v3778 = vrot.slane %v3776, 7
    %v3779 = vrot.slane %v3778, 4
    %v3781 = vshrl.u32 %v3744, 16
    %v3783 = vrot.slane %v3781, 7
    %v3784 = vshll.u32 %v3744, 16
    %v3786 = vor.u32 %v3783, %v3784
    %v3787 = vsel %vm947, %v3779, %v3786
    %v3789 = vshrl.u32 %v3745, 16
    %v3791 = vrot.slane %v3789, 7
    %v3792 = vrot.slane %v3791, 4
    %v3794 = vshrl.u32 %v3746, 16
    %v3796 = vrot.slane %v3794, 7
    %v3797 = vshll.u32 %v3746, 16
    %v3799 = vor.u32 %v3796, %v3797
    %v3800 = vsel %vm947, %v3792, %v3799
    %v3802 = vshrl.u32 %v3747, 16
    %v3804 = vrot.slane %v3802, 7
    %v3805 = vrot.slane %v3804, 4
    %v3807 = vshrl.u32 %v3748, 16
    %v3809 = vrot.slane %v3807, 7
    %v3810 = vshll.u32 %v3748, 16
    %v3812 = vor.u32 %v3809, %v3810
    %v3813 = vsel %vm947, %v3805, %v3812
    %v3815 = vshrl.u32 %v3749, 16
    %v3817 = vrot.slane %v3815, 7
    %v3818 = vrot.slane %v3817, 4
    %v3820 = vshrl.u32 %v3750, 16
    %v3822 = vrot.slane %v3820, 7
    %v3823 = vshll.u32 %v3750, 16
    %v3825 = vor.u32 %v3822, %v3823
    %v3826 = vsel %vm947, %v3818, %v3825
    %v3828 = vshrl.u32 %v3751, 16
    %v3830 = vrot.slane %v3828, 7
    %v3831 = vrot.slane %v3830, 4
    %v3833 = vshrl.u32 %v3752, 16
    %v3835 = vrot.slane %v3833, 7
    %v3836 = vshll.u32 %v3752, 16
    %v3838 = vor.u32 %v3835, %v3836
    %v3839 = vsel %vm947, %v3831, %v3838
    %v3841 = vshrl.u32 %v3753, 16
    %v3843 = vrot.slane %v3841, 7
    %v3844 = vrot.slane %v3843, 4
    %v3846 = vshrl.u32 %v3754, 16
    %v3848 = vrot.slane %v3846, 7
    %v3849 = vshll.u32 %v3754, 16
    %v3851 = vor.u32 %v3848, %v3849
    %v3852 = vsel %vm947, %v3844, %v3851
    %v3854 = vshrl.u32 %v3755, 16
    %v3856 = vrot.slane %v3854, 7
    %v3857 = vrot.slane %v3856, 4
    %v3859 = vshrl.u32 %v3756, 16
    %v3861 = vrot.slane %v3859, 7
    %v3862 = vshll.u32 %v3756, 16
    %v3864 = vor.u32 %v3861, %v3862
    %v3865 = vsel %vm947, %v3857, %v3864
    %v3867 = vshrl.u32 %v3757, 16
    %v3869 = vrot.slane %v3867, 7
    %v3870 = vrot.slane %v3869, 4
    %v3872 = vshrl.u32 %v3758, 16
    %v3874 = vrot.slane %v3872, 7
    %v3875 = vshll.u32 %v3758, 16
    %v3877 = vor.u32 %v3874, %v3875
    %v3878 = vsel %vm947, %v3870, %v3877
    %v3880 = vshrl.u32 %v3759, 16
    %v3882 = vrot.slane %v3880, 7
    %v3883 = vrot.slane %v3882, 4
    %v3885 = vshrl.u32 %v3760, 16
    %v3887 = vrot.slane %v3885, 7
    %v3888 = vshll.u32 %v3760, 16
    %v3890 = vor.u32 %v3887, %v3888
    %v3891 = vsel %vm947, %v3883, %v3890
    %v3893 = vshrl.u32 %v3761, 16
    %v3895 = vrot.slane %v3893, 7
    %v3896 = vrot.slane %v3895, 4
    %v3898 = vshrl.u32 %v3762, 16
    %v3900 = vrot.slane %v3898, 7
    %v3901 = vshll.u32 %v3762, 16
    %v3903 = vor.u32 %v3900, %v3901
    %v3904 = vsel %vm947, %v3896, %v3903
    %v3906 = vshrl.u32 %v3763, 16
    %v3908 = vrot.slane %v3906, 7
    %v3909 = vrot.slane %v3908, 4
    %v3911 = vshrl.u32 %v3764, 16
    %v3913 = vrot.slane %v3911, 7
    %v3914 = vshll.u32 %v3764, 16
    %v3916 = vor.u32 %v3913, %v3914
    %v3917 = vsel %vm947, %v3909, %v3916
    %v3919 = vshrl.u32 %v3765, 16
    %v3921 = vrot.slane %v3919, 7
    %v3922 = vrot.slane %v3921, 4
    %v3924 = vshrl.u32 %v3766, 16
    %v3926 = vrot.slane %v3924, 7
    %v3927 = vshll.u32 %v3766, 16
    %v3929 = vor.u32 %v3926, %v3927
    %v3930 = vsel %vm947, %v3922, %v3929
    %v3932 = vshrl.u32 %v3767, 16
    %v3934 = vrot.slane %v3932, 7
    %v3935 = vrot.slane %v3934, 4
    %v3937 = vshrl.u32 %v3768, 16
    %v3939 = vrot.slane %v3937, 7
    %v3940 = vshll.u32 %v3768, 16
    %v3942 = vor.u32 %v3939, %v3940
    %v3943 = vsel %vm947, %v3935, %v3942
    %v3945 = vshrl.u32 %v3769, 16
    %v3947 = vrot.slane %v3945, 7
    %v3948 = vrot.slane %v3947, 4
    %v3950 = vshrl.u32 %v3770, 16
    %v3952 = vrot.slane %v3950, 7
    %v3953 = vshll.u32 %v3770, 16
    %v3955 = vor.u32 %v3952, %v3953
    %v3956 = vsel %vm947, %v3948, %v3955
    %v3958 = vshrl.u32 %v3771, 16
    %v3960 = vrot.slane %v3958, 7
    %v3961 = vrot.slane %v3960, 4
    %v3963 = vshrl.u32 %v3772, 16
    %v3965 = vrot.slane %v3963, 7
    %v3966 = vshll.u32 %v3772, 16
    %v3968 = vor.u32 %v3965, %v3966
    %v3969 = vsel %vm947, %v3961, %v3968
    %v3971 = vshrl.u32 %v3773, 16
    %v3973 = vrot.slane %v3971, 7
    %v3974 = vrot.slane %v3973, 4
    %v3976 = vshrl.u32 %v3774, 16
    %v3978 = vrot.slane %v3976, 7
    %v3979 = vshll.u32 %v3774, 16
    %v3981 = vor.u32 %v3978, %v3979
    %v3982 = vsel %vm947, %v3974, %v3981
    %v3983 = vld [vmem:[%s2] sm:$0xf]
    %v3984 = vunpack.c.l.b16 %v3787
    %v3985 = vunpack.c.l.b16 %v3800
    %v3986 = vunpack.c.l.b16 %v3813
    %v3987 = vunpack.c.l.b16 %v3826
    %v3988 = vunpack.c.l.b16 %v3839
    %v3989 = vunpack.c.l.b16 %v3852
    %v3990 = vunpack.c.l.b16 %v3865
    %v3991 = vunpack.c.l.b16 %v3878
    %v3992 = vunpack.c.l.b16 %v3891
    %v3993 = vunpack.c.l.b16 %v3904
    %v3994 = vunpack.c.l.b16 %v3917
    %v3995 = vunpack.c.l.b16 %v3930
    %v3996 = vunpack.c.l.b16 %v3943
    %v3997 = vunpack.c.l.b16 %v3956
    %v3998 = vunpack.c.l.b16 %v3969
    %v3999 = vunpack.c.l.b16 %v3982
    %v4000 = vpack.c.b16 %v3985, %v3984
    %v4001 = vpack.c.b16 %v3987, %v3986
    %v4002 = vpack.c.b16 %v3989, %v3988
    %v4003 = vpack.c.b16 %v3991, %v3990
    %v4004 = vpack.c.b16 %v3993, %v3992
    %v4005 = vpack.c.b16 %v3995, %v3994
    %v4006 = vpack.c.b16 %v3997, %v3996
    %v4007 = vpack.c.b16 %v3999, %v3998
    %vm4008 = vcmask 64512
    %v4010 = vsel %vm4008, %v4000, 0
    %v4013 = vsel %vm4008, %v4001, 0
    %v4016 = vsel %vm4008, %v4002, 0
    %v4019 = vsel %vm4008, %v4003, 0
    %v4022 = vsel %vm4008, %v4004, 0
    %v4025 = vsel %vm4008, %v4005, 0
    %v4028 = vsel %vm4008, %v4006, 0
    %v4031 = vsel %vm4008, %v4007, 0
    %vm4033 = vcmask 1043456
    %v4035 = vsel %vm4033, %v3983, 0
    %4037 = vmatprep.subr.bf16.mxu0 0
    %4038 = vmatpush1.bf16.msra.mxu0 %v4035
    %4039 = vmatprep.subr.bf16.mxu0 0
    %4040 = vmatpush1.bf16.msra.mxu0 0
    %4041 = vmatprep.subr.bf16.mxu0 0
    %4042 = vmatpush1.bf16.msra.mxu0 0
    %4043 = vmatprep.subr.bf16.mxu0 0
    %4044 = vmatpush1.bf16.msra.mxu0 0
    %4045 = vmatprep.subr.bf16.mxu0 0
    %4046 = vmatpush1.bf16.msra.mxu0 0
    %4047 = vmatprep.subr.bf16.mxu0 0
    %4048 = vmatpush1.bf16.msra.mxu0 0
    %4049 = vmatprep.subr.bf16.mxu0 0
    %4050 = vmatpush1.bf16.msra.mxu0 0
    %4051 = vmatprep.subr.bf16.mxu0 0
    %4052 = vmatpush1.bf16.msra.mxu0 0
    %4053 = vmatprep.subr.bf16.mxu0 0
    %4054 = vmatpush1.bf16.msra.mxu0 0
    %4055 = vmatprep.subr.bf16.mxu0 0
    %4056 = vmatpush1.bf16.msra.mxu0 0
    %4057 = vmatprep.subr.bf16.mxu0 0
    %4058 = vmatpush1.bf16.msra.mxu0 0
    %4059 = vmatprep.subr.bf16.mxu0 0
    %4060 = vmatpush1.bf16.msra.mxu0 0
    %4061 = vmatprep.subr.bf16.mxu0 0
    %4062 = vmatpush1.bf16.msra.mxu0 0
    %4063 = vmatprep.subr.bf16.mxu0 0
    %4064 = vmatpush1.bf16.msra.mxu0 0
    %4065 = vmatprep.subr.bf16.mxu0 0
    %4066 = vmatpush1.bf16.msra.mxu0 0
    %4067 = vmatprep.subr.bf16.mxu0 0
    %4068 = vmatpush1.bf16.msra.mxu0 0
    %4069 = vmatprep.mubr.bf16.mxu0 0
    %4070 = vmatmul.mubr.bf16.gmra.mrb[0].mxu0 %v4010
    %v4071 = vpop.f32.mrb[0].mxu0
    %v4072 = vadd.f32 0.0, %v4071
    %v4073 = vpop.f32.mrb[0].mxu0
    %v4074 = vpop.f32.mrb[0].mxu0
    %v4075 = vadd.f32 0.0, %v4074
    %v4076 = vpop.f32.mrb[0].mxu0
    %4077 = vmatprep.mubr.bf16.mxu0 0
    %4078 = vmatmul.mubr.bf16.gmra.mrb[0].mxu0 %v4013
    %v4079 = vpop.f32.mrb[0].mxu0
    %v4080 = vadd.f32 0.0, %v4079
    %v4081 = vpop.f32.mrb[0].mxu0
    %v4082 = vpop.f32.mrb[0].mxu0
    %v4083 = vadd.f32 0.0, %v4082
    %v4084 = vpop.f32.mrb[0].mxu0
    %4085 = vmatprep.mubr.bf16.mxu0 0
    %4086 = vmatmul.mubr.bf16.gmra.mrb[0].mxu0 %v4016
    %v4087 = vpop.f32.mrb[0].mxu0
    %v4088 = vadd.f32 0.0, %v4087
    %v4089 = vpop.f32.mrb[0].mxu0
    %v4090 = vpop.f32.mrb[0].mxu0
    %v4091 = vadd.f32 0.0, %v4090
    %v4092 = vpop.f32.mrb[0].mxu0
    %4093 = vmatprep.mubr.bf16.mxu0 0
    %4094 = vmatmul.mubr.bf16.gmra.mrb[0].mxu0 %v4019
    %v4095 = vpop.f32.mrb[0].mxu0
    %v4096 = vadd.f32 0.0, %v4095
    %v4097 = vpop.f32.mrb[0].mxu0
    %v4098 = vpop.f32.mrb[0].mxu0
    %v4099 = vadd.f32 0.0, %v4098
    %v4100 = vpop.f32.mrb[0].mxu0
    %4101 = vmatprep.mubr.bf16.mxu0 0
    %4102 = vmatmul.mubr.bf16.gmra.mrb[0].mxu0 %v4022
    %v4103 = vpop.f32.mrb[0].mxu0
    %v4104 = vadd.f32 0.0, %v4103
    %v4105 = vpop.f32.mrb[0].mxu0
    %v4106 = vpop.f32.mrb[0].mxu0
    %v4107 = vadd.f32 0.0, %v4106
    %v4108 = vpop.f32.mrb[0].mxu0
    %4109 = vmatprep.mubr.bf16.mxu0 0
    %4110 = vmatmul.mubr.bf16.gmra.mrb[0].mxu0 %v4025
    %v4111 = vpop.f32.mrb[0].mxu0
    %v4112 = vadd.f32 0.0, %v4111
    %v4113 = vpop.f32.mrb[0].mxu0
    %v4114 = vpop.f32.mrb[0].mxu0
    %v4115 = vadd.f32 0.0, %v4114
    %v4116 = vpop.f32.mrb[0].mxu0
    %4117 = vmatprep.mubr.bf16.mxu0 0
    %4118 = vmatmul.mubr.bf16.gmra.mrb[0].mxu0 %v4028
    %v4119 = vpop.f32.mrb[0].mxu0
    %v4120 = vadd.f32 0.0, %v4119
    %v4121 = vpop.f32.mrb[0].mxu0
    %v4122 = vpop.f32.mrb[0].mxu0
    %v4123 = vadd.f32 0.0, %v4122
    %v4124 = vpop.f32.mrb[0].mxu0
    %4125 = vmatprep.mubr.bf16.mxu0 0
    %4126 = vmatmul.mubr.bf16.gmra.mrb[0].mxu0 %v4031
    %v4127 = vpop.f32.mrb[0].mxu0
    %v4128 = vadd.f32 0.0, %v4127
    %v4129 = vpop.f32.mrb[0].mxu0
    %v4130 = vpop.f32.mrb[0].mxu0
    %v4131 = vadd.f32 0.0, %v4130
    %v4132 = vpop.f32.mrb[0].mxu0
    %4133 = vdwg.mxu0
    %v4134 = vadd.f32 %v3727, %v4072
    %v4135 = vadd.f32 %v3728, %v4075
    %v4136 = vadd.f32 %v3729, %v4080
    %v4137 = vadd.f32 %v3730, %v4083
    %v4138 = vadd.f32 %v3731, %v4088
    %v4139 = vadd.f32 %v3732, %v4091
    %v4140 = vadd.f32 %v3733, %v4096
    %v4141 = vadd.f32 %v3734, %v4099
    %v4142 = vadd.f32 %v3735, %v4104
    %v4143 = vadd.f32 %v3736, %v4107
    %v4144 = vadd.f32 %v3737, %v4112
    %v4145 = vadd.f32 %v3738, %v4115
    %v4146 = vadd.f32 %v3739, %v4120
    %v4147 = vadd.f32 %v3740, %v4123
    %v4148 = vadd.f32 %v3741, %v4128
    %v4149 = vadd.f32 %v3742, %v4131
    %s4150 = scalar_lea.vmem %s2, 4
    %v4151 = vld [vmem:[%s4150] sm:$0xf]
    %v4168 = vunpack.c.l.b16 %v3744
    %v4169 = vunpack.c.l.b16 %v3746
    %v4170 = vunpack.c.l.b16 %v3748
    %v4171 = vunpack.c.l.b16 %v3750
    %v4172 = vunpack.c.l.b16 %v3752
    %v4173 = vunpack.c.l.b16 %v3754
    %v4174 = vunpack.c.l.b16 %v3756
    %v4175 = vunpack.c.l.b16 %v3758
    %v4176 = vunpack.c.l.b16 %v3760
    %v4177 = vunpack.c.l.b16 %v3762
    %v4178 = vunpack.c.l.b16 %v3764
    %v4179 = vunpack.c.l.b16 %v3766
    %v4180 = vunpack.c.l.b16 %v3768
    %v4181 = vunpack.c.l.b16 %v3770
    %v4182 = vunpack.c.l.b16 %v3772
    %v4183 = vunpack.c.l.b16 %v3774
    %v4184 = vpack.c.b16 %v4169, %v4168
    %v4185 = vpack.c.b16 %v4171, %v4170
    %v4186 = vpack.c.b16 %v4173, %v4172
    %v4187 = vpack.c.b16 %v4175, %v4174
    %v4188 = vpack.c.b16 %v4177, %v4176
    %v4189 = vpack.c.b16 %v4179, %v4178
    %v4190 = vpack.c.b16 %v4181, %v4180
    %v4191 = vpack.c.b16 %v4183, %v4182
    %v4193 = vsel %vm4008, %v4184, 0
    %v4196 = vsel %vm4008, %v4185, 0
    %v4199 = vsel %vm4008, %v4186, 0
    %v4202 = vsel %vm4008, %v4187, 0
    %v4205 = vsel %vm4008, %v4188, 0
    %v4208 = vsel %vm4008, %v4189, 0
    %v4211 = vsel %vm4008, %v4190, 0
    %v4214 = vsel %vm4008, %v4191, 0
    %v4217 = vsel %vm4033, %v4151, 0
    %4219 = vmatprep.subr.bf16.mxu0 0
    %4220 = vmatpush1.bf16.msra.mxu0 %v4217
    %4221 = vmatprep.subr.bf16.mxu0 0
    %4222 = vmatpush1.bf16.msra.mxu0 0
    %4223 = vmatprep.subr.bf16.mxu0 0
    %4224 = vmatpush1.bf16.msra.mxu0 0
    %4225 = vmatprep.subr.bf16.mxu0 0
    %4226 = vmatpush1.bf16.msra.mxu0 0
    %4227 = vmatprep.subr.bf16.mxu0 0
    %4228 = vmatpush1.bf16.msra.mxu0 0
    %4229 = vmatprep.subr.bf16.mxu0 0
    %4230 = vmatpush1.bf16.msra.mxu0 0
    %4231 = vmatprep.subr.bf16.mxu0 0
    %4232 = vmatpush1.bf16.msra.mxu0 0
    %4233 = vmatprep.subr.bf16.mxu0 0
    %4234 = vmatpush1.bf16.msra.mxu0 0
    %4235 = vmatprep.subr.bf16.mxu0 0
    %4236 = vmatpush1.bf16.msra.mxu0 0
    %4237 = vmatprep.subr.bf16.mxu0 0
    %4238 = vmatpush1.bf16.msra.mxu0 0
    %4239 = vmatprep.subr.bf16.mxu0 0
    %4240 = vmatpush1.bf16.msra.mxu0 0
    %4241 = vmatprep.subr.bf16.mxu0 0
    %4242 = vmatpush1.bf16.msra.mxu0 0
    %4243 = vmatprep.subr.bf16.mxu0 0
    %4244 = vmatpush1.bf16.msra.mxu0 0
    %4245 = vmatprep.subr.bf16.mxu0 0
    %4246 = vmatpush1.bf16.msra.mxu0 0
    %4247 = vmatprep.subr.bf16.mxu0 0
    %4248 = vmatpush1.bf16.msra.mxu0 0
    %4249 = vmatprep.subr.bf16.mxu0 0
    %4250 = vmatpush1.bf16.msra.mxu0 0
    %4251 = vmatprep.mubr.bf16.mxu0 0
    %4252 = vmatmul.mubr.bf16.gmra.mrb[0].mxu0 %v4193
    %v4253 = vpop.f32.mrb[0].mxu0
    %v4254 = vadd.f32 0.0, %v4253
    %v4255 = vpop.f32.mrb[0].mxu0
    %v4256 = vpop.f32.mrb[0].mxu0
    %v4257 = vadd.f32 0.0, %v4256
    %v4258 = vpop.f32.mrb[0].mxu0
    %4259 = vmatprep.mubr.bf16.mxu0 0
    %4260 = vmatmul.mubr.bf16.gmra.mrb[0].mxu0 %v4196
    %v4261 = vpop.f32.mrb[0].mxu0
    %v4262 = vadd.f32 0.0, %v4261
    %v4263 = vpop.f32.mrb[0].mxu0
    %v4264 = vpop.f32.mrb[0].mxu0
    %v4265 = vadd.f32 0.0, %v4264
    %v4266 = vpop.f32.mrb[0].mxu0
    %4267 = vmatprep.mubr.bf16.mxu0 0
    %4268 = vmatmul.mubr.bf16.gmra.mrb[0].mxu0 %v4199
    %v4269 = vpop.f32.mrb[0].mxu0
    %v4270 = vadd.f32 0.0, %v4269
    %v4271 = vpop.f32.mrb[0].mxu0
    %v4272 = vpop.f32.mrb[0].mxu0
    %v4273 = vadd.f32 0.0, %v4272
    %v4274 = vpop.f32.mrb[0].mxu0
    %4275 = vmatprep.mubr.bf16.mxu0 0
    %4276 = vmatmul.mubr.bf16.gmra.mrb[0].mxu0 %v4202
    %v4277 = vpop.f32.mrb[0].mxu0
    %v4278 = vadd.f32 0.0, %v4277
    %v4279 = vpop.f32.mrb[0].mxu0
    %v4280 = vpop.f32.mrb[0].mxu0
    %v4281 = vadd.f32 0.0, %v4280
    %v4282 = vpop.f32.mrb[0].mxu0
    %4283 = vmatprep.mubr.bf16.mxu0 0
    %4284 = vmatmul.mubr.bf16.gmra.mrb[0].mxu0 %v4205
    %v4285 = vpop.f32.mrb[0].mxu0
    %v4286 = vadd.f32 0.0, %v4285
    %v4287 = vpop.f32.mrb[0].mxu0
    %v4288 = vpop.f32.mrb[0].mxu0
    %v4289 = vadd.f32 0.0, %v4288
    %v4290 = vpop.f32.mrb[0].mxu0
    %4291 = vmatprep.mubr.bf16.mxu0 0
    %4292 = vmatmul.mubr.bf16.gmra.mrb[0].mxu0 %v4208
    %v4293 = vpop.f32.mrb[0].mxu0
    %v4294 = vadd.f32 0.0, %v4293
    %v4295 = vpop.f32.mrb[0].mxu0
    %v4296 = vpop.f32.mrb[0].mxu0
    %v4297 = vadd.f32 0.0, %v4296
    %v4298 = vpop.f32.mrb[0].mxu0
    %4299 = vmatprep.mubr.bf16.mxu0 0
    %4300 = vmatmul.mubr.bf16.gmra.mrb[0].mxu0 %v4211
    %v4301 = vpop.f32.mrb[0].mxu0
    %v4302 = vadd.f32 0.0, %v4301
    %v4303 = vpop.f32.mrb[0].mxu0
    %v4304 = vpop.f32.mrb[0].mxu0
    %v4305 = vadd.f32 0.0, %v4304
    %v4306 = vpop.f32.mrb[0].mxu0
    %4307 = vmatprep.mubr.bf16.mxu0 0
    %4308 = vmatmul.mubr.bf16.gmra.mrb[0].mxu0 %v4214
    %v4309 = vpop.f32.mrb[0].mxu0
    %v4310 = vadd.f32 0.0, %v4309
    %v4311 = vpop.f32.mrb[0].mxu0
    %v4312 = vpop.f32.mrb[0].mxu0
    %v4313 = vadd.f32 0.0, %v4312
    %v4314 = vpop.f32.mrb[0].mxu0
    %4315 = vdwg.mxu0
    %v4316 = vadd.f32 %v4134, %v4254
    %v4317 = vadd.f32 %v4135, %v4257
    %v4318 = vadd.f32 %v4136, %v4262
    %v4319 = vadd.f32 %v4137, %v4265
    %v4320 = vadd.f32 %v4138, %v4270
    %v4321 = vadd.f32 %v4139, %v4273
    %v4322 = vadd.f32 %v4140, %v4278
    %v4323 = vadd.f32 %v4141, %v4281
    %v4324 = vadd.f32 %v4142, %v4286
    %v4325 = vadd.f32 %v4143, %v4289
    %v4326 = vadd.f32 %v4144, %v4294
    %v4327 = vadd.f32 %v4145, %v4297
    %v4328 = vadd.f32 %v4146, %v4302
    %v4329 = vadd.f32 %v4147, %v4305
    %v4330 = vadd.f32 %v4148, %v4310
    %v4331 = vadd.f32 %v4149, %v4313
    %v4332 = vld [vmem:[#allocation3 + $0x4] sm:$0xf]
    %v4333 = vld [vmem:[#allocation3 + $0x8] sm:$0x1]
    %v4334 = vld [vmem:[#allocation3 + $0x10] sm:$0xf]
    %v4335 = vld [vmem:[#allocation3 + $0x14] sm:$0x1]
    %v4336 = vld [vmem:[#allocation3 + $0x1c] sm:$0xf]
    %v4337 = vld [vmem:[#allocation3 + $0x20] sm:$0x1]
    %v4338 = vld [vmem:[#allocation3 + $0x28] sm:$0xf]
    %v4339 = vld [vmem:[#allocation3 + $0x2c] sm:$0x1]
    %v4340 = vld [vmem:[#allocation3 + $0x34] sm:$0xf]
    %v4341 = vld [vmem:[#allocation3 + $0x38] sm:$0x1]
    %v4342 = vld [vmem:[#allocation3 + $0x40] sm:$0xf]
    %v4343 = vld [vmem:[#allocation3 + $0x44] sm:$0x1]
    %v4344 = vld [vmem:[#allocation3 + $0x4c] sm:$0xf]
    %v4345 = vld [vmem:[#allocation3 + $0x50] sm:$0x1]
    %v4346 = vld [vmem:[#allocation3 + $0x58] sm:$0xf]
    %v4347 = vld [vmem:[#allocation3 + $0x5c] sm:$0x1]
    %v4348 = vld [vmem:[#allocation3 + $0x7c] sm:$0xf]
    %v4349 = vld [vmem:[#allocation3 + $0x80] sm:$0x1]
    %v4350 = vld [vmem:[#allocation3 + $0x88] sm:$0xf]
    %v4351 = vld [vmem:[#allocation3 + $0x8c] sm:$0x1]
    %v4352 = vld [vmem:[#allocation3 + $0x94] sm:$0xf]
    %v4353 = vld [vmem:[#allocation3 + $0x98] sm:$0x1]
    %v4354 = vld [vmem:[#allocation3 + $0xa0] sm:$0xf]
    %v4355 = vld [vmem:[#allocation3 + $0xa4] sm:$0x1]
    %v4356 = vld [vmem:[#allocation3 + $0xac] sm:$0xf]
    %v4357 = vld [vmem:[#allocation3 + $0xb0] sm:$0x1]
    %v4358 = vld [vmem:[#allocation3 + $0xb8] sm:$0xf]
    %v4359 = vld [vmem:[#allocation3 + $0xbc] sm:$0x1]
    %v4360 = vld [vmem:[#allocation3 + $0xc4] sm:$0xf]
    %v4361 = vld [vmem:[#allocation3 + $0xc8] sm:$0x1]
    %v4362 = vld [vmem:[#allocation3 + $0xd0] sm:$0xf]
    %v4363 = vld [vmem:[#allocation3 + $0xd4] sm:$0x1]
    %vm4364 = vsmask.f32 3328
    %vm4365 = vsmask.f32 7440
    %vm4366 = vmor %vm4364, %vm4365
    %v4368 = vshrl.u32 %v4332, 16
    %v4370 = vrot.slane %v4368, 4
    %v4371 = vshll.u32 %v4332, 16
    %v4373 = vrot.slane %v4371, 5
    %v4374 = vor.u32 %v4370, %v4373
    %v4375 = vrot.slane %v4374, 4
    %v4377 = vshll.u32 %v4333, 16
    %v4379 = vrot.slane %v4377, 5
    %v4380 = vsel %vm4366, %v4375, %v4379
    %v4382 = vshrl.u32 %v4334, 16
    %v4384 = vrot.slane %v4382, 4
    %v4385 = vshll.u32 %v4334, 16
    %v4387 = vrot.slane %v4385, 5
    %v4388 = vor.u32 %v4384, %v4387
    %v4389 = vrot.slane %v4388, 4
    %v4391 = vshll.u32 %v4335, 16
    %v4393 = vrot.slane %v4391, 5
    %v4394 = vsel %vm4366, %v4389, %v4393
    %v4396 = vshrl.u32 %v4336, 16
    %v4398 = vrot.slane %v4396, 4
    %v4399 = vshll.u32 %v4336, 16
    %v4401 = vrot.slane %v4399, 5
    %v4402 = vor.u32 %v4398, %v4401
    %v4403 = vrot.slane %v4402, 4
    %v4405 = vshll.u32 %v4337, 16
    %v4407 = vrot.slane %v4405, 5
    %v4408 = vsel %vm4366, %v4403, %v4407
    %v4410 = vshrl.u32 %v4338, 16
    %v4412 = vrot.slane %v4410, 4
    %v4413 = vshll.u32 %v4338, 16
    %v4415 = vrot.slane %v4413, 5
    %v4416 = vor.u32 %v4412, %v4415
    %v4417 = vrot.slane %v4416, 4
    %v4419 = vshll.u32 %v4339, 16
    %v4421 = vrot.slane %v4419, 5
    %v4422 = vsel %vm4366, %v4417, %v4421
    %v4424 = vshrl.u32 %v4340, 16
    %v4426 = vrot.slane %v4424, 4
    %v4427 = vshll.u32 %v4340, 16
    %v4429 = vrot.slane %v4427, 5
    %v4430 = vor.u32 %v4426, %v4429
    %v4431 = vrot.slane %v4430, 4
    %v4433 = vshll.u32 %v4341, 16
    %v4435 = vrot.slane %v4433, 5
    %v4436 = vsel %vm4366, %v4431, %v4435
    %v4438 = vshrl.u32 %v4342, 16
    %v4440 = vrot.slane %v4438, 4
    %v4441 = vshll.u32 %v4342, 16
    %v4443 = vrot.slane %v4441, 5
    %v4444 = vor.u32 %v4440, %v4443
    %v4445 = vrot.slane %v4444, 4
    %v4447 = vshll.u32 %v4343, 16
    %v4449 = vrot.slane %v4447, 5
    %v4450 = vsel %vm4366, %v4445, %v4449
    %v4452 = vshrl.u32 %v4344, 16
    %v4454 = vrot.slane %v4452, 4
    %v4455 = vshll.u32 %v4344, 16
    %v4457 = vrot.slane %v4455, 5
    %v4458 = vor.u32 %v4454, %v4457
    %v4459 = vrot.slane %v4458, 4
    %v4461 = vshll.u32 %v4345, 16
    %v4463 = vrot.slane %v4461, 5
    %v4464 = vsel %vm4366, %v4459, %v4463
    %v4466 = vshrl.u32 %v4346, 16
    %v4468 = vrot.slane %v4466, 4
    %v4469 = vshll.u32 %v4346, 16
    %v4471 = vrot.slane %v4469, 5
    %v4472 = vor.u32 %v4468, %v4471
    %v4473 = vrot.slane %v4472, 4
    %v4475 = vshll.u32 %v4347, 16
    %v4477 = vrot.slane %v4475, 5
    %v4478 = vsel %vm4366, %v4473, %v4477
    %v4480 = vshrl.u32 %v4348, 16
    %v4482 = vrot.slane %v4480, 4
    %v4483 = vshll.u32 %v4348, 16
    %v4485 = vrot.slane %v4483, 5
    %v4486 = vor.u32 %v4482, %v4485
    %v4487 = vrot.slane %v4486, 4
    %v4489 = vshll.u32 %v4349, 16
    %v4491 = vrot.slane %v4489, 5
    %v4492 = vsel %vm4366, %v4487, %v4491
    %v4494 = vshrl.u32 %v4350, 16
    %v4496 = vrot.slane %v4494, 4
    %v4497 = vshll.u32 %v4350, 16
    %v4499 = vrot.slane %v4497, 5
    %v4500 = vor.u32 %v4496, %v4499
    %v4501 = vrot.slane %v4500, 4
    %v4503 = vshll.u32 %v4351, 16
    %v4505 = vrot.slane %v4503, 5
    %v4506 = vsel %vm4366, %v4501, %v4505
    %v4508 = vshrl.u32 %v4352, 16
    %v4510 = vrot.slane %v4508, 4
    %v4511 = vshll.u32 %v4352, 16
    %v4513 = vrot.slane %v4511, 5
    %v4514 = vor.u32 %v4510, %v4513
    %v4515 = vrot.slane %v4514, 4
    %v4517 = vshll.u32 %v4353, 16
    %v4519 = vrot.slane %v4517, 5
    %v4520 = vsel %vm4366, %v4515, %v4519
    %v4522 = vshrl.u32 %v4354, 16
    %v4524 = vrot.slane %v4522, 4
    %v4525 = vshll.u32 %v4354, 16
    %v4527 = vrot.slane %v4525, 5
    %v4528 = vor.u32 %v4524, %v4527
    %v4529 = vrot.slane %v4528, 4
    %v4531 = vshll.u32 %v4355, 16
    %v4533 = vrot.slane %v4531, 5
    %v4534 = vsel %vm4366, %v4529, %v4533
    %v4536 = vshrl.u32 %v4356, 16
    %v4538 = vrot.slane %v4536, 4
    %v4539 = vshll.u32 %v4356, 16
    %v4541 = vrot.slane %v4539, 5
    %v4542 = vor.u32 %v4538, %v4541
    %v4543 = vrot.slane %v4542, 4
    %v4545 = vshll.u32 %v4357, 16
    %v4547 = vrot.slane %v4545, 5
    %v4548 = vsel %vm4366, %v4543, %v4547
    %v4550 = vshrl.u32 %v4358, 16
    %v4552 = vrot.slane %v4550, 4
    %v4553 = vshll.u32 %v4358, 16
    %v4555 = vrot.slane %v4553, 5
    %v4556 = vor.u32 %v4552, %v4555
    %v4557 = vrot.slane %v4556, 4
    %v4559 = vshll.u32 %v4359, 16
    %v4561 = vrot.slane %v4559, 5
    %v4562 = vsel %vm4366, %v4557, %v4561
    %v4564 = vshrl.u32 %v4360, 16
    %v4566 = vrot.slane %v4564, 4
    %v4567 = vshll.u32 %v4360, 16
    %v4569 = vrot.slane %v4567, 5
    %v4570 = vor.u32 %v4566, %v4569
    %v4571 = vrot.slane %v4570, 4
    %v4573 = vshll.u32 %v4361, 16
    %v4575 = vrot.slane %v4573, 5
    %v4576 = vsel %vm4366, %v4571, %v4575
    %v4578 = vshrl.u32 %v4362, 16
    %v4580 = vrot.slane %v4578, 4
    %v4581 = vshll.u32 %v4362, 16
    %v4583 = vrot.slane %v4581, 5
    %v4584 = vor.u32 %v4580, %v4583
    %v4585 = vrot.slane %v4584, 4
    %v4587 = vshll.u32 %v4363, 16
    %v4589 = vrot.slane %v4587, 5
    %v4590 = vsel %vm4366, %v4585, %v4589
    %s4591 = scalar_lea.vmem %s2, 8
    %v4592 = vld [vmem:[%s4591] sm:$0xf]
    %v4593 = vunpack.c.l.b16 %v4380
    %v4594 = vunpack.c.l.b16 %v4394
    %v4595 = vunpack.c.l.b16 %v4408
    %v4596 = vunpack.c.l.b16 %v4422
    %v4597 = vunpack.c.l.b16 %v4436
    %v4598 = vunpack.c.l.b16 %v4450
    %v4599 = vunpack.c.l.b16 %v4464
    %v4600 = vunpack.c.l.b16 %v4478
    %v4601 = vunpack.c.l.b16 %v4492
    %v4602 = vunpack.c.l.b16 %v4506
    %v4603 = vunpack.c.l.b16 %v4520
    %v4604 = vunpack.c.l.b16 %v4534
    %v4605 = vunpack.c.l.b16 %v4548
    %v4606 = vunpack.c.l.b16 %v4562
    %v4607 = vunpack.c.l.b16 %v4576
    %v4608 = vunpack.c.l.b16 %v4590
    %v4609 = vpack.c.b16 %v4594, %v4593
    %v4610 = vpack.c.b16 %v4596, %v4595
    %v4611 = vpack.c.b16 %v4598, %v4597
    %v4612 = vpack.c.b16 %v4600, %v4599
    %v4613 = vpack.c.b16 %v4602, %v4601
    %v4614 = vpack.c.b16 %v4604, %v4603
    %v4615 = vpack.c.b16 %v4606, %v4605
    %v4616 = vpack.c.b16 %v4608, %v4607
    %v4618 = vsel %vm4008, %v4609, 0
    %v4621 = vsel %vm4008, %v4610, 0
    %v4624 = vsel %vm4008, %v4611, 0
    %v4627 = vsel %vm4008, %v4612, 0
    %v4630 = vsel %vm4008, %v4613, 0
    %v4633 = vsel %vm4008, %v4614, 0
    %v4636 = vsel %vm4008, %v4615, 0
    %v4639 = vsel %vm4008, %v4616, 0
    %v4642 = vsel %vm4033, %v4592, 0
    %4644 = vmatprep.subr.bf16.mxu0 0
    %4645 = vmatpush1.bf16.msra.mxu0 %v4642
    %4646 = vmatprep.subr.bf16.mxu0 0
    %4647 = vmatpush1.bf16.msra.mxu0 0
    %4648 = vmatprep.subr.bf16.mxu0 0
    %4649 = vmatpush1.bf16.msra.mxu0 0
    %4650 = vmatprep.subr.bf16.mxu0 0
    %4651 = vmatpush1.bf16.msra.mxu0 0
    %4652 = vmatprep.subr.bf16.mxu0 0
    %4653 = vmatpush1.bf16.msra.mxu0 0
    %4654 = vmatprep.subr.bf16.mxu0 0
    %4655 = vmatpush1.bf16.msra.mxu0 0
    %4656 = vmatprep.subr.bf16.mxu0 0
    %4657 = vmatpush1.bf16.msra.mxu0 0
    %4658 = vmatprep.subr.bf16.mxu0 0
    %4659 = vmatpush1.bf16.msra.mxu0 0
    %4660 = vmatprep.subr.bf16.mxu0 0
    %4661 = vmatpush1.bf16.msra.mxu0 0
    %4662 = vmatprep.subr.bf16.mxu0 0
    %4663 = vmatpush1.bf16.msra.mxu0 0
    %4664 = vmatprep.subr.bf16.mxu0 0
    %4665 = vmatpush1.bf16.msra.mxu0 0
    %4666 = vmatprep.subr.bf16.mxu0 0
    %4667 = vmatpush1.bf16.msra.mxu0 0
    %4668 = vmatprep.subr.bf16.mxu0 0
    %4669 = vmatpush1.bf16.msra.mxu0 0
    %4670 = vmatprep.subr.bf16.mxu0 0
    %4671 = vmatpush1.bf16.msra.mxu0 0
    %4672 = vmatprep.subr.bf16.mxu0 0
    %4673 = vmatpush1.bf16.msra.mxu0 0
    %4674 = vmatprep.subr.bf16.mxu0 0
    %4675 = vmatpush1.bf16.msra.mxu0 0
    %4676 = vmatprep.mubr.bf16.mxu0 0
    %4677 = vmatmul.mubr.bf16.gmra.mrb[0].mxu0 %v4618
    %v4678 = vpop.f32.mrb[0].mxu0
    %v4679 = vadd.f32 0.0, %v4678
    %v4680 = vpop.f32.mrb[0].mxu0
    %v4681 = vpop.f32.mrb[0].mxu0
    %v4682 = vadd.f32 0.0, %v4681
    %v4683 = vpop.f32.mrb[0].mxu0
    %4684 = vmatprep.mubr.bf16.mxu0 0
    %4685 = vmatmul.mubr.bf16.gmra.mrb[0].mxu0 %v4621
    %v4686 = vpop.f32.mrb[0].mxu0
    %v4687 = vadd.f32 0.0, %v4686
    %v4688 = vpop.f32.mrb[0].mxu0
    %v4689 = vpop.f32.mrb[0].mxu0
    %v4690 = vadd.f32 0.0, %v4689
    %v4691 = vpop.f32.mrb[0].mxu0
    %4692 = vmatprep.mubr.bf16.mxu0 0
    %4693 = vmatmul.mubr.bf16.gmra.mrb[0].mxu0 %v4624
    %v4694 = vpop.f32.mrb[0].mxu0
    %v4695 = vadd.f32 0.0, %v4694
    %v4696 = vpop.f32.mrb[0].mxu0
    %v4697 = vpop.f32.mrb[0].mxu0
    %v4698 = vadd.f32 0.0, %v4697
    %v4699 = vpop.f32.mrb[0].mxu0
    %4700 = vmatprep.mubr.bf16.mxu0 0
    %4701 = vmatmul.mubr.bf16.gmra.mrb[0].mxu0 %v4627
    %v4702 = vpop.f32.mrb[0].mxu0
    %v4703 = vadd.f32 0.0, %v4702
    %v4704 = vpop.f32.mrb[0].mxu0
    %v4705 = vpop.f32.mrb[0].mxu0
    %v4706 = vadd.f32 0.0, %v4705
    %v4707 = vpop.f32.mrb[0].mxu0
    %4708 = vmatprep.mubr.bf16.mxu0 0
    %4709 = vmatmul.mubr.bf16.gmra.mrb[0].mxu0 %v4630
    %v4710 = vpop.f32.mrb[0].mxu0
    %v4711 = vadd.f32 0.0, %v4710
    %v4712 = vpop.f32.mrb[0].mxu0
    %v4713 = vpop.f32.mrb[0].mxu0
    %v4714 = vadd.f32 0.0, %v4713
    %v4715 = vpop.f32.mrb[0].mxu0
    %4716 = vmatprep.mubr.bf16.mxu0 0
    %4717 = vmatmul.mubr.bf16.gmra.mrb[0].mxu0 %v4633
    %v4718 = vpop.f32.mrb[0].mxu0
    %v4719 = vadd.f32 0.0, %v4718
    %v4720 = vpop.f32.mrb[0].mxu0
    %v4721 = vpop.f32.mrb[0].mxu0
    %v4722 = vadd.f32 0.0, %v4721
    %v4723 = vpop.f32.mrb[0].mxu0
    %4724 = vmatprep.mubr.bf16.mxu0 0
    %4725 = vmatmul.mubr.bf16.gmra.mrb[0].mxu0 %v4636
    %v4726 = vpop.f32.mrb[0].mxu0
    %v4727 = vadd.f32 0.0, %v4726
    %v4728 = vpop.f32.mrb[0].mxu0
    %v4729 = vpop.f32.mrb[0].mxu0
    %v4730 = vadd.f32 0.0, %v4729
    %v4731 = vpop.f32.mrb[0].mxu0
    %4732 = vmatprep.mubr.bf16.mxu0 0
    %4733 = vmatmul.mubr.bf16.gmra.mrb[0].mxu0 %v4639
    %v4734 = vpop.f32.mrb[0].mxu0
    %v4735 = vadd.f32 0.0, %v4734
    %v4736 = vpop.f32.mrb[0].mxu0
    %v4737 = vpop.f32.mrb[0].mxu0
    %v4738 = vadd.f32 0.0, %v4737
    %v4739 = vpop.f32.mrb[0].mxu0
    %4740 = vdwg.mxu0
    %v4741 = vadd.f32 %v4316, %v4679
    %v4742 = vadd.f32 %v4317, %v4682
    %v4743 = vadd.f32 %v4318, %v4687
    %v4744 = vadd.f32 %v4319, %v4690
    %v4745 = vadd.f32 %v4320, %v4695
    %v4746 = vadd.f32 %v4321, %v4698
    %v4747 = vadd.f32 %v4322, %v4703
    %v4748 = vadd.f32 %v4323, %v4706
    %v4749 = vadd.f32 %v4324, %v4711
    %v4750 = vadd.f32 %v4325, %v4714
    %v4751 = vadd.f32 %v4326, %v4719
    %v4752 = vadd.f32 %v4327, %v4722
    %v4753 = vadd.f32 %v4328, %v4727
    %v4754 = vadd.f32 %v4329, %v4730
    %v4755 = vadd.f32 %v4330, %v4735
    %v4756 = vadd.f32 %v4331, %v4738
    %v4757 = vld [vmem:[%s3548] sm:$0x8]
    %v4758 = vld [vmem:[%s3548 + $0x4] sm:$0xf]
    %v4759 = vld [vmem:[%s3548 + $0xc] sm:$0x8]
    %v4760 = vld [vmem:[%s3548 + $0x10] sm:$0xf]
    %v4761 = vld [vmem:[%s3548 + $0x18] sm:$0x8]
    %v4762 = vld [vmem:[%s3548 + $0x1c] sm:$0xf]
    %v4763 = vld [vmem:[%s3548 + $0x24] sm:$0x8]
    %v4764 = vld [vmem:[%s3548 + $0x28] sm:$0xf]
    %v4765 = vld [vmem:[%s3548 + $0x30] sm:$0x8]
    %v4766 = vld [vmem:[%s3548 + $0x34] sm:$0xf]
    %v4767 = vld [vmem:[%s3548 + $0x3c] sm:$0x8]
    %v4768 = vld [vmem:[%s3548 + $0x40] sm:$0xf]
    %v4769 = vld [vmem:[%s3548 + $0x48] sm:$0x8]
    %v4770 = vld [vmem:[%s3548 + $0x4c] sm:$0xf]
    %v4771 = vld [vmem:[%s3548 + $0x54] sm:$0x8]
    %v4772 = vld [vmem:[%s3548 + $0x58] sm:$0xf]
    %v4773 = vld [vmem:[%s3548 + $0x78] sm:$0x8]
    %v4774 = vld [vmem:[%s3548 + $0x7c] sm:$0xf]
    %v4775 = vld [vmem:[%s3548 + $0x84] sm:$0x8]
    %v4776 = vld [vmem:[%s3548 + $0x88] sm:$0xf]
    %v4777 = vld [vmem:[%s3548 + $0x90] sm:$0x8]
    %v4778 = vld [vmem:[%s3548 + $0x94] sm:$0xf]
    %v4779 = vld [vmem:[%s3548 + $0x9c] sm:$0x8]
    %v4780 = vld [vmem:[%s3548 + $0xa0] sm:$0xf]
    %v4781 = vld [vmem:[%s3548 + $0xa8] sm:$0x8]
    %v4782 = vld [vmem:[%s3548 + $0xac] sm:$0xf]
    %v4783 = vld [vmem:[%s3548 + $0xb4] sm:$0x8]
    %v4784 = vld [vmem:[%s3548 + $0xb8] sm:$0xf]
    %v4785 = vld [vmem:[%s3548 + $0xc0] sm:$0x8]
    %v4786 = vld [vmem:[%s3548 + $0xc4] sm:$0xf]
    %v4787 = vld [vmem:[%s3548 + $0xcc] sm:$0x8]
    %v4788 = vld [vmem:[%s3548 + $0xd0] sm:$0xf]
    %v4790 = vshrl.u32 %v4757, 16
    %v4792 = vrot.slane %v4790, 7
    %v4793 = vrot.slane %v4792, 4
    %v4795 = vshrl.u32 %v4758, 16
    %v4797 = vrot.slane %v4795, 7
    %v4798 = vshll.u32 %v4758, 16
    %v4800 = vor.u32 %v4797, %v4798
    %v4801 = vsel %vm947, %v4793, %v4800
    %v4803 = vshrl.u32 %v4759, 16
    %v4805 = vrot.slane %v4803, 7
    %v4806 = vrot.slane %v4805, 4
    %v4808 = vshrl.u32 %v4760, 16
    %v4810 = vrot.slane %v4808, 7
    %v4811 = vshll.u32 %v4760, 16
    %v4813 = vor.u32 %v4810, %v4811
    %v4814 = vsel %vm947, %v4806, %v4813
    %v4816 = vshrl.u32 %v4761, 16
    %v4818 = vrot.slane %v4816, 7
    %v4819 = vrot.slane %v4818, 4
    %v4821 = vshrl.u32 %v4762, 16
    %v4823 = vrot.slane %v4821, 7
    %v4824 = vshll.u32 %v4762, 16
    %v4826 = vor.u32 %v4823, %v4824
    %v4827 = vsel %vm947, %v4819, %v4826
    %v4829 = vshrl.u32 %v4763, 16
    %v4831 = vrot.slane %v4829, 7
    %v4832 = vrot.slane %v4831, 4
    %v4834 = vshrl.u32 %v4764, 16
    %v4836 = vrot.slane %v4834, 7
    %v4837 = vshll.u32 %v4764, 16
    %v4839 = vor.u32 %v4836, %v4837
    %v4840 = vsel %vm947, %v4832, %v4839
    %v4842 = vshrl.u32 %v4765, 16
    %v4844 = vrot.slane %v4842, 7
    %v4845 = vrot.slane %v4844, 4
    %v4847 = vshrl.u32 %v4766, 16
    %v4849 = vrot.slane %v4847, 7
    %v4850 = vshll.u32 %v4766, 16
    %v4852 = vor.u32 %v4849, %v4850
    %v4853 = vsel %vm947, %v4845, %v4852
    %v4855 = vshrl.u32 %v4767, 16
    %v4857 = vrot.slane %v4855, 7
    %v4858 = vrot.slane %v4857, 4
    %v4860 = vshrl.u32 %v4768, 16
    %v4862 = vrot.slane %v4860, 7
    %v4863 = vshll.u32 %v4768, 16
    %v4865 = vor.u32 %v4862, %v4863
    %v4866 = vsel %vm947, %v4858, %v4865
    %v4868 = vshrl.u32 %v4769, 16
    %v4870 = vrot.slane %v4868, 7
    %v4871 = vrot.slane %v4870, 4
    %v4873 = vshrl.u32 %v4770, 16
    %v4875 = vrot.slane %v4873, 7
    %v4876 = vshll.u32 %v4770, 16
    %v4878 = vor.u32 %v4875, %v4876
    %v4879 = vsel %vm947, %v4871, %v4878
    %v4881 = vshrl.u32 %v4771, 16
    %v4883 = vrot.slane %v4881, 7
    %v4884 = vrot.slane %v4883, 4
    %v4886 = vshrl.u32 %v4772, 16
    %v4888 = vrot.slane %v4886, 7
    %v4889 = vshll.u32 %v4772, 16
    %v4891 = vor.u32 %v4888, %v4889
    %v4892 = vsel %vm947, %v4884, %v4891
    %v4894 = vshrl.u32 %v4773, 16
    %v4896 = vrot.slane %v4894, 7
    %v4897 = vrot.slane %v4896, 4
    %v4899 = vshrl.u32 %v4774, 16
    %v4901 = vrot.slane %v4899, 7
    %v4902 = vshll.u32 %v4774, 16
    %v4904 = vor.u32 %v4901, %v4902
    %v4905 = vsel %vm947, %v4897, %v4904
    %v4907 = vshrl.u32 %v4775, 16
    %v4909 = vrot.slane %v4907, 7
    %v4910 = vrot.slane %v4909, 4
    %v4912 = vshrl.u32 %v4776, 16
    %v4914 = vrot.slane %v4912, 7
    %v4915 = vshll.u32 %v4776, 16
    %v4917 = vor.u32 %v4914, %v4915
    %v4918 = vsel %vm947, %v4910, %v4917
    %v4920 = vshrl.u32 %v4777, 16
    %v4922 = vrot.slane %v4920, 7
    %v4923 = vrot.slane %v4922, 4
    %v4925 = vshrl.u32 %v4778, 16
    %v4927 = vrot.slane %v4925, 7
    %v4928 = vshll.u32 %v4778, 16
    %v4930 = vor.u32 %v4927, %v4928
    %v4931 = vsel %vm947, %v4923, %v4930
    %v4933 = vshrl.u32 %v4779, 16
    %v4935 = vrot.slane %v4933, 7
    %v4936 = vrot.slane %v4935, 4
    %v4938 = vshrl.u32 %v4780, 16
    %v4940 = vrot.slane %v4938, 7
    %v4941 = vshll.u32 %v4780, 16
    %v4943 = vor.u32 %v4940, %v4941
    %v4944 = vsel %vm947, %v4936, %v4943
    %v4946 = vshrl.u32 %v4781, 16
    %v4948 = vrot.slane %v4946, 7
    %v4949 = vrot.slane %v4948, 4
    %v4951 = vshrl.u32 %v4782, 16
    %v4953 = vrot.slane %v4951, 7
    %v4954 = vshll.u32 %v4782, 16
    %v4956 = vor.u32 %v4953, %v4954
    %v4957 = vsel %vm947, %v4949, %v4956
    %v4959 = vshrl.u32 %v4783, 16
    %v4961 = vrot.slane %v4959, 7
    %v4962 = vrot.slane %v4961, 4
    %v4964 = vshrl.u32 %v4784, 16
    %v4966 = vrot.slane %v4964, 7
    %v4967 = vshll.u32 %v4784, 16
    %v4969 = vor.u32 %v4966, %v4967
    %v4970 = vsel %vm947, %v4962, %v4969
    %v4972 = vshrl.u32 %v4785, 16
    %v4974 = vrot.slane %v4972, 7
    %v4975 = vrot.slane %v4974, 4
    %v4977 = vshrl.u32 %v4786, 16
    %v4979 = vrot.slane %v4977, 7
    %v4980 = vshll.u32 %v4786, 16
    %v4982 = vor.u32 %v4979, %v4980
    %v4983 = vsel %vm947, %v4975, %v4982
    %v4985 = vshrl.u32 %v4787, 16
    %v4987 = vrot.slane %v4985, 7
    %v4988 = vrot.slane %v4987, 4
    %v4990 = vshrl.u32 %v4788, 16
    %v4992 = vrot.slane %v4990, 7
    %v4993 = vshll.u32 %v4788, 16
    %v4995 = vor.u32 %v4992, %v4993
    %v4996 = vsel %vm947, %v4988, %v4995
    %s4997 = scalar_lea.vmem %s2, 12
    %v4998 = vld [vmem:[%s4997] sm:$0xf]
    %v4999 = vunpack.c.l.b16 %v4801
    %v5000 = vunpack.c.l.b16 %v4814
    %v5001 = vunpack.c.l.b16 %v4827
    %v5002 = vunpack.c.l.b16 %v4840
    %v5003 = vunpack.c.l.b16 %v4853
    %v5004 = vunpack.c.l.b16 %v4866
    %v5005 = vunpack.c.l.b16 %v4879
    %v5006 = vunpack.c.l.b16 %v4892
    %v5007 = vunpack.c.l.b16 %v4905
    %v5008 = vunpack.c.l.b16 %v4918
    %v5009 = vunpack.c.l.b16 %v4931
    %v5010 = vunpack.c.l.b16 %v4944
    %v5011 = vunpack.c.l.b16 %v4957
    %v5012 = vunpack.c.l.b16 %v4970
    %v5013 = vunpack.c.l.b16 %v4983
    %v5014 = vunpack.c.l.b16 %v4996
    %v5015 = vpack.c.b16 %v5000, %v4999
    %v5016 = vpack.c.b16 %v5002, %v5001
    %v5017 = vpack.c.b16 %v5004, %v5003
    %v5018 = vpack.c.b16 %v5006, %v5005
    %v5019 = vpack.c.b16 %v5008, %v5007
    %v5020 = vpack.c.b16 %v5010, %v5009
    %v5021 = vpack.c.b16 %v5012, %v5011
    %v5022 = vpack.c.b16 %v5014, %v5013
    %v5024 = vsel %vm4008, %v5015, 0
    %v5027 = vsel %vm4008, %v5016, 0
    %v5030 = vsel %vm4008, %v5017, 0
    %v5033 = vsel %vm4008, %v5018, 0
    %v5036 = vsel %vm4008, %v5019, 0
    %v5039 = vsel %vm4008, %v5020, 0
    %v5042 = vsel %vm4008, %v5021, 0
    %v5045 = vsel %vm4008, %v5022, 0
    %v5048 = vsel %vm4033, %v4998, 0
    %5050 = vmatprep.subr.bf16.mxu0 0
    %5051 = vmatpush1.bf16.msra.mxu0 %v5048
    %5052 = vmatprep.subr.bf16.mxu0 0
    %5053 = vmatpush1.bf16.msra.mxu0 0
    %5054 = vmatprep.subr.bf16.mxu0 0
    %5055 = vmatpush1.bf16.msra.mxu0 0
    %5056 = vmatprep.subr.bf16.mxu0 0
    %5057 = vmatpush1.bf16.msra.mxu0 0
    %5058 = vmatprep.subr.bf16.mxu0 0
    %5059 = vmatpush1.bf16.msra.mxu0 0
    %5060 = vmatprep.subr.bf16.mxu0 0
    %5061 = vmatpush1.bf16.msra.mxu0 0
    %5062 = vmatprep.subr.bf16.mxu0 0
    %5063 = vmatpush1.bf16.msra.mxu0 0
    %5064 = vmatprep.subr.bf16.mxu0 0
    %5065 = vmatpush1.bf16.msra.mxu0 0
    %5066 = vmatprep.subr.bf16.mxu0 0
    %5067 = vmatpush1.bf16.msra.mxu0 0
    %5068 = vmatprep.subr.bf16.mxu0 0
    %5069 = vmatpush1.bf16.msra.mxu0 0
    %5070 = vmatprep.subr.bf16.mxu0 0
    %5071 = vmatpush1.bf16.msra.mxu0 0
    %5072 = vmatprep.subr.bf16.mxu0 0
    %5073 = vmatpush1.bf16.msra.mxu0 0
    %5074 = vmatprep.subr.bf16.mxu0 0
    %5075 = vmatpush1.bf16.msra.mxu0 0
    %5076 = vmatprep.subr.bf16.mxu0 0
    %5077 = vmatpush1.bf16.msra.mxu0 0
    %5078 = vmatprep.subr.bf16.mxu0 0
    %5079 = vmatpush1.bf16.msra.mxu0 0
    %5080 = vmatprep.subr.bf16.mxu0 0
    %5081 = vmatpush1.bf16.msra.mxu0 0
    %5082 = vmatprep.mubr.bf16.mxu0 0
    %5083 = vmatmul.mubr.bf16.gmra.mrb[0].mxu0 %v5024
    %v5084 = vpop.f32.mrb[0].mxu0
    %v5085 = vadd.f32 0.0, %v5084
    %v5086 = vpop.f32.mrb[0].mxu0
    %v5087 = vpop.f32.mrb[0].mxu0
    %v5088 = vadd.f32 0.0, %v5087
    %v5089 = vpop.f32.mrb[0].mxu0
    %5090 = vmatprep.mubr.bf16.mxu0 0
    %5091 = vmatmul.mubr.bf16.gmra.mrb[0].mxu0 %v5027
    %v5092 = vpop.f32.mrb[0].mxu0
    %v5093 = vadd.f32 0.0, %v5092
    %v5094 = vpop.f32.mrb[0].mxu0
    %v5095 = vpop.f32.mrb[0].mxu0
    %v5096 = vadd.f32 0.0, %v5095
    %v5097 = vpop.f32.mrb[0].mxu0
    %5098 = vmatprep.mubr.bf16.mxu0 0
    %5099 = vmatmul.mubr.bf16.gmra.mrb[0].mxu0 %v5030
    %v5100 = vpop.f32.mrb[0].mxu0
    %v5101 = vadd.f32 0.0, %v5100
    %v5102 = vpop.f32.mrb[0].mxu0
    %v5103 = vpop.f32.mrb[0].mxu0
    %v5104 = vadd.f32 0.0, %v5103
    %v5105 = vpop.f32.mrb[0].mxu0
    %5106 = vmatprep.mubr.bf16.mxu0 0
    %5107 = vmatmul.mubr.bf16.gmra.mrb[0].mxu0 %v5033
    %v5108 = vpop.f32.mrb[0].mxu0
    %v5109 = vadd.f32 0.0, %v5108
    %v5110 = vpop.f32.mrb[0].mxu0
    %v5111 = vpop.f32.mrb[0].mxu0
    %v5112 = vadd.f32 0.0, %v5111
    %v5113 = vpop.f32.mrb[0].mxu0
    %5114 = vmatprep.mubr.bf16.mxu0 0
    %5115 = vmatmul.mubr.bf16.gmra.mrb[0].mxu0 %v5036
    %v5116 = vpop.f32.mrb[0].mxu0
    %v5117 = vadd.f32 0.0, %v5116
    %v5118 = vpop.f32.mrb[0].mxu0
    %v5119 = vpop.f32.mrb[0].mxu0
    %v5120 = vadd.f32 0.0, %v5119
    %v5121 = vpop.f32.mrb[0].mxu0
    %5122 = vmatprep.mubr.bf16.mxu0 0
    %5123 = vmatmul.mubr.bf16.gmra.mrb[0].mxu0 %v5039
    %v5124 = vpop.f32.mrb[0].mxu0
    %v5125 = vadd.f32 0.0, %v5124
    %v5126 = vpop.f32.mrb[0].mxu0
    %v5127 = vpop.f32.mrb[0].mxu0
    %v5128 = vadd.f32 0.0, %v5127
    %v5129 = vpop.f32.mrb[0].mxu0
    %5130 = vmatprep.mubr.bf16.mxu0 0
    %5131 = vmatmul.mubr.bf16.gmra.mrb[0].mxu0 %v5042
    %v5132 = vpop.f32.mrb[0].mxu0
    %v5133 = vadd.f32 0.0, %v5132
    %v5134 = vpop.f32.mrb[0].mxu0
    %v5135 = vpop.f32.mrb[0].mxu0
    %v5136 = vadd.f32 0.0, %v5135
    %v5137 = vpop.f32.mrb[0].mxu0
    %5138 = vmatprep.mubr.bf16.mxu0 0
    %5139 = vmatmul.mubr.bf16.gmra.mrb[0].mxu0 %v5045
    %v5140 = vpop.f32.mrb[0].mxu0
    %v5141 = vadd.f32 0.0, %v5140
    %v5142 = vpop.f32.mrb[0].mxu0
    %v5143 = vpop.f32.mrb[0].mxu0
    %v5144 = vadd.f32 0.0, %v5143
    %v5145 = vpop.f32.mrb[0].mxu0
    %5146 = vdwg.mxu0
    %v5147 = vadd.f32 %v4741, %v5085
    %v5148 = vadd.f32 %v4742, %v5088
    %v5149 = vadd.f32 %v4743, %v5093
    %v5150 = vadd.f32 %v4744, %v5096
    %v5151 = vadd.f32 %v4745, %v5101
    %v5152 = vadd.f32 %v4746, %v5104
    %v5153 = vadd.f32 %v4747, %v5109
    %v5154 = vadd.f32 %v4748, %v5112
    %v5155 = vadd.f32 %v4749, %v5117
    %v5156 = vadd.f32 %v4750, %v5120
    %v5157 = vadd.f32 %v4751, %v5125
    %v5158 = vadd.f32 %v4752, %v5128
    %v5159 = vadd.f32 %v4753, %v5133
    %v5160 = vadd.f32 %v4754, %v5136
    %v5161 = vadd.f32 %v4755, %v5141
    %v5162 = vadd.f32 %v4756, %v5144
    %s5163 = scalar_lea.vmem %s2, 16
    %v5164 = vld [vmem:[%s5163] sm:$0xf]
    %v5181 = vunpack.c.l.b16 %v4758
    %v5182 = vunpack.c.l.b16 %v4760
    %v5183 = vunpack.c.l.b16 %v4762
    %v5184 = vunpack.c.l.b16 %v4764
    %v5185 = vunpack.c.l.b16 %v4766
    %v5186 = vunpack.c.l.b16 %v4768
    %v5187 = vunpack.c.l.b16 %v4770
    %v5188 = vunpack.c.l.b16 %v4772
    %v5189 = vunpack.c.l.b16 %v4774
    %v5190 = vunpack.c.l.b16 %v4776
    %v5191 = vunpack.c.l.b16 %v4778
    %v5192 = vunpack.c.l.b16 %v4780
    %v5193 = vunpack.c.l.b16 %v4782
    %v5194 = vunpack.c.l.b16 %v4784
    %v5195 = vunpack.c.l.b16 %v4786
    %v5196 = vunpack.c.l.b16 %v4788
    %v5197 = vpack.c.b16 %v5182, %v5181
    %v5198 = vpack.c.b16 %v5184, %v5183
    %v5199 = vpack.c.b16 %v5186, %v5185
    %v5200 = vpack.c.b16 %v5188, %v5187
    %v5201 = vpack.c.b16 %v5190, %v5189
    %v5202 = vpack.c.b16 %v5192, %v5191
    %v5203 = vpack.c.b16 %v5194, %v5193
    %v5204 = vpack.c.b16 %v5196, %v5195
    %v5206 = vsel %vm4008, %v5197, 0
    %v5209 = vsel %vm4008, %v5198, 0
    %v5212 = vsel %vm4008, %v5199, 0
    %v5215 = vsel %vm4008, %v5200, 0
    %v5218 = vsel %vm4008, %v5201, 0
    %v5221 = vsel %vm4008, %v5202, 0
    %v5224 = vsel %vm4008, %v5203, 0
    %v5227 = vsel %vm4008, %v5204, 0
    %v5230 = vsel %vm4033, %v5164, 0
    %5232 = vmatprep.subr.bf16.mxu0 0
    %5233 = vmatpush1.bf16.msra.mxu0 %v5230
    %5234 = vmatprep.subr.bf16.mxu0 0
    %5235 = vmatpush1.bf16.msra.mxu0 0
    %5236 = vmatprep.subr.bf16.mxu0 0
    %5237 = vmatpush1.bf16.msra.mxu0 0
    %5238 = vmatprep.subr.bf16.mxu0 0
    %5239 = vmatpush1.bf16.msra.mxu0 0
    %5240 = vmatprep.subr.bf16.mxu0 0
    %5241 = vmatpush1.bf16.msra.mxu0 0
    %5242 = vmatprep.subr.bf16.mxu0 0
    %5243 = vmatpush1.bf16.msra.mxu0 0
    %5244 = vmatprep.subr.bf16.mxu0 0
    %5245 = vmatpush1.bf16.msra.mxu0 0
    %5246 = vmatprep.subr.bf16.mxu0 0
    %5247 = vmatpush1.bf16.msra.mxu0 0
    %5248 = vmatprep.subr.bf16.mxu0 0
    %5249 = vmatpush1.bf16.msra.mxu0 0
    %5250 = vmatprep.subr.bf16.mxu0 0
    %5251 = vmatpush1.bf16.msra.mxu0 0
    %5252 = vmatprep.subr.bf16.mxu0 0
    %5253 = vmatpush1.bf16.msra.mxu0 0
    %5254 = vmatprep.subr.bf16.mxu0 0
    %5255 = vmatpush1.bf16.msra.mxu0 0
    %5256 = vmatprep.subr.bf16.mxu0 0
    %5257 = vmatpush1.bf16.msra.mxu0 0
    %5258 = vmatprep.subr.bf16.mxu0 0
    %5259 = vmatpush1.bf16.msra.mxu0 0
    %5260 = vmatprep.subr.bf16.mxu0 0
    %5261 = vmatpush1.bf16.msra.mxu0 0
    %5262 = vmatprep.subr.bf16.mxu0 0
    %5263 = vmatpush1.bf16.msra.mxu0 0
    %5264 = vmatprep.mubr.bf16.mxu0 0
    %5265 = vmatmul.mubr.bf16.gmra.mrb[0].mxu0 %v5206
    %v5266 = vpop.f32.mrb[0].mxu0
    %v5267 = vadd.f32 0.0, %v5266
    %v5268 = vpop.f32.mrb[0].mxu0
    %v5269 = vpop.f32.mrb[0].mxu0
    %v5270 = vadd.f32 0.0, %v5269
    %v5271 = vpop.f32.mrb[0].mxu0
    %5272 = vmatprep.mubr.bf16.mxu0 0
    %5273 = vmatmul.mubr.bf16.gmra.mrb[0].mxu0 %v5209
    %v5274 = vpop.f32.mrb[0].mxu0
    %v5275 = vadd.f32 0.0, %v5274
    %v5276 = vpop.f32.mrb[0].mxu0
    %v5277 = vpop.f32.mrb[0].mxu0
    %v5278 = vadd.f32 0.0, %v5277
    %v5279 = vpop.f32.mrb[0].mxu0
    %5280 = vmatprep.mubr.bf16.mxu0 0
    %5281 = vmatmul.mubr.bf16.gmra.mrb[0].mxu0 %v5212
    %v5282 = vpop.f32.mrb[0].mxu0
    %v5283 = vadd.f32 0.0, %v5282
    %v5284 = vpop.f32.mrb[0].mxu0
    %v5285 = vpop.f32.mrb[0].mxu0
    %v5286 = vadd.f32 0.0, %v5285
    %v5287 = vpop.f32.mrb[0].mxu0
    %5288 = vmatprep.mubr.bf16.mxu0 0
    %5289 = vmatmul.mubr.bf16.gmra.mrb[0].mxu0 %v5215
    %v5290 = vpop.f32.mrb[0].mxu0
    %v5291 = vadd.f32 0.0, %v5290
    %v5292 = vpop.f32.mrb[0].mxu0
    %v5293 = vpop.f32.mrb[0].mxu0
    %v5294 = vadd.f32 0.0, %v5293
    %v5295 = vpop.f32.mrb[0].mxu0
    %5296 = vmatprep.mubr.bf16.mxu0 0
    %5297 = vmatmul.mubr.bf16.gmra.mrb[0].mxu0 %v5218
    %v5298 = vpop.f32.mrb[0].mxu0
    %v5299 = vadd.f32 0.0, %v5298
    %v5300 = vpop.f32.mrb[0].mxu0
    %v5301 = vpop.f32.mrb[0].mxu0
    %v5302 = vadd.f32 0.0, %v5301
    %v5303 = vpop.f32.mrb[0].mxu0
    %5304 = vmatprep.mubr.bf16.mxu0 0
    %5305 = vmatmul.mubr.bf16.gmra.mrb[0].mxu0 %v5221
    %v5306 = vpop.f32.mrb[0].mxu0
    %v5307 = vadd.f32 0.0, %v5306
    %v5308 = vpop.f32.mrb[0].mxu0
    %v5309 = vpop.f32.mrb[0].mxu0
    %v5310 = vadd.f32 0.0, %v5309
    %v5311 = vpop.f32.mrb[0].mxu0
    %5312 = vmatprep.mubr.bf16.mxu0 0
    %5313 = vmatmul.mubr.bf16.gmra.mrb[0].mxu0 %v5224
    %v5314 = vpop.f32.mrb[0].mxu0
    %v5315 = vadd.f32 0.0, %v5314
    %v5316 = vpop.f32.mrb[0].mxu0
    %v5317 = vpop.f32.mrb[0].mxu0
    %v5318 = vadd.f32 0.0, %v5317
    %v5319 = vpop.f32.mrb[0].mxu0
    %5320 = vmatprep.mubr.bf16.mxu0 0
    %5321 = vmatmul.mubr.bf16.gmra.mrb[0].mxu0 %v5227
    %v5322 = vpop.f32.mrb[0].mxu0
    %v5323 = vadd.f32 0.0, %v5322
    %v5324 = vpop.f32.mrb[0].mxu0
    %v5325 = vpop.f32.mrb[0].mxu0
    %v5326 = vadd.f32 0.0, %v5325
    %v5327 = vpop.f32.mrb[0].mxu0
    %5328 = vdwg.mxu0
    %v5329 = vadd.f32 %v5147, %v5267
    %v5330 = vadd.f32 %v5148, %v5270
    %v5331 = vadd.f32 %v5149, %v5275
    %v5332 = vadd.f32 %v5150, %v5278
    %v5333 = vadd.f32 %v5151, %v5283
    %v5334 = vadd.f32 %v5152, %v5286
    %v5335 = vadd.f32 %v5153, %v5291
    %v5336 = vadd.f32 %v5154, %v5294
    %v5337 = vadd.f32 %v5155, %v5299
    %v5338 = vadd.f32 %v5156, %v5302
    %v5339 = vadd.f32 %v5157, %v5307
    %v5340 = vadd.f32 %v5158, %v5310
    %v5341 = vadd.f32 %v5159, %v5315
    %v5342 = vadd.f32 %v5160, %v5318
    %v5343 = vadd.f32 %v5161, %v5323
    %v5344 = vadd.f32 %v5162, %v5326
    %v5345 = vld [vmem:[%s3548 + $0x4] sm:$0xf]
    %v5346 = vld [vmem:[%s3548 + $0x8] sm:$0x1]
    %v5347 = vld [vmem:[%s3548 + $0x10] sm:$0xf]
    %v5348 = vld [vmem:[%s3548 + $0x14] sm:$0x1]
    %v5349 = vld [vmem:[%s3548 + $0x1c] sm:$0xf]
    %v5350 = vld [vmem:[%s3548 + $0x20] sm:$0x1]
    %v5351 = vld [vmem:[%s3548 + $0x28] sm:$0xf]
    %v5352 = vld [vmem:[%s3548 + $0x2c] sm:$0x1]
    %v5353 = vld [vmem:[%s3548 + $0x34] sm:$0xf]
    %v5354 = vld [vmem:[%s3548 + $0x38] sm:$0x1]
    %v5355 = vld [vmem:[%s3548 + $0x40] sm:$0xf]
    %v5356 = vld [vmem:[%s3548 + $0x44] sm:$0x1]
    %v5357 = vld [vmem:[%s3548 + $0x4c] sm:$0xf]
    %v5358 = vld [vmem:[%s3548 + $0x50] sm:$0x1]
    %v5359 = vld [vmem:[%s3548 + $0x58] sm:$0xf]
    %v5360 = vld [vmem:[%s3548 + $0x5c] sm:$0x1]
    %v5361 = vld [vmem:[%s3548 + $0x7c] sm:$0xf]
    %v5362 = vld [vmem:[%s3548 + $0x80] sm:$0x1]
    %v5363 = vld [vmem:[%s3548 + $0x88] sm:$0xf]
    %v5364 = vld [vmem:[%s3548 + $0x8c] sm:$0x1]
    %v5365 = vld [vmem:[%s3548 + $0x94] sm:$0xf]
    %v5366 = vld [vmem:[%s3548 + $0x98] sm:$0x1]
    %v5367 = vld [vmem:[%s3548 + $0xa0] sm:$0xf]
    %v5368 = vld [vmem:[%s3548 + $0xa4] sm:$0x1]
    %v5369 = vld [vmem:[%s3548 + $0xac] sm:$0xf]
    %v5370 = vld [vmem:[%s3548 + $0xb0] sm:$0x1]
    %v5371 = vld [vmem:[%s3548 + $0xb8] sm:$0xf]
    %v5372 = vld [vmem:[%s3548 + $0xbc] sm:$0x1]
    %v5373 = vld [vmem:[%s3548 + $0xc4] sm:$0xf]
    %v5374 = vld [vmem:[%s3548 + $0xc8] sm:$0x1]
    %v5375 = vld [vmem:[%s3548 + $0xd0] sm:$0xf]
    %v5376 = vld [vmem:[%s3548 + $0xd4] sm:$0x1]
    %v5378 = vshrl.u32 %v5345, 16
    %v5380 = vrot.slane %v5378, 4
    %v5381 = vshll.u32 %v5345, 16
    %v5383 = vrot.slane %v5381, 5
    %v5384 = vor.u32 %v5380, %v5383
    %v5385 = vrot.slane %v5384, 4
    %v5387 = vshll.u32 %v5346, 16
    %v5389 = vrot.slane %v5387, 5
    %v5390 = vsel %vm4366, %v5385, %v5389
    %v5392 = vshrl.u32 %v5347, 16
    %v5394 = vrot.slane %v5392, 4
    %v5395 = vshll.u32 %v5347, 16
    %v5397 = vrot.slane %v5395, 5
    %v5398 = vor.u32 %v5394, %v5397
    %v5399 = vrot.slane %v5398, 4
    %v5401 = vshll.u32 %v5348, 16
    %v5403 = vrot.slane %v5401, 5
    %v5404 = vsel %vm4366, %v5399, %v5403
    %v5406 = vshrl.u32 %v5349, 16
    %v5408 = vrot.slane %v5406, 4
    %v5409 = vshll.u32 %v5349, 16
    %v5411 = vrot.slane %v5409, 5
    %v5412 = vor.u32 %v5408, %v5411
    %v5413 = vrot.slane %v5412, 4
    %v5415 = vshll.u32 %v5350, 16
    %v5417 = vrot.slane %v5415, 5
    %v5418 = vsel %vm4366, %v5413, %v5417
    %v5420 = vshrl.u32 %v5351, 16
    %v5422 = vrot.slane %v5420, 4
    %v5423 = vshll.u32 %v5351, 16
    %v5425 = vrot.slane %v5423, 5
    %v5426 = vor.u32 %v5422, %v5425
    %v5427 = vrot.slane %v5426, 4
    %v5429 = vshll.u32 %v5352, 16
    %v5431 = vrot.slane %v5429, 5
    %v5432 = vsel %vm4366, %v5427, %v5431
    %v5434 = vshrl.u32 %v5353, 16
    %v5436 = vrot.slane %v5434, 4
    %v5437 = vshll.u32 %v5353, 16
    %v5439 = vrot.slane %v5437, 5
    %v5440 = vor.u32 %v5436, %v5439
    %v5441 = vrot.slane %v5440, 4
    %v5443 = vshll.u32 %v5354, 16
    %v5445 = vrot.slane %v5443, 5
    %v5446 = vsel %vm4366, %v5441, %v5445
    %v5448 = vshrl.u32 %v5355, 16
    %v5450 = vrot.slane %v5448, 4
    %v5451 = vshll.u32 %v5355, 16
    %v5453 = vrot.slane %v5451, 5
    %v5454 = vor.u32 %v5450, %v5453
    %v5455 = vrot.slane %v5454, 4
    %v5457 = vshll.u32 %v5356, 16
    %v5459 = vrot.slane %v5457, 5
    %v5460 = vsel %vm4366, %v5455, %v5459
    %v5462 = vshrl.u32 %v5357, 16
    %v5464 = vrot.slane %v5462, 4
    %v5465 = vshll.u32 %v5357, 16
    %v5467 = vrot.slane %v5465, 5
    %v5468 = vor.u32 %v5464, %v5467
    %v5469 = vrot.slane %v5468, 4
    %v5471 = vshll.u32 %v5358, 16
    %v5473 = vrot.slane %v5471, 5
    %v5474 = vsel %vm4366, %v5469, %v5473
    %v5476 = vshrl.u32 %v5359, 16
    %v5478 = vrot.slane %v5476, 4
    %v5479 = vshll.u32 %v5359, 16
    %v5481 = vrot.slane %v5479, 5
    %v5482 = vor.u32 %v5478, %v5481
    %v5483 = vrot.slane %v5482, 4
    %v5485 = vshll.u32 %v5360, 16
    %v5487 = vrot.slane %v5485, 5
    %v5488 = vsel %vm4366, %v5483, %v5487
    %v5490 = vshrl.u32 %v5361, 16
    %v5492 = vrot.slane %v5490, 4
    %v5493 = vshll.u32 %v5361, 16
    %v5495 = vrot.slane %v5493, 5
    %v5496 = vor.u32 %v5492, %v5495
    %v5497 = vrot.slane %v5496, 4
    %v5499 = vshll.u32 %v5362, 16
    %v5501 = vrot.slane %v5499, 5
    %v5502 = vsel %vm4366, %v5497, %v5501
    %v5504 = vshrl.u32 %v5363, 16
    %v5506 = vrot.slane %v5504, 4
    %v5507 = vshll.u32 %v5363, 16
    %v5509 = vrot.slane %v5507, 5
    %v5510 = vor.u32 %v5506, %v5509
    %v5511 = vrot.slane %v5510, 4
    %v5513 = vshll.u32 %v5364, 16
    %v5515 = vrot.slane %v5513, 5
    %v5516 = vsel %vm4366, %v5511, %v5515
    %v5518 = vshrl.u32 %v5365, 16
    %v5520 = vrot.slane %v5518, 4
    %v5521 = vshll.u32 %v5365, 16
    %v5523 = vrot.slane %v5521, 5
    %v5524 = vor.u32 %v5520, %v5523
    %v5525 = vrot.slane %v5524, 4
    %v5527 = vshll.u32 %v5366, 16
    %v5529 = vrot.slane %v5527, 5
    %v5530 = vsel %vm4366, %v5525, %v5529
    %v5532 = vshrl.u32 %v5367, 16
    %v5534 = vrot.slane %v5532, 4
    %v5535 = vshll.u32 %v5367, 16
    %v5537 = vrot.slane %v5535, 5
    %v5538 = vor.u32 %v5534, %v5537
    %v5539 = vrot.slane %v5538, 4
    %v5541 = vshll.u32 %v5368, 16
    %v5543 = vrot.slane %v5541, 5
    %v5544 = vsel %vm4366, %v5539, %v5543
    %v5546 = vshrl.u32 %v5369, 16
    %v5548 = vrot.slane %v5546, 4
    %v5549 = vshll.u32 %v5369, 16
    %v5551 = vrot.slane %v5549, 5
    %v5552 = vor.u32 %v5548, %v5551
    %v5553 = vrot.slane %v5552, 4
    %v5555 = vshll.u32 %v5370, 16
    %v5557 = vrot.slane %v5555, 5
    %v5558 = vsel %vm4366, %v5553, %v5557
    %v5560 = vshrl.u32 %v5371, 16
    %v5562 = vrot.slane %v5560, 4
    %v5563 = vshll.u32 %v5371, 16
    %v5565 = vrot.slane %v5563, 5
    %v5566 = vor.u32 %v5562, %v5565
    %v5567 = vrot.slane %v5566, 4
    %v5569 = vshll.u32 %v5372, 16
    %v5571 = vrot.slane %v5569, 5
    %v5572 = vsel %vm4366, %v5567, %v5571
    %v5574 = vshrl.u32 %v5373, 16
    %v5576 = vrot.slane %v5574, 4
    %v5577 = vshll.u32 %v5373, 16
    %v5579 = vrot.slane %v5577, 5
    %v5580 = vor.u32 %v5576, %v5579
    %v5581 = vrot.slane %v5580, 4
    %v5583 = vshll.u32 %v5374, 16
    %v5585 = vrot.slane %v5583, 5
    %v5586 = vsel %vm4366, %v5581, %v5585
    %v5588 = vshrl.u32 %v5375, 16
    %v5590 = vrot.slane %v5588, 4
    %v5591 = vshll.u32 %v5375, 16
    %v5593 = vrot.slane %v5591, 5
    %v5594 = vor.u32 %v5590, %v5593
    %v5595 = vrot.slane %v5594, 4
    %v5597 = vshll.u32 %v5376, 16
    %v5599 = vrot.slane %v5597, 5
    %v5600 = vsel %vm4366, %v5595, %v5599
    %s5601 = scalar_lea.vmem %s2, 20
    %v5602 = vld [vmem:[%s5601] sm:$0xf]
    %v5603 = vunpack.c.l.b16 %v5390
    %v5604 = vunpack.c.l.b16 %v5404
    %v5605 = vunpack.c.l.b16 %v5418
    %v5606 = vunpack.c.l.b16 %v5432
    %v5607 = vunpack.c.l.b16 %v5446
    %v5608 = vunpack.c.l.b16 %v5460
    %v5609 = vunpack.c.l.b16 %v5474
    %v5610 = vunpack.c.l.b16 %v5488
    %v5611 = vunpack.c.l.b16 %v5502
    %v5612 = vunpack.c.l.b16 %v5516
    %v5613 = vunpack.c.l.b16 %v5530
    %v5614 = vunpack.c.l.b16 %v5544
    %v5615 = vunpack.c.l.b16 %v5558
    %v5616 = vunpack.c.l.b16 %v5572
    %v5617 = vunpack.c.l.b16 %v5586
    %v5618 = vunpack.c.l.b16 %v5600
    %v5619 = vpack.c.b16 %v5604, %v5603
    %v5620 = vpack.c.b16 %v5606, %v5605
    %v5621 = vpack.c.b16 %v5608, %v5607
    %v5622 = vpack.c.b16 %v5610, %v5609
    %v5623 = vpack.c.b16 %v5612, %v5611
    %v5624 = vpack.c.b16 %v5614, %v5613
    %v5625 = vpack.c.b16 %v5616, %v5615
    %v5626 = vpack.c.b16 %v5618, %v5617
    %v5628 = vsel %vm4008, %v5619, 0
    %v5631 = vsel %vm4008, %v5620, 0
    %v5634 = vsel %vm4008, %v5621, 0
    %v5637 = vsel %vm4008, %v5622, 0
    %v5640 = vsel %vm4008, %v5623, 0
    %v5643 = vsel %vm4008, %v5624, 0
    %v5646 = vsel %vm4008, %v5625, 0
    %v5649 = vsel %vm4008, %v5626, 0
    %v5652 = vsel %vm4033, %v5602, 0
    %5654 = vmatprep.subr.bf16.mxu0 0
    %5655 = vmatpush1.bf16.msra.mxu0 %v5652
    %5656 = vmatprep.subr.bf16.mxu0 0
    %5657 = vmatpush1.bf16.msra.mxu0 0
    %5658 = vmatprep.subr.bf16.mxu0 0
    %5659 = vmatpush1.bf16.msra.mxu0 0
    %5660 = vmatprep.subr.bf16.mxu0 0
    %5661 = vmatpush1.bf16.msra.mxu0 0
    %5662 = vmatprep.subr.bf16.mxu0 0
    %5663 = vmatpush1.bf16.msra.mxu0 0
    %5664 = vmatprep.subr.bf16.mxu0 0
    %5665 = vmatpush1.bf16.msra.mxu0 0
    %5666 = vmatprep.subr.bf16.mxu0 0
    %5667 = vmatpush1.bf16.msra.mxu0 0
    %5668 = vmatprep.subr.bf16.mxu0 0
    %5669 = vmatpush1.bf16.msra.mxu0 0
    %5670 = vmatprep.subr.bf16.mxu0 0
    %5671 = vmatpush1.bf16.msra.mxu0 0
    %5672 = vmatprep.subr.bf16.mxu0 0
    %5673 = vmatpush1.bf16.msra.mxu0 0
    %5674 = vmatprep.subr.bf16.mxu0 0
    %5675 = vmatpush1.bf16.msra.mxu0 0
    %5676 = vmatprep.subr.bf16.mxu0 0
    %5677 = vmatpush1.bf16.msra.mxu0 0
    %5678 = vmatprep.subr.bf16.mxu0 0
    %5679 = vmatpush1.bf16.msra.mxu0 0
    %5680 = vmatprep.subr.bf16.mxu0 0
    %5681 = vmatpush1.bf16.msra.mxu0 0
    %5682 = vmatprep.subr.bf16.mxu0 0
    %5683 = vmatpush1.bf16.msra.mxu0 0
    %5684 = vmatprep.subr.bf16.mxu0 0
    %5685 = vmatpush1.bf16.msra.mxu0 0
    %5686 = vmatprep.mubr.bf16.mxu0 0
    %5687 = vmatmul.mubr.bf16.gmra.mrb[0].mxu0 %v5628
    %v5688 = vpop.f32.mrb[0].mxu0
    %v5689 = vadd.f32 0.0, %v5688
    %v5690 = vpop.f32.mrb[0].mxu0
    %v5691 = vpop.f32.mrb[0].mxu0
    %v5692 = vadd.f32 0.0, %v5691
    %v5693 = vpop.f32.mrb[0].mxu0
    %5694 = vmatprep.mubr.bf16.mxu0 0
    %5695 = vmatmul.mubr.bf16.gmra.mrb[0].mxu0 %v5631
    %v5696 = vpop.f32.mrb[0].mxu0
    %v5697 = vadd.f32 0.0, %v5696
    %v5698 = vpop.f32.mrb[0].mxu0
    %v5699 = vpop.f32.mrb[0].mxu0
    %v5700 = vadd.f32 0.0, %v5699
    %v5701 = vpop.f32.mrb[0].mxu0
    %5702 = vmatprep.mubr.bf16.mxu0 0
    %5703 = vmatmul.mubr.bf16.gmra.mrb[0].mxu0 %v5634
    %v5704 = vpop.f32.mrb[0].mxu0
    %v5705 = vadd.f32 0.0, %v5704
    %v5706 = vpop.f32.mrb[0].mxu0
    %v5707 = vpop.f32.mrb[0].mxu0
    %v5708 = vadd.f32 0.0, %v5707
    %v5709 = vpop.f32.mrb[0].mxu0
    %5710 = vmatprep.mubr.bf16.mxu0 0
    %5711 = vmatmul.mubr.bf16.gmra.mrb[0].mxu0 %v5637
    %v5712 = vpop.f32.mrb[0].mxu0
    %v5713 = vadd.f32 0.0, %v5712
    %v5714 = vpop.f32.mrb[0].mxu0
    %v5715 = vpop.f32.mrb[0].mxu0
    %v5716 = vadd.f32 0.0, %v5715
    %v5717 = vpop.f32.mrb[0].mxu0
    %5718 = vmatprep.mubr.bf16.mxu0 0
    %5719 = vmatmul.mubr.bf16.gmra.mrb[0].mxu0 %v5640
    %v5720 = vpop.f32.mrb[0].mxu0
    %v5721 = vadd.f32 0.0, %v5720
    %v5722 = vpop.f32.mrb[0].mxu0
    %v5723 = vpop.f32.mrb[0].mxu0
    %v5724 = vadd.f32 0.0, %v5723
    %v5725 = vpop.f32.mrb[0].mxu0
    %5726 = vmatprep.mubr.bf16.mxu0 0
    %5727 = vmatmul.mubr.bf16.gmra.mrb[0].mxu0 %v5643
    %v5728 = vpop.f32.mrb[0].mxu0
    %v5729 = vadd.f32 0.0, %v5728
    %v5730 = vpop.f32.mrb[0].mxu0
    %v5731 = vpop.f32.mrb[0].mxu0
    %v5732 = vadd.f32 0.0, %v5731
    %v5733 = vpop.f32.mrb[0].mxu0
    %5734 = vmatprep.mubr.bf16.mxu0 0
    %5735 = vmatmul.mubr.bf16.gmra.mrb[0].mxu0 %v5646
    %v5736 = vpop.f32.mrb[0].mxu0
    %v5737 = vadd.f32 0.0, %v5736
    %v5738 = vpop.f32.mrb[0].mxu0
    %v5739 = vpop.f32.mrb[0].mxu0
    %v5740 = vadd.f32 0.0, %v5739
    %v5741 = vpop.f32.mrb[0].mxu0
    %5742 = vmatprep.mubr.bf16.mxu0 0
    %5743 = vmatmul.mubr.bf16.gmra.mrb[0].mxu0 %v5649
    %v5744 = vpop.f32.mrb[0].mxu0
    %v5745 = vadd.f32 0.0, %v5744
    %v5746 = vpop.f32.mrb[0].mxu0
    %v5747 = vpop.f32.mrb[0].mxu0
    %v5748 = vadd.f32 0.0, %v5747
    %v5749 = vpop.f32.mrb[0].mxu0
    %5750 = vdwg.mxu0
    %v5751 = vadd.f32 %v5329, %v5689
    %v5752 = vadd.f32 %v5330, %v5692
    %v5753 = vadd.f32 %v5331, %v5697
    %v5754 = vadd.f32 %v5332, %v5700
    %v5755 = vadd.f32 %v5333, %v5705
    %v5756 = vadd.f32 %v5334, %v5708
    %v5757 = vadd.f32 %v5335, %v5713
    %v5758 = vadd.f32 %v5336, %v5716
    %v5759 = vadd.f32 %v5337, %v5721
    %v5760 = vadd.f32 %v5338, %v5724
    %v5761 = vadd.f32 %v5339, %v5729
    %v5762 = vadd.f32 %v5340, %v5732
    %v5763 = vadd.f32 %v5341, %v5737
    %v5764 = vadd.f32 %v5342, %v5740
    %v5765 = vadd.f32 %v5343, %v5745
    %v5766 = vadd.f32 %v5344, %v5748
    %s5767 = scalar_lea.vmem [#allocation3], 24
    %v5768 = vld [vmem:[%s5767] sm:$0x8]
    %v5769 = vld [vmem:[%s5767 + $0x4] sm:$0xf]
    %v5770 = vld [vmem:[%s5767 + $0xc] sm:$0x8]
    %v5771 = vld [vmem:[%s5767 + $0x10] sm:$0xf]
    %v5772 = vld [vmem:[%s5767 + $0x18] sm:$0x8]
    %v5773 = vld [vmem:[%s5767 + $0x1c] sm:$0xf]
    %v5774 = vld [vmem:[%s5767 + $0x24] sm:$0x8]
    %v5775 = vld [vmem:[%s5767 + $0x28] sm:$0xf]
    %v5776 = vld [vmem:[%s5767 + $0x30] sm:$0x8]
    %v5777 = vld [vmem:[%s5767 + $0x34] sm:$0xf]
    %v5778 = vld [vmem:[%s5767 + $0x3c] sm:$0x8]
    %v5779 = vld [vmem:[%s5767 + $0x40] sm:$0xf]
    %v5780 = vld [vmem:[%s5767 + $0x48] sm:$0x8]
    %v5781 = vld [vmem:[%s5767 + $0x4c] sm:$0xf]
    %v5782 = vld [vmem:[%s5767 + $0x54] sm:$0x8]
    %v5783 = vld [vmem:[%s5767 + $0x58] sm:$0xf]
    %v5784 = vld [vmem:[%s5767 + $0x78] sm:$0x8]
    %v5785 = vld [vmem:[%s5767 + $0x7c] sm:$0xf]
    %v5786 = vld [vmem:[%s5767 + $0x84] sm:$0x8]
    %v5787 = vld [vmem:[%s5767 + $0x88] sm:$0xf]
    %v5788 = vld [vmem:[%s5767 + $0x90] sm:$0x8]
    %v5789 = vld [vmem:[%s5767 + $0x94] sm:$0xf]
    %v5790 = vld [vmem:[%s5767 + $0x9c] sm:$0x8]
    %v5791 = vld [vmem:[%s5767 + $0xa0] sm:$0xf]
    %v5792 = vld [vmem:[%s5767 + $0xa8] sm:$0x8]
    %v5793 = vld [vmem:[%s5767 + $0xac] sm:$0xf]
    %v5794 = vld [vmem:[%s5767 + $0xb4] sm:$0x8]
    %v5795 = vld [vmem:[%s5767 + $0xb8] sm:$0xf]
    %v5796 = vld [vmem:[%s5767 + $0xc0] sm:$0x8]
    %v5797 = vld [vmem:[%s5767 + $0xc4] sm:$0xf]
    %v5798 = vld [vmem:[%s5767 + $0xcc] sm:$0x8]
    %v5799 = vld [vmem:[%s5767 + $0xd0] sm:$0xf]
    %v5801 = vshrl.u32 %v5768, 16
    %v5803 = vrot.slane %v5801, 7
    %v5804 = vrot.slane %v5803, 4
    %v5806 = vshrl.u32 %v5769, 16
    %v5808 = vrot.slane %v5806, 7
    %v5809 = vshll.u32 %v5769, 16
    %v5811 = vor.u32 %v5808, %v5809
    %v5812 = vsel %vm947, %v5804, %v5811
    %v5814 = vshrl.u32 %v5770, 16
    %v5816 = vrot.slane %v5814, 7
    %v5817 = vrot.slane %v5816, 4
    %v5819 = vshrl.u32 %v5771, 16
    %v5821 = vrot.slane %v5819, 7
    %v5822 = vshll.u32 %v5771, 16
    %v5824 = vor.u32 %v5821, %v5822
    %v5825 = vsel %vm947, %v5817, %v5824
    %v5827 = vshrl.u32 %v5772, 16
    %v5829 = vrot.slane %v5827, 7
    %v5830 = vrot.slane %v5829, 4
    %v5832 = vshrl.u32 %v5773, 16
    %v5834 = vrot.slane %v5832, 7
    %v5835 = vshll.u32 %v5773, 16
    %v5837 = vor.u32 %v5834, %v5835
    %v5838 = vsel %vm947, %v5830, %v5837
    %v5840 = vshrl.u32 %v5774, 16
    %v5842 = vrot.slane %v5840, 7
    %v5843 = vrot.slane %v5842, 4
    %v5845 = vshrl.u32 %v5775, 16
    %v5847 = vrot.slane %v5845, 7
    %v5848 = vshll.u32 %v5775, 16
    %v5850 = vor.u32 %v5847, %v5848
    %v5851 = vsel %vm947, %v5843, %v5850
    %v5853 = vshrl.u32 %v5776, 16
    %v5855 = vrot.slane %v5853, 7
    %v5856 = vrot.slane %v5855, 4
    %v5858 = vshrl.u32 %v5777, 16
    %v5860 = vrot.slane %v5858, 7
    %v5861 = vshll.u32 %v5777, 16
    %v5863 = vor.u32 %v5860, %v5861
    %v5864 = vsel %vm947, %v5856, %v5863
    %v5866 = vshrl.u32 %v5778, 16
    %v5868 = vrot.slane %v5866, 7
    %v5869 = vrot.slane %v5868, 4
    %v5871 = vshrl.u32 %v5779, 16
    %v5873 = vrot.slane %v5871, 7
    %v5874 = vshll.u32 %v5779, 16
    %v5876 = vor.u32 %v5873, %v5874
    %v5877 = vsel %vm947, %v5869, %v5876
    %v5879 = vshrl.u32 %v5780, 16
    %v5881 = vrot.slane %v5879, 7
    %v5882 = vrot.slane %v5881, 4
    %v5884 = vshrl.u32 %v5781, 16
    %v5886 = vrot.slane %v5884, 7
    %v5887 = vshll.u32 %v5781, 16
    %v5889 = vor.u32 %v5886, %v5887
    %v5890 = vsel %vm947, %v5882, %v5889
    %v5892 = vshrl.u32 %v5782, 16
    %v5894 = vrot.slane %v5892, 7
    %v5895 = vrot.slane %v5894, 4
    %v5897 = vshrl.u32 %v5783, 16
    %v5899 = vrot.slane %v5897, 7
    %v5900 = vshll.u32 %v5783, 16
    %v5902 = vor.u32 %v5899, %v5900
    %v5903 = vsel %vm947, %v5895, %v5902
    %v5905 = vshrl.u32 %v5784, 16
    %v5907 = vrot.slane %v5905, 7
    %v5908 = vrot.slane %v5907, 4
    %v5910 = vshrl.u32 %v5785, 16
    %v5912 = vrot.slane %v5910, 7
    %v5913 = vshll.u32 %v5785, 16
    %v5915 = vor.u32 %v5912, %v5913
    %v5916 = vsel %vm947, %v5908, %v5915
    %v5918 = vshrl.u32 %v5786, 16
    %v5920 = vrot.slane %v5918, 7
    %v5921 = vrot.slane %v5920, 4
    %v5923 = vshrl.u32 %v5787, 16
    %v5925 = vrot.slane %v5923, 7
    %v5926 = vshll.u32 %v5787, 16
    %v5928 = vor.u32 %v5925, %v5926
    %v5929 = vsel %vm947, %v5921, %v5928
    %v5931 = vshrl.u32 %v5788, 16
    %v5933 = vrot.slane %v5931, 7
    %v5934 = vrot.slane %v5933, 4
    %v5936 = vshrl.u32 %v5789, 16
    %v5938 = vrot.slane %v5936, 7
    %v5939 = vshll.u32 %v5789, 16
    %v5941 = vor.u32 %v5938, %v5939
    %v5942 = vsel %vm947, %v5934, %v5941
    %v5944 = vshrl.u32 %v5790, 16
    %v5946 = vrot.slane %v5944, 7
    %v5947 = vrot.slane %v5946, 4
    %v5949 = vshrl.u32 %v5791, 16
    %v5951 = vrot.slane %v5949, 7
    %v5952 = vshll.u32 %v5791, 16
    %v5954 = vor.u32 %v5951, %v5952
    %v5955 = vsel %vm947, %v5947, %v5954
    %v5957 = vshrl.u32 %v5792, 16
    %v5959 = vrot.slane %v5957, 7
    %v5960 = vrot.slane %v5959, 4
    %v5962 = vshrl.u32 %v5793, 16
    %v5964 = vrot.slane %v5962, 7
    %v5965 = vshll.u32 %v5793, 16
    %v5967 = vor.u32 %v5964, %v5965
    %v5968 = vsel %vm947, %v5960, %v5967
    %v5970 = vshrl.u32 %v5794, 16
    %v5972 = vrot.slane %v5970, 7
    %v5973 = vrot.slane %v5972, 4
    %v5975 = vshrl.u32 %v5795, 16
    %v5977 = vrot.slane %v5975, 7
    %v5978 = vshll.u32 %v5795, 16
    %v5980 = vor.u32 %v5977, %v5978
    %v5981 = vsel %vm947, %v5973, %v5980
    %v5983 = vshrl.u32 %v5796, 16
    %v5985 = vrot.slane %v5983, 7
    %v5986 = vrot.slane %v5985, 4
    %v5988 = vshrl.u32 %v5797, 16
    %v5990 = vrot.slane %v5988, 7
    %v5991 = vshll.u32 %v5797, 16
    %v5993 = vor.u32 %v5990, %v5991
    %v5994 = vsel %vm947, %v5986, %v5993
    %v5996 = vshrl.u32 %v5798, 16
    %v5998 = vrot.slane %v5996, 7
    %v5999 = vrot.slane %v5998, 4
    %v6001 = vshrl.u32 %v5799, 16
    %v6003 = vrot.slane %v6001, 7
    %v6004 = vshll.u32 %v5799, 16
    %v6006 = vor.u32 %v6003, %v6004
    %v6007 = vsel %vm947, %v5999, %v6006
    %s6008 = scalar_lea.vmem %s2, 24
    %v6009 = vld [vmem:[%s6008] sm:$0xf]
    %v6010 = vunpack.c.l.b16 %v5812
    %v6011 = vunpack.c.l.b16 %v5825
    %v6012 = vunpack.c.l.b16 %v5838
    %v6013 = vunpack.c.l.b16 %v5851
    %v6014 = vunpack.c.l.b16 %v5864
    %v6015 = vunpack.c.l.b16 %v5877
    %v6016 = vunpack.c.l.b16 %v5890
    %v6017 = vunpack.c.l.b16 %v5903
    %v6018 = vunpack.c.l.b16 %v5916
    %v6019 = vunpack.c.l.b16 %v5929
    %v6020 = vunpack.c.l.b16 %v5942
    %v6021 = vunpack.c.l.b16 %v5955
    %v6022 = vunpack.c.l.b16 %v5968
    %v6023 = vunpack.c.l.b16 %v5981
    %v6024 = vunpack.c.l.b16 %v5994
    %v6025 = vunpack.c.l.b16 %v6007
    %v6026 = vpack.c.b16 %v6011, %v6010
    %v6027 = vpack.c.b16 %v6013, %v6012
    %v6028 = vpack.c.b16 %v6015, %v6014
    %v6029 = vpack.c.b16 %v6017, %v6016
    %v6030 = vpack.c.b16 %v6019, %v6018
    %v6031 = vpack.c.b16 %v6021, %v6020
    %v6032 = vpack.c.b16 %v6023, %v6022
    %v6033 = vpack.c.b16 %v6025, %v6024
    %v6035 = vsel %vm4008, %v6026, 0
    %v6038 = vsel %vm4008, %v6027, 0
    %v6041 = vsel %vm4008, %v6028, 0
    %v6044 = vsel %vm4008, %v6029, 0
    %v6047 = vsel %vm4008, %v6030, 0
    %v6050 = vsel %vm4008, %v6031, 0
    %v6053 = vsel %vm4008, %v6032, 0
    %v6056 = vsel %vm4008, %v6033, 0
    %v6059 = vsel %vm4033, %v6009, 0
    %6061 = vmatprep.subr.bf16.mxu0 0
    %6062 = vmatpush1.bf16.msra.mxu0 %v6059
    %6063 = vmatprep.subr.bf16.mxu0 0
    %6064 = vmatpush1.bf16.msra.mxu0 0
    %6065 = vmatprep.subr.bf16.mxu0 0
    %6066 = vmatpush1.bf16.msra.mxu0 0
    %6067 = vmatprep.subr.bf16.mxu0 0
    %6068 = vmatpush1.bf16.msra.mxu0 0
    %6069 = vmatprep.subr.bf16.mxu0 0
    %6070 = vmatpush1.bf16.msra.mxu0 0
    %6071 = vmatprep.subr.bf16.mxu0 0
    %6072 = vmatpush1.bf16.msra.mxu0 0
    %6073 = vmatprep.subr.bf16.mxu0 0
    %6074 = vmatpush1.bf16.msra.mxu0 0
    %6075 = vmatprep.subr.bf16.mxu0 0
    %6076 = vmatpush1.bf16.msra.mxu0 0
    %6077 = vmatprep.subr.bf16.mxu0 0
    %6078 = vmatpush1.bf16.msra.mxu0 0
    %6079 = vmatprep.subr.bf16.mxu0 0
    %6080 = vmatpush1.bf16.msra.mxu0 0
    %6081 = vmatprep.subr.bf16.mxu0 0
    %6082 = vmatpush1.bf16.msra.mxu0 0
    %6083 = vmatprep.subr.bf16.mxu0 0
    %6084 = vmatpush1.bf16.msra.mxu0 0
    %6085 = vmatprep.subr.bf16.mxu0 0
    %6086 = vmatpush1.bf16.msra.mxu0 0
    %6087 = vmatprep.subr.bf16.mxu0 0
    %6088 = vmatpush1.bf16.msra.mxu0 0
    %6089 = vmatprep.subr.bf16.mxu0 0
    %6090 = vmatpush1.bf16.msra.mxu0 0
    %6091 = vmatprep.subr.bf16.mxu0 0
    %6092 = vmatpush1.bf16.msra.mxu0 0
    %6093 = vmatprep.mubr.bf16.mxu0 0
    %6094 = vmatmul.mubr.bf16.gmra.mrb[0].mxu0 %v6035
    %v6095 = vpop.f32.mrb[0].mxu0
    %v6096 = vadd.f32 0.0, %v6095
    %v6097 = vpop.f32.mrb[0].mxu0
    %v6098 = vpop.f32.mrb[0].mxu0
    %v6099 = vadd.f32 0.0, %v6098
    %v6100 = vpop.f32.mrb[0].mxu0
    %6101 = vmatprep.mubr.bf16.mxu0 0
    %6102 = vmatmul.mubr.bf16.gmra.mrb[0].mxu0 %v6038
    %v6103 = vpop.f32.mrb[0].mxu0
    %v6104 = vadd.f32 0.0, %v6103
    %v6105 = vpop.f32.mrb[0].mxu0
    %v6106 = vpop.f32.mrb[0].mxu0
    %v6107 = vadd.f32 0.0, %v6106
    %v6108 = vpop.f32.mrb[0].mxu0
    %6109 = vmatprep.mubr.bf16.mxu0 0
    %6110 = vmatmul.mubr.bf16.gmra.mrb[0].mxu0 %v6041
    %v6111 = vpop.f32.mrb[0].mxu0
    %v6112 = vadd.f32 0.0, %v6111
    %v6113 = vpop.f32.mrb[0].mxu0
    %v6114 = vpop.f32.mrb[0].mxu0
    %v6115 = vadd.f32 0.0, %v6114
    %v6116 = vpop.f32.mrb[0].mxu0
    %6117 = vmatprep.mubr.bf16.mxu0 0
    %6118 = vmatmul.mubr.bf16.gmra.mrb[0].mxu0 %v6044
    %v6119 = vpop.f32.mrb[0].mxu0
    %v6120 = vadd.f32 0.0, %v6119
    %v6121 = vpop.f32.mrb[0].mxu0
    %v6122 = vpop.f32.mrb[0].mxu0
    %v6123 = vadd.f32 0.0, %v6122
    %v6124 = vpop.f32.mrb[0].mxu0
    %6125 = vmatprep.mubr.bf16.mxu0 0
    %6126 = vmatmul.mubr.bf16.gmra.mrb[0].mxu0 %v6047
    %v6127 = vpop.f32.mrb[0].mxu0
    %v6128 = vadd.f32 0.0, %v6127
    %v6129 = vpop.f32.mrb[0].mxu0
    %v6130 = vpop.f32.mrb[0].mxu0
    %v6131 = vadd.f32 0.0, %v6130
    %v6132 = vpop.f32.mrb[0].mxu0
    %6133 = vmatprep.mubr.bf16.mxu0 0
    %6134 = vmatmul.mubr.bf16.gmra.mrb[0].mxu0 %v6050
    %v6135 = vpop.f32.mrb[0].mxu0
    %v6136 = vadd.f32 0.0, %v6135
    %v6137 = vpop.f32.mrb[0].mxu0
    %v6138 = vpop.f32.mrb[0].mxu0
    %v6139 = vadd.f32 0.0, %v6138
    %v6140 = vpop.f32.mrb[0].mxu0
    %6141 = vmatprep.mubr.bf16.mxu0 0
    %6142 = vmatmul.mubr.bf16.gmra.mrb[0].mxu0 %v6053
    %v6143 = vpop.f32.mrb[0].mxu0
    %v6144 = vadd.f32 0.0, %v6143
    %v6145 = vpop.f32.mrb[0].mxu0
    %v6146 = vpop.f32.mrb[0].mxu0
    %v6147 = vadd.f32 0.0, %v6146
    %v6148 = vpop.f32.mrb[0].mxu0
    %6149 = vmatprep.mubr.bf16.mxu0 0
    %6150 = vmatmul.mubr.bf16.gmra.mrb[0].mxu0 %v6056
    %v6151 = vpop.f32.mrb[0].mxu0
    %v6152 = vadd.f32 0.0, %v6151
    %v6153 = vpop.f32.mrb[0].mxu0
    %v6154 = vpop.f32.mrb[0].mxu0
    %v6155 = vadd.f32 0.0, %v6154
    %v6156 = vpop.f32.mrb[0].mxu0
    %6157 = vdwg.mxu0
    %v6158 = vadd.f32 %v5751, %v6096
    %v6159 = vadd.f32 %v5752, %v6099
    %v6160 = vadd.f32 %v5753, %v6104
    %v6161 = vadd.f32 %v5754, %v6107
    %v6162 = vadd.f32 %v5755, %v6112
    %v6163 = vadd.f32 %v5756, %v6115
    %v6164 = vadd.f32 %v5757, %v6120
    %v6165 = vadd.f32 %v5758, %v6123
    %v6166 = vadd.f32 %v5759, %v6128
    %v6167 = vadd.f32 %v5760, %v6131
    %v6168 = vadd.f32 %v5761, %v6136
    %v6169 = vadd.f32 %v5762, %v6139
    %v6170 = vadd.f32 %v5763, %v6144
    %v6171 = vadd.f32 %v5764, %v6147
    %v6172 = vadd.f32 %v5765, %v6152
    %v6173 = vadd.f32 %v5766, %v6155
    %s6174 = scalar_lea.vmem %s2, 28
    %v6175 = vld [vmem:[%s6174] sm:$0xf]
    %v6192 = vunpack.c.l.b16 %v5769
    %v6193 = vunpack.c.l.b16 %v5771
    %v6194 = vunpack.c.l.b16 %v5773
    %v6195 = vunpack.c.l.b16 %v5775
    %v6196 = vunpack.c.l.b16 %v5777
    %v6197 = vunpack.c.l.b16 %v5779
    %v6198 = vunpack.c.l.b16 %v5781
    %v6199 = vunpack.c.l.b16 %v5783
    %v6200 = vunpack.c.l.b16 %v5785
    %v6201 = vunpack.c.l.b16 %v5787
    %v6202 = vunpack.c.l.b16 %v5789
    %v6203 = vunpack.c.l.b16 %v5791
    %v6204 = vunpack.c.l.b16 %v5793
    %v6205 = vunpack.c.l.b16 %v5795
    %v6206 = vunpack.c.l.b16 %v5797
    %v6207 = vunpack.c.l.b16 %v5799
    %v6208 = vpack.c.b16 %v6193, %v6192
    %v6209 = vpack.c.b16 %v6195, %v6194
    %v6210 = vpack.c.b16 %v6197, %v6196
    %v6211 = vpack.c.b16 %v6199, %v6198
    %v6212 = vpack.c.b16 %v6201, %v6200
    %v6213 = vpack.c.b16 %v6203, %v6202
    %v6214 = vpack.c.b16 %v6205, %v6204
    %v6215 = vpack.c.b16 %v6207, %v6206
    %v6217 = vsel %vm4008, %v6208, 0
    %v6220 = vsel %vm4008, %v6209, 0
    %v6223 = vsel %vm4008, %v6210, 0
    %v6226 = vsel %vm4008, %v6211, 0
    %v6229 = vsel %vm4008, %v6212, 0
    %v6232 = vsel %vm4008, %v6213, 0
    %v6235 = vsel %vm4008, %v6214, 0
    %v6238 = vsel %vm4008, %v6215, 0
    %v6241 = vsel %vm4033, %v6175, 0
    %6243 = vmatprep.subr.bf16.mxu0 0
    %6244 = vmatpush1.bf16.msra.mxu0 %v6241
    %6245 = vmatprep.subr.bf16.mxu0 0
    %6246 = vmatpush1.bf16.msra.mxu0 0
    %6247 = vmatprep.subr.bf16.mxu0 0
    %6248 = vmatpush1.bf16.msra.mxu0 0
    %6249 = vmatprep.subr.bf16.mxu0 0
    %6250 = vmatpush1.bf16.msra.mxu0 0
    %6251 = vmatprep.subr.bf16.mxu0 0
    %6252 = vmatpush1.bf16.msra.mxu0 0
    %6253 = vmatprep.subr.bf16.mxu0 0
    %6254 = vmatpush1.bf16.msra.mxu0 0
    %6255 = vmatprep.subr.bf16.mxu0 0
    %6256 = vmatpush1.bf16.msra.mxu0 0
    %6257 = vmatprep.subr.bf16.mxu0 0
    %6258 = vmatpush1.bf16.msra.mxu0 0
    %6259 = vmatprep.subr.bf16.mxu0 0
    %6260 = vmatpush1.bf16.msra.mxu0 0
    %6261 = vmatprep.subr.bf16.mxu0 0
    %6262 = vmatpush1.bf16.msra.mxu0 0
    %6263 = vmatprep.subr.bf16.mxu0 0
    %6264 = vmatpush1.bf16.msra.mxu0 0
    %6265 = vmatprep.subr.bf16.mxu0 0
    %6266 = vmatpush1.bf16.msra.mxu0 0
    %6267 = vmatprep.subr.bf16.mxu0 0
    %6268 = vmatpush1.bf16.msra.mxu0 0
    %6269 = vmatprep.subr.bf16.mxu0 0
    %6270 = vmatpush1.bf16.msra.mxu0 0
    %6271 = vmatprep.subr.bf16.mxu0 0
    %6272 = vmatpush1.bf16.msra.mxu0 0
    %6273 = vmatprep.subr.bf16.mxu0 0
    %6274 = vmatpush1.bf16.msra.mxu0 0
    %6275 = vmatprep.mubr.bf16.mxu0 0
    %6276 = vmatmul.mubr.bf16.gmra.mrb[0].mxu0 %v6217
    %v6277 = vpop.f32.mrb[0].mxu0
    %v6278 = vadd.f32 0.0, %v6277
    %v6279 = vpop.f32.mrb[0].mxu0
    %v6280 = vpop.f32.mrb[0].mxu0
    %v6281 = vadd.f32 0.0, %v6280
    %v6282 = vpop.f32.mrb[0].mxu0
    %6283 = vmatprep.mubr.bf16.mxu0 0
    %6284 = vmatmul.mubr.bf16.gmra.mrb[0].mxu0 %v6220
    %v6285 = vpop.f32.mrb[0].mxu0
    %v6286 = vadd.f32 0.0, %v6285
    %v6287 = vpop.f32.mrb[0].mxu0
    %v6288 = vpop.f32.mrb[0].mxu0
    %v6289 = vadd.f32 0.0, %v6288
    %v6290 = vpop.f32.mrb[0].mxu0
    %6291 = vmatprep.mubr.bf16.mxu0 0
    %6292 = vmatmul.mubr.bf16.gmra.mrb[0].mxu0 %v6223
    %v6293 = vpop.f32.mrb[0].mxu0
    %v6294 = vadd.f32 0.0, %v6293
    %v6295 = vpop.f32.mrb[0].mxu0
    %v6296 = vpop.f32.mrb[0].mxu0
    %v6297 = vadd.f32 0.0, %v6296
    %v6298 = vpop.f32.mrb[0].mxu0
    %6299 = vmatprep.mubr.bf16.mxu0 0
    %6300 = vmatmul.mubr.bf16.gmra.mrb[0].mxu0 %v6226
    %v6301 = vpop.f32.mrb[0].mxu0
    %v6302 = vadd.f32 0.0, %v6301
    %v6303 = vpop.f32.mrb[0].mxu0
    %v6304 = vpop.f32.mrb[0].mxu0
    %v6305 = vadd.f32 0.0, %v6304
    %v6306 = vpop.f32.mrb[0].mxu0
    %6307 = vmatprep.mubr.bf16.mxu0 0
    %6308 = vmatmul.mubr.bf16.gmra.mrb[0].mxu0 %v6229
    %v6309 = vpop.f32.mrb[0].mxu0
    %v6310 = vadd.f32 0.0, %v6309
    %v6311 = vpop.f32.mrb[0].mxu0
    %v6312 = vpop.f32.mrb[0].mxu0
    %v6313 = vadd.f32 0.0, %v6312
    %v6314 = vpop.f32.mrb[0].mxu0
    %6315 = vmatprep.mubr.bf16.mxu0 0
    %6316 = vmatmul.mubr.bf16.gmra.mrb[0].mxu0 %v6232
    %v6317 = vpop.f32.mrb[0].mxu0
    %v6318 = vadd.f32 0.0, %v6317
    %v6319 = vpop.f32.mrb[0].mxu0
    %v6320 = vpop.f32.mrb[0].mxu0
    %v6321 = vadd.f32 0.0, %v6320
    %v6322 = vpop.f32.mrb[0].mxu0
    %6323 = vmatprep.mubr.bf16.mxu0 0
    %6324 = vmatmul.mubr.bf16.gmra.mrb[0].mxu0 %v6235
    %v6325 = vpop.f32.mrb[0].mxu0
    %v6326 = vadd.f32 0.0, %v6325
    %v6327 = vpop.f32.mrb[0].mxu0
    %v6328 = vpop.f32.mrb[0].mxu0
    %v6329 = vadd.f32 0.0, %v6328
    %v6330 = vpop.f32.mrb[0].mxu0
    %6331 = vmatprep.mubr.bf16.mxu0 0
    %6332 = vmatmul.mubr.bf16.gmra.mrb[0].mxu0 %v6238
    %v6333 = vpop.f32.mrb[0].mxu0
    %v6334 = vadd.f32 0.0, %v6333
    %v6335 = vpop.f32.mrb[0].mxu0
    %v6336 = vpop.f32.mrb[0].mxu0
    %v6337 = vadd.f32 0.0, %v6336
    %v6338 = vpop.f32.mrb[0].mxu0
    %6339 = vdwg.mxu0
    %v6340 = vadd.f32 %v6158, %v6278
    %v6341 = vadd.f32 %v6159, %v6281
    %v6342 = vadd.f32 %v6160, %v6286
    %v6343 = vadd.f32 %v6161, %v6289
    %v6344 = vadd.f32 %v6162, %v6294
    %v6345 = vadd.f32 %v6163, %v6297
    %v6346 = vadd.f32 %v6164, %v6302
    %v6347 = vadd.f32 %v6165, %v6305
    %v6348 = vadd.f32 %v6166, %v6310
    %v6349 = vadd.f32 %v6167, %v6313
    %v6350 = vadd.f32 %v6168, %v6318
    %v6351 = vadd.f32 %v6169, %v6321
    %v6352 = vadd.f32 %v6170, %v6326
    %v6353 = vadd.f32 %v6171, %v6329
    %v6354 = vadd.f32 %v6172, %v6334
    %v6355 = vadd.f32 %v6173, %v6337
    %v6356 = vld [vmem:[%s5767 + $0x4] sm:$0xf]
    %v6357 = vld [vmem:[%s5767 + $0x8] sm:$0x1]
    %v6358 = vld [vmem:[%s5767 + $0x10] sm:$0xf]
    %v6359 = vld [vmem:[%s5767 + $0x14] sm:$0x1]
    %v6360 = vld [vmem:[%s5767 + $0x1c] sm:$0xf]
    %v6361 = vld [vmem:[%s5767 + $0x20] sm:$0x1]
    %v6362 = vld [vmem:[%s5767 + $0x28] sm:$0xf]
    %v6363 = vld [vmem:[%s5767 + $0x2c] sm:$0x1]
    %v6364 = vld [vmem:[%s5767 + $0x34] sm:$0xf]
    %v6365 = vld [vmem:[%s5767 + $0x38] sm:$0x1]
    %v6366 = vld [vmem:[%s5767 + $0x40] sm:$0xf]
    %v6367 = vld [vmem:[%s5767 + $0x44] sm:$0x1]
    %v6368 = vld [vmem:[%s5767 + $0x4c] sm:$0xf]
    %v6369 = vld [vmem:[%s5767 + $0x50] sm:$0x1]
    %v6370 = vld [vmem:[%s5767 + $0x58] sm:$0xf]
    %v6371 = vld [vmem:[%s5767 + $0x5c] sm:$0x1]
    %v6372 = vld [vmem:[%s5767 + $0x7c] sm:$0xf]
    %v6373 = vld [vmem:[%s5767 + $0x80] sm:$0x1]
    %v6374 = vld [vmem:[%s5767 + $0x88] sm:$0xf]
    %v6375 = vld [vmem:[%s5767 + $0x8c] sm:$0x1]
    %v6376 = vld [vmem:[%s5767 + $0x94] sm:$0xf]
    %v6377 = vld [vmem:[%s5767 + $0x98] sm:$0x1]
    %v6378 = vld [vmem:[%s5767 + $0xa0] sm:$0xf]
    %v6379 = vld [vmem:[%s5767 + $0xa4] sm:$0x1]
    %v6380 = vld [vmem:[%s5767 + $0xac] sm:$0xf]
    %v6381 = vld [vmem:[%s5767 + $0xb0] sm:$0x1]
    %v6382 = vld [vmem:[%s5767 + $0xb8] sm:$0xf]
    %v6383 = vld [vmem:[%s5767 + $0xbc] sm:$0x1]
    %v6384 = vld [vmem:[%s5767 + $0xc4] sm:$0xf]
    %v6385 = vld [vmem:[%s5767 + $0xc8] sm:$0x1]
    %v6386 = vld [vmem:[%s5767 + $0xd0] sm:$0xf]
    %v6387 = vld [vmem:[%s5767 + $0xd4] sm:$0x1]
    %v6389 = vshrl.u32 %v6356, 16
    %v6391 = vrot.slane %v6389, 4
    %v6392 = vshll.u32 %v6356, 16
    %v6394 = vrot.slane %v6392, 5
    %v6395 = vor.u32 %v6391, %v6394
    %v6396 = vrot.slane %v6395, 4
    %v6398 = vshll.u32 %v6357, 16
    %v6400 = vrot.slane %v6398, 5
    %v6401 = vsel %vm4366, %v6396, %v6400
    %v6403 = vshrl.u32 %v6358, 16
    %v6405 = vrot.slane %v6403, 4
    %v6406 = vshll.u32 %v6358, 16
    %v6408 = vrot.slane %v6406, 5
    %v6409 = vor.u32 %v6405, %v6408
    %v6410 = vrot.slane %v6409, 4
    %v6412 = vshll.u32 %v6359, 16
    %v6414 = vrot.slane %v6412, 5
    %v6415 = vsel %vm4366, %v6410, %v6414
    %v6417 = vshrl.u32 %v6360, 16
    %v6419 = vrot.slane %v6417, 4
    %v6420 = vshll.u32 %v6360, 16
    %v6422 = vrot.slane %v6420, 5
    %v6423 = vor.u32 %v6419, %v6422
    %v6424 = vrot.slane %v6423, 4
    %v6426 = vshll.u32 %v6361, 16
    %v6428 = vrot.slane %v6426, 5
    %v6429 = vsel %vm4366, %v6424, %v6428
    %v6431 = vshrl.u32 %v6362, 16
    %v6433 = vrot.slane %v6431, 4
    %v6434 = vshll.u32 %v6362, 16
    %v6436 = vrot.slane %v6434, 5
    %v6437 = vor.u32 %v6433, %v6436
    %v6438 = vrot.slane %v6437, 4
    %v6440 = vshll.u32 %v6363, 16
    %v6442 = vrot.slane %v6440, 5
    %v6443 = vsel %vm4366, %v6438, %v6442
    %v6445 = vshrl.u32 %v6364, 16
    %v6447 = vrot.slane %v6445, 4
    %v6448 = vshll.u32 %v6364, 16
    %v6450 = vrot.slane %v6448, 5
    %v6451 = vor.u32 %v6447, %v6450
    %v6452 = vrot.slane %v6451, 4
    %v6454 = vshll.u32 %v6365, 16
    %v6456 = vrot.slane %v6454, 5
    %v6457 = vsel %vm4366, %v6452, %v6456
    %v6459 = vshrl.u32 %v6366, 16
    %v6461 = vrot.slane %v6459, 4
    %v6462 = vshll.u32 %v6366, 16
    %v6464 = vrot.slane %v6462, 5
    %v6465 = vor.u32 %v6461, %v6464
    %v6466 = vrot.slane %v6465, 4
    %v6468 = vshll.u32 %v6367, 16
    %v6470 = vrot.slane %v6468, 5
    %v6471 = vsel %vm4366, %v6466, %v6470
    %v6473 = vshrl.u32 %v6368, 16
    %v6475 = vrot.slane %v6473, 4
    %v6476 = vshll.u32 %v6368, 16
    %v6478 = vrot.slane %v6476, 5
    %v6479 = vor.u32 %v6475, %v6478
    %v6480 = vrot.slane %v6479, 4
    %v6482 = vshll.u32 %v6369, 16
    %v6484 = vrot.slane %v6482, 5
    %v6485 = vsel %vm4366, %v6480, %v6484
    %v6487 = vshrl.u32 %v6370, 16
    %v6489 = vrot.slane %v6487, 4
    %v6490 = vshll.u32 %v6370, 16
    %v6492 = vrot.slane %v6490, 5
    %v6493 = vor.u32 %v6489, %v6492
    %v6494 = vrot.slane %v6493, 4
    %v6496 = vshll.u32 %v6371, 16
    %v6498 = vrot.slane %v6496, 5
    %v6499 = vsel %vm4366, %v6494, %v6498
    %v6501 = vshrl.u32 %v6372, 16
    %v6503 = vrot.slane %v6501, 4
    %v6504 = vshll.u32 %v6372, 16
    %v6506 = vrot.slane %v6504, 5
    %v6507 = vor.u32 %v6503, %v6506
    %v6508 = vrot.slane %v6507, 4
    %v6510 = vshll.u32 %v6373, 16
    %v6512 = vrot.slane %v6510, 5
    %v6513 = vsel %vm4366, %v6508, %v6512
    %v6515 = vshrl.u32 %v6374, 16
    %v6517 = vrot.slane %v6515, 4
    %v6518 = vshll.u32 %v6374, 16
    %v6520 = vrot.slane %v6518, 5
    %v6521 = vor.u32 %v6517, %v6520
    %v6522 = vrot.slane %v6521, 4
    %v6524 = vshll.u32 %v6375, 16
    %v6526 = vrot.slane %v6524, 5
    %v6527 = vsel %vm4366, %v6522, %v6526
    %v6529 = vshrl.u32 %v6376, 16
    %v6531 = vrot.slane %v6529, 4
    %v6532 = vshll.u32 %v6376, 16
    %v6534 = vrot.slane %v6532, 5
    %v6535 = vor.u32 %v6531, %v6534
    %v6536 = vrot.slane %v6535, 4
    %v6538 = vshll.u32 %v6377, 16
    %v6540 = vrot.slane %v6538, 5
    %v6541 = vsel %vm4366, %v6536, %v6540
    %v6543 = vshrl.u32 %v6378, 16
    %v6545 = vrot.slane %v6543, 4
    %v6546 = vshll.u32 %v6378, 16
    %v6548 = vrot.slane %v6546, 5
    %v6549 = vor.u32 %v6545, %v6548
    %v6550 = vrot.slane %v6549, 4
    %v6552 = vshll.u32 %v6379, 16
    %v6554 = vrot.slane %v6552, 5
    %v6555 = vsel %vm4366, %v6550, %v6554
    %v6557 = vshrl.u32 %v6380, 16
    %v6559 = vrot.slane %v6557, 4
    %v6560 = vshll.u32 %v6380, 16
    %v6562 = vrot.slane %v6560, 5
    %v6563 = vor.u32 %v6559, %v6562
    %v6564 = vrot.slane %v6563, 4
    %v6566 = vshll.u32 %v6381, 16
    %v6568 = vrot.slane %v6566, 5
    %v6569 = vsel %vm4366, %v6564, %v6568
    %v6571 = vshrl.u32 %v6382, 16
    %v6573 = vrot.slane %v6571, 4
    %v6574 = vshll.u32 %v6382, 16
    %v6576 = vrot.slane %v6574, 5
    %v6577 = vor.u32 %v6573, %v6576
    %v6578 = vrot.slane %v6577, 4
    %v6580 = vshll.u32 %v6383, 16
    %v6582 = vrot.slane %v6580, 5
    %v6583 = vsel %vm4366, %v6578, %v6582
    %v6585 = vshrl.u32 %v6384, 16
    %v6587 = vrot.slane %v6585, 4
    %v6588 = vshll.u32 %v6384, 16
    %v6590 = vrot.slane %v6588, 5
    %v6591 = vor.u32 %v6587, %v6590
    %v6592 = vrot.slane %v6591, 4
    %v6594 = vshll.u32 %v6385, 16
    %v6596 = vrot.slane %v6594, 5
    %v6597 = vsel %vm4366, %v6592, %v6596
    %v6599 = vshrl.u32 %v6386, 16
    %v6601 = vrot.slane %v6599, 4
    %v6602 = vshll.u32 %v6386, 16
    %v6604 = vrot.slane %v6602, 5
    %v6605 = vor.u32 %v6601, %v6604
    %v6606 = vrot.slane %v6605, 4
    %v6608 = vshll.u32 %v6387, 16
    %v6610 = vrot.slane %v6608, 5
    %v6611 = vsel %vm4366, %v6606, %v6610
    %s6612 = scalar_lea.vmem %s2, 32
    %v6613 = vld [vmem:[%s6612] sm:$0xf]
    %v6614 = vunpack.c.l.b16 %v6401
    %v6615 = vunpack.c.l.b16 %v6415
    %v6616 = vunpack.c.l.b16 %v6429
    %v6617 = vunpack.c.l.b16 %v6443
    %v6618 = vunpack.c.l.b16 %v6457
    %v6619 = vunpack.c.l.b16 %v6471
    %v6620 = vunpack.c.l.b16 %v6485
    %v6621 = vunpack.c.l.b16 %v6499
    %v6622 = vunpack.c.l.b16 %v6513
    %v6623 = vunpack.c.l.b16 %v6527
    %v6624 = vunpack.c.l.b16 %v6541
    %v6625 = vunpack.c.l.b16 %v6555
    %v6626 = vunpack.c.l.b16 %v6569
    %v6627 = vunpack.c.l.b16 %v6583
    %v6628 = vunpack.c.l.b16 %v6597
    %v6629 = vunpack.c.l.b16 %v6611
    %v6630 = vpack.c.b16 %v6615, %v6614
    %v6631 = vpack.c.b16 %v6617, %v6616
    %v6632 = vpack.c.b16 %v6619, %v6618
    %v6633 = vpack.c.b16 %v6621, %v6620
    %v6634 = vpack.c.b16 %v6623, %v6622
    %v6635 = vpack.c.b16 %v6625, %v6624
    %v6636 = vpack.c.b16 %v6627, %v6626
    %v6637 = vpack.c.b16 %v6629, %v6628
    %v6639 = vsel %vm4008, %v6630, 0
    %v6642 = vsel %vm4008, %v6631, 0
    %v6645 = vsel %vm4008, %v6632, 0
    %v6648 = vsel %vm4008, %v6633, 0
    %v6651 = vsel %vm4008, %v6634, 0
    %v6654 = vsel %vm4008, %v6635, 0
    %v6657 = vsel %vm4008, %v6636, 0
    %v6660 = vsel %vm4008, %v6637, 0
    %v6663 = vsel %vm4033, %v6613, 0
    %6665 = vmatprep.subr.bf16.mxu0 0
    %6666 = vmatpush1.bf16.msra.mxu0 %v6663
    %6667 = vmatprep.subr.bf16.mxu0 0
    %6668 = vmatpush1.bf16.msra.mxu0 0
    %6669 = vmatprep.subr.bf16.mxu0 0
    %6670 = vmatpush1.bf16.msra.mxu0 0
    %6671 = vmatprep.subr.bf16.mxu0 0
    %6672 = vmatpush1.bf16.msra.mxu0 0
    %6673 = vmatprep.subr.bf16.mxu0 0
    %6674 = vmatpush1.bf16.msra.mxu0 0
    %6675 = vmatprep.subr.bf16.mxu0 0
    %6676 = vmatpush1.bf16.msra.mxu0 0
    %6677 = vmatprep.subr.bf16.mxu0 0
    %6678 = vmatpush1.bf16.msra.mxu0 0
    %6679 = vmatprep.subr.bf16.mxu0 0
    %6680 = vmatpush1.bf16.msra.mxu0 0
    %6681 = vmatprep.subr.bf16.mxu0 0
    %6682 = vmatpush1.bf16.msra.mxu0 0
    %6683 = vmatprep.subr.bf16.mxu0 0
    %6684 = vmatpush1.bf16.msra.mxu0 0
    %6685 = vmatprep.subr.bf16.mxu0 0
    %6686 = vmatpush1.bf16.msra.mxu0 0
    %6687 = vmatprep.subr.bf16.mxu0 0
    %6688 = vmatpush1.bf16.msra.mxu0 0
    %6689 = vmatprep.subr.bf16.mxu0 0
    %6690 = vmatpush1.bf16.msra.mxu0 0
    %6691 = vmatprep.subr.bf16.mxu0 0
    %6692 = vmatpush1.bf16.msra.mxu0 0
    %6693 = vmatprep.subr.bf16.mxu0 0
    %6694 = vmatpush1.bf16.msra.mxu0 0
    %6695 = vmatprep.subr.bf16.mxu0 0
    %6696 = vmatpush1.bf16.msra.mxu0 0
    %6697 = vmatprep.mubr.bf16.mxu0 0
    %6698 = vmatmul.mubr.bf16.gmra.mrb[0].mxu0 %v6639
    %v6699 = vpop.f32.mrb[0].mxu0
    %v6700 = vadd.f32 0.0, %v6699
    %v6701 = vpop.f32.mrb[0].mxu0
    %v6702 = vpop.f32.mrb[0].mxu0
    %v6703 = vadd.f32 0.0, %v6702
    %v6704 = vpop.f32.mrb[0].mxu0
    %6705 = vmatprep.mubr.bf16.mxu0 0
    %6706 = vmatmul.mubr.bf16.gmra.mrb[0].mxu0 %v6642
    %v6707 = vpop.f32.mrb[0].mxu0
    %v6708 = vadd.f32 0.0, %v6707
    %v6709 = vpop.f32.mrb[0].mxu0
    %v6710 = vpop.f32.mrb[0].mxu0
    %v6711 = vadd.f32 0.0, %v6710
    %v6712 = vpop.f32.mrb[0].mxu0
    %6713 = vmatprep.mubr.bf16.mxu0 0
    %6714 = vmatmul.mubr.bf16.gmra.mrb[0].mxu0 %v6645
    %v6715 = vpop.f32.mrb[0].mxu0
    %v6716 = vadd.f32 0.0, %v6715
    %v6717 = vpop.f32.mrb[0].mxu0
    %v6718 = vpop.f32.mrb[0].mxu0
    %v6719 = vadd.f32 0.0, %v6718
    %v6720 = vpop.f32.mrb[0].mxu0
    %6721 = vmatprep.mubr.bf16.mxu0 0
    %6722 = vmatmul.mubr.bf16.gmra.mrb[0].mxu0 %v6648
    %v6723 = vpop.f32.mrb[0].mxu0
    %v6724 = vadd.f32 0.0, %v6723
    %v6725 = vpop.f32.mrb[0].mxu0
    %v6726 = vpop.f32.mrb[0].mxu0
    %v6727 = vadd.f32 0.0, %v6726
    %v6728 = vpop.f32.mrb[0].mxu0
    %6729 = vmatprep.mubr.bf16.mxu0 0
    %6730 = vmatmul.mubr.bf16.gmra.mrb[0].mxu0 %v6651
    %v6731 = vpop.f32.mrb[0].mxu0
    %v6732 = vadd.f32 0.0, %v6731
    %v6733 = vpop.f32.mrb[0].mxu0
    %v6734 = vpop.f32.mrb[0].mxu0
    %v6735 = vadd.f32 0.0, %v6734
    %v6736 = vpop.f32.mrb[0].mxu0
    %6737 = vmatprep.mubr.bf16.mxu0 0
    %6738 = vmatmul.mubr.bf16.gmra.mrb[0].mxu0 %v6654
    %v6739 = vpop.f32.mrb[0].mxu0
    %v6740 = vadd.f32 0.0, %v6739
    %v6741 = vpop.f32.mrb[0].mxu0
    %v6742 = vpop.f32.mrb[0].mxu0
    %v6743 = vadd.f32 0.0, %v6742
    %v6744 = vpop.f32.mrb[0].mxu0
    %6745 = vmatprep.mubr.bf16.mxu0 0
    %6746 = vmatmul.mubr.bf16.gmra.mrb[0].mxu0 %v6657
    %v6747 = vpop.f32.mrb[0].mxu0
    %v6748 = vadd.f32 0.0, %v6747
    %v6749 = vpop.f32.mrb[0].mxu0
    %v6750 = vpop.f32.mrb[0].mxu0
    %v6751 = vadd.f32 0.0, %v6750
    %v6752 = vpop.f32.mrb[0].mxu0
    %6753 = vmatprep.mubr.bf16.mxu0 0
    %6754 = vmatmul.mubr.bf16.gmra.mrb[0].mxu0 %v6660
    %v6755 = vpop.f32.mrb[0].mxu0
    %v6756 = vadd.f32 0.0, %v6755
    %v6757 = vpop.f32.mrb[0].mxu0
    %v6758 = vpop.f32.mrb[0].mxu0
    %v6759 = vadd.f32 0.0, %v6758
    %v6760 = vpop.f32.mrb[0].mxu0
    %6761 = vdwg.mxu0
    %v6762 = vadd.f32 %v6340, %v6700
    %v6763 = vadd.f32 %v6341, %v6703
    %v6764 = vadd.f32 %v6342, %v6708
    %v6765 = vadd.f32 %v6343, %v6711
    %v6766 = vadd.f32 %v6344, %v6716
    %v6767 = vadd.f32 %v6345, %v6719
    %v6768 = vadd.f32 %v6346, %v6724
    %v6769 = vadd.f32 %v6347, %v6727
    %v6770 = vadd.f32 %v6348, %v6732
    %v6771 = vadd.f32 %v6349, %v6735
    %v6772 = vadd.f32 %v6350, %v6740
    %v6773 = vadd.f32 %v6351, %v6743
    %v6774 = vadd.f32 %v6352, %v6748
    %v6775 = vadd.f32 %v6353, %v6751
    %v6776 = vadd.f32 %v6354, %v6756
    %v6777 = vadd.f32 %v6355, %v6759
    %6778 = vst.msk [vmem:[#allocation4] sm:$0xff] %vm4008, %v6762
    %6779 = vst.msk [vmem:[#allocation4 + $0x8] sm:$0xff] %vm4008, %v6763
    %6780 = vst.msk [vmem:[#allocation4 + $0x10] sm:$0xff] %vm4008, %v6764
    %6781 = vst.msk [vmem:[#allocation4 + $0x18] sm:$0xff] %vm4008, %v6765
    %6782 = vst.msk [vmem:[#allocation4 + $0x20] sm:$0xff] %vm4008, %v6766
    %6783 = vst.msk [vmem:[#allocation4 + $0x28] sm:$0xff] %vm4008, %v6767
    %6784 = vst.msk [vmem:[#allocation4 + $0x30] sm:$0xff] %vm4008, %v6768
    %6785 = vst.msk [vmem:[#allocation4 + $0x38] sm:$0xff] %vm4008, %v6769
    %6786 = vst.msk [vmem:[#allocation4 + $0x40] sm:$0xff] %vm4008, %v6770
    %6787 = vst.msk [vmem:[#allocation4 + $0x48] sm:$0xff] %vm4008, %v6771
    %6788 = vst.msk [vmem:[#allocation4 + $0x50] sm:$0xff] %vm4008, %v6772
    %6789 = vst.msk [vmem:[#allocation4 + $0x58] sm:$0xff] %vm4008, %v6773
    %6790 = vst.msk [vmem:[#allocation4 + $0x60] sm:$0xff] %vm4008, %v6774
    %6791 = vst.msk [vmem:[#allocation4 + $0x68] sm:$0xff] %vm4008, %v6775
    %6792 = vst.msk [vmem:[#allocation4 + $0x70] sm:$0xff] %vm4008, %v6776
    %6793 = vst.msk [vmem:[#allocation4 + $0x78] sm:$0xff] %vm4008, %v6777
    // Predicated region
    $region30: #{tpu_custom_call.1} parent=1 // pred_check
      _
    $region31: #{tpu_custom_call.1} parent=1 // pred_check_branch
      %6795 = sbr.rel (0) target = $region33
    $region32: #{tpu_custom_call.1} parent=1 // pred_region
      %s6797 = ssub.s32 2048, 2048
      %6798 = vsyncadd [#allocation5], %s6797
      %s6799 = sshll.u32 [#allocation4], 4
      %s6800 = int_to_ptr.vmem [resolvable:$true] %s6799
      %6805 = dma.vmem_to_hbm [thread:$0]  %s6800, 2048, %s7, [#allocation5], 128, 128, 8
    $region33: #{tpu_custom_call.1} parent=1 // pred_fallthru
      _
    // Predicated region
    $region34: #{tpu_custom_call.1} parent=1 // pred_check
      _
    $region35: #{tpu_custom_call.1} parent=1 // pred_check_branch
      %6807 = sbr.rel (0) target = $region37
    $region36: #{tpu_custom_call.1} parent=1 // pred_region
      %6808 = dma.done [#allocation5], 2048
    $region37: #{tpu_custom_call.1} parent=1 // pred_fallthru
      _
    %6809 = vsyncpa [#allocation5], 1

</llo_original>
